<compile_context>
chip_gen: v6e
topology: v6e:2x2x1
jax: 0.10.0
libtpu: 0.0.40
codegen_flags: <defaults>
</compile_context>

<pallas_src>
import functools

import jax
import jax.numpy as jnp
from jax.experimental import pallas as pl
from jax.experimental.pallas import tpu as pltpu


def _round_up(n, m):
    return ((n + m - 1) // m) * m


def _lstm_decoder_kernel(
    xp_ref,                      # (Bb, dim_z + dim): packed [x | pose0]
    wl_ref, bl_ref,              # init linear: (dim_z, dim_z) pre-T, (1, dim_z)
    wihx_ref,                    # (dim_z, 4H): x-part of W_ih, pre-T
    wihp_ref,                    # (dim,   4H): pose-part of W_ih, pre-T
    whh_ref,                     # (H,     4H): W_hh, pre-T
    b_ref,                       # (1,     4H): b_ih + b_hh
    w1_ref, b1_ref,              # (H, dim_z), (1, dim_z)
    w2_ref, b2_ref,              # (dim_z, dim), (1, dim)
    out_ref,                     # (Bb, input_len * dim), lane-dense
    *, input_len, dim, dim_z, residual, mxu_dtype):
    f32 = jnp.float32
    H = 2 * dim_z
    B = xp_ref.shape[0]

    # ---- hoisted, loop-invariant loads / broadcasts -------------------------
    wl = wl_ref[...]
    wihx = wihx_ref[...]
    wihp = wihp_ref[...]
    whh = whh_ref[...]
    w1 = w1_ref[...]
    w2 = w2_ref[...]
    b1 = jnp.broadcast_to(b1_ref[...], (B, dim_z))
    b2 = jnp.broadcast_to(b2_ref[...], (B, dim))

    x0 = xp_ref[:, :dim_z].astype(f32)
    pose = xp_ref[:, dim_z:].astype(f32)

    # x = relu(linear(x))
    x = jnp.maximum(
        jnp.dot(x0.astype(mxu_dtype), wl, preferred_element_type=f32)
        + bl_ref[...], 0.0)
    # x contribution to the LSTM gate pre-activations is constant over time.
    gx = (jnp.dot(x.astype(mxu_dtype), wihx, preferred_element_type=f32)
          + b_ref[...])                                          # (B, 4H)

    h = jnp.zeros((B, H), f32)
    c = jnp.zeros((B, H), f32)

    # input_len is a small static Python int -> fully unrolled.
    for t in range(input_len):
        # Two small dots (K <= 128 each) instead of a fused dot on a per-step
        # lane-concatenated operand: keeps the XLU concat out of the serial
        # recurrence.
        gates = (gx
                 + jnp.dot(pose.astype(mxu_dtype), wihp,
                           preferred_element_type=f32)
                 + jnp.dot(h.astype(mxu_dtype), whh,
                           preferred_element_type=f32))          # (B, 4H)

        zi = gates[:, 0 * H:1 * H]
        zf = gates[:, 1 * H:2 * H]
        zg = gates[:, 2 * H:3 * H]
        zo = gates[:, 3 * H:4 * H]
        c = jax.nn.sigmoid(zf) * c + jax.nn.sigmoid(zi) * jnp.tanh(zg)
        h = jax.nn.sigmoid(zo) * jnp.tanh(c)

        h_ = jnp.maximum(
            jnp.dot(h.astype(mxu_dtype), w1, preferred_element_type=f32) + b1,
            0.0)
        new_pose = (jnp.dot(h_.astype(mxu_dtype), w2,
                            preferred_element_type=f32) + b2)
        if residual:
            new_pose = new_pose + pose
        pose = new_pose

        # Store this step's pose into the VMEM-resident output block at a
        # static lane offset; the HBM writeback of the whole (Bb, T*dim) tile
        # is still a single lane-dense transfer per grid step.
        out_ref[:, t * dim:(t + 1) * dim] = pose.astype(out_ref.dtype)


def lstm_decoder_initfeed(x, pose, params, *, input_len, dim, dim_z,
                          residual=False, batch_block=None,
                          mxu_dtype=jnp.float32):
    """Pallas wrapper. x: (B, dim_z) f32, pose: (B, dim) f32 -> (B, T, dim)."""
    B = x.shape[0]
    H = 2 * dim_z
    f32 = jnp.float32
    wdt = mxu_dtype

    # ---- parameter prep (plain-JAX glue) ------------------------------------
    wl = params["Wl"].T.astype(wdt)                       # (dim_z, dim_z)
    bl = params["bl"][None, :].astype(f32)                # (1, dim_z)
    wih = params["Wih"]                                   # (4H, dim_z + dim)
    b = (params["bih"] + params["bhh"])[None, :].astype(f32)   # (1, 4H)
    wihx = wih[:, :dim_z].T.astype(wdt)                   # (dim_z, 4H)
    wihp = wih[:, dim_z:].T.astype(wdt)                   # (dim,   4H)
    whh = params["Whh"].T.astype(wdt)                     # (H,     4H)
    w1 = params["W1"].T.astype(wdt)                       # (H, dim_z)
    b1 = params["b1"][None, :].astype(f32)                # (1, dim_z)
    w2 = params["W2"].T.astype(wdt)                       # (dim_z, dim)
    b2 = params["b2"][None, :].astype(f32)                # (1, dim)

    # Pack (x | pose0) so each grid step issues one input DMA.
    xp = jnp.concatenate([x.astype(f32), pose.astype(f32)], axis=1)

    # Batch block: large enough to fill MXU rows / amortize per-grid-step
    # overhead; for B > 256 use 256-row blocks so grid >= 2 (megacore on v7x).
    if batch_block is None:
        b8 = _round_up(B, 8)
        batch_block = b8 if b8 <= 256 else 256
    pad = (-B) % batch_block
    if pad:
        xp = jnp.pad(xp, ((0, pad), (0, 0)))
    Bp = B + pad
    grid = (Bp // batch_block,)

    kernel = functools.partial(
        _lstm_decoder_kernel, input_len=input_len, dim=dim, dim_z=dim_z,
        residual=residual, mxu_dtype=mxu_dtype)

    def full(a):
        nd = a.ndim
        return pl.BlockSpec(a.shape, lambda bb, _nd=nd: (0,) * _nd)

    in_specs = [
        pl.BlockSpec((batch_block, dim_z + dim), lambda bb: (bb, 0)),  # [x|pose]
        full(wl), full(bl), full(wihx), full(wihp), full(whh), full(b),
        full(w1), full(b1), full(w2), full(b2),
    ]
    out_specs = pl.BlockSpec((batch_block, input_len * dim), lambda bb: (bb, 0))

    out = pl.pallas_call(
        kernel,
        grid=grid,
        out_shape=jax.ShapeDtypeStruct((Bp, input_len * dim), f32),
        in_specs=in_specs,
        out_specs=out_specs,
        compiler_params=pltpu.CompilerParams(
            dimension_semantics=("parallel",)),
    )(xp, wl, bl, wihx, wihp, whh, b, w1, b1, w2, b2)

    # (Bp, T*dim) -> (B, T, dim): free reshape, no transpose.
    return out[:B].reshape(B, input_len, dim)


def reference_forward(x, pose, p, *, input_len, residual=False):
    """Pure-JAX reference mirroring the PyTorch module."""
    x = jax.nn.relu(x @ p["Wl"].T + p["bl"])
    B = x.shape[0]
    H = p["Whh"].shape[1]
    h = jnp.zeros((B, H), jnp.float32)
    c = jnp.zeros((B, H), jnp.float32)
    inp = jnp.concatenate([x, pose], axis=1)
    outs = []
    for _ in range(input_len):
        gates = inp @ p["Wih"].T + p["bih"] + h @ p["Whh"].T + p["bhh"]
        i, f, g, o = jnp.split(gates, 4, axis=1)
        c = jax.nn.sigmoid(f) * c + jax.nn.sigmoid(i) * jnp.tanh(g)
        h = jax.nn.sigmoid(o) * jnp.tanh(c)
        h_ = jax.nn.relu(h @ p["W1"].T + p["b1"])
        new_pose = h_ @ p["W2"].T + p["b2"]
        pose = new_pose + pose if residual else new_pose
        outs.append(pose)
        inp = jnp.concatenate([x, pose], axis=1)
    return jnp.stack(outs, axis=1)


def init_params(key, dim, dim_z):
    """Deterministic synthetic parameters (PyTorch-default-style uniform init)."""
    H = 2 * dim_z
    ks = jax.random.split(key, 10)
    u = lambda k, shape, fan: jax.random.uniform(
        k, shape, jnp.float32, -1.0 / jnp.sqrt(fan), 1.0 / jnp.sqrt(fan))
    return {
        "Wl":  u(ks[0], (dim_z, dim_z), dim_z),
        "bl":  u(ks[1], (dim_z,), dim_z),
        "Wih": u(ks[2], (4 * H, dim_z + dim), H),
        "Whh": u(ks[3], (4 * H, H), H),
        "bih": u(ks[4], (4 * H,), H),
        "bhh": u(ks[5], (4 * H,), H),
        "W1":  u(ks[6], (dim_z, H), H),
        "b1":  u(ks[7], (dim_z,), H),
        "W2":  u(ks[8], (dim, dim_z), dim_z),
        "b2":  u(ks[9], (dim,), dim_z),
    }


if __name__ == "__main__":
    input_len, dim, dim_z = 8, 16, 32

    key = jax.random.PRNGKey(0)
    kp, kx, kpose = jax.random.split(key, 3)
    params = init_params(kp, dim, dim_z)

    # --- test 1: f32 MXU path, small batch, non-residual ---------------------
    batch = 8
    x = jax.random.normal(kx, (batch, dim_z), jnp.float32)
    pose = jax.random.normal(kpose, (batch, dim), jnp.float32)
    out = lstm_decoder_initfeed(x, pose, params, input_len=input_len,
                                dim=dim, dim_z=dim_z, residual=False)
    out = jax.block_until_ready(out)
    ref = reference_forward(x, pose, params, input_len=input_len,
                            residual=False)
    assert out.shape == (batch, input_len, dim), out.shape
    assert jnp.allclose(out, ref, atol=5e-5, rtol=5e-5), float(
        jnp.max(jnp.abs(out - ref)))

    # --- test 2: bf16 MXU operands, multi-block grid, residual path ----------
    batch2 = 48
    kx2, kp2 = jax.random.split(jax.random.PRNGKey(1))
    x2 = jax.random.normal(kx2, (batch2, dim_z), jnp.float32)
    pose2 = jax.random.normal(kp2, (batch2, dim), jnp.float32)
    out2 = lstm_decoder_initfeed(x2, pose2, params, input_len=input_len,
                                 dim=dim, dim_z=dim_z, residual=True,
                                 batch_block=16, mxu_dtype=jnp.bfloat16)
    out2 = jax.block_until_ready(out2)
    ref2 = reference_forward(x2, pose2, params, input_len=input_len,
                             residual=True)
    assert out2.shape == (batch2, input_len, dim), out2.shape
    # bf16 MXU operands with f32 accumulation: loose tolerance over T steps.
    assert jnp.allclose(out2, ref2, atol=1e-1, rtol=1e-1), float(
        jnp.max(jnp.abs(out2 - ref2)))

    print("KERNEL_OK")
</pallas_src>

<mosaic_0001>
module attributes {stable_mosaic.version = 11 : i64} {
  func.func @_lstm_decoder_kernel(%arg0: i32, %arg1: memref<8x48xf32, #tpu.memory_space<vmem>>, %arg2: memref<32x32xf32, #tpu.memory_space<vmem>>, %arg3: memref<1x32xf32, #tpu.memory_space<vmem>>, %arg4: memref<32x256xf32, #tpu.memory_space<vmem>>, %arg5: memref<16x256xf32, #tpu.memory_space<vmem>>, %arg6: memref<64x256xf32, #tpu.memory_space<vmem>>, %arg7: memref<1x256xf32, #tpu.memory_space<vmem>>, %arg8: memref<64x32xf32, #tpu.memory_space<vmem>>, %arg9: memref<1x32xf32, #tpu.memory_space<vmem>>, %arg10: memref<32x16xf32, #tpu.memory_space<vmem>>, %arg11: memref<1x16xf32, #tpu.memory_space<vmem>>, %arg12: memref<8x128xf32, #tpu.memory_space<vmem>>) attributes {dimension_semantics = [#tpu.dimension_semantics<parallel>], iteration_bounds = array<i64: 1>, scalar_prefetch = 0 : i64, scratch_operands = 0 : i64, tpu.core_type = #tpu.core_type<tc>, window_params = [{transform_indices = @transform_0, window_bounds = array<i64: 8, 48>}, {pipeline_mode = #tpu.pipeline_mode<synchronous>, transform_indices = @transform_1, window_bounds = array<i64: 32, 32>}, {pipeline_mode = #tpu.pipeline_mode<synchronous>, transform_indices = @transform_2, window_bounds = array<i64: 1, 32>}, {pipeline_mode = #tpu.pipeline_mode<synchronous>, transform_indices = @transform_3, window_bounds = array<i64: 32, 256>}, {pipeline_mode = #tpu.pipeline_mode<synchronous>, transform_indices = @transform_4, window_bounds = array<i64: 16, 256>}, {pipeline_mode = #tpu.pipeline_mode<synchronous>, transform_indices = @transform_5, window_bounds = array<i64: 64, 256>}, {pipeline_mode = #tpu.pipeline_mode<synchronous>, transform_indices = @transform_6, window_bounds = array<i64: 1, 256>}, {pipeline_mode = #tpu.pipeline_mode<synchronous>, transform_indices = @transform_7, window_bounds = array<i64: 64, 32>}, {pipeline_mode = #tpu.pipeline_mode<synchronous>, transform_indices = @transform_8, window_bounds = array<i64: 1, 32>}, {pipeline_mode = #tpu.pipeline_mode<synchronous>, transform_indices = @transform_9, window_bounds = array<i64: 32, 16>}, {pipeline_mode = #tpu.pipeline_mode<synchronous>, transform_indices = @transform_10, window_bounds = array<i64: 1, 16>}, {transform_indices = @transform_11, window_bounds = array<i64: 8, 128>}]} {
    %c0 = arith.constant 0 : index
    %c0_0 = arith.constant 0 : index
    %0 = vector.load %arg2[%c0, %c0_0] : memref<32x32xf32, #tpu.memory_space<vmem>>, vector<32x32xf32>
    %c0_1 = arith.constant 0 : index
    %c0_2 = arith.constant 0 : index
    %1 = vector.load %arg4[%c0_1, %c0_2] : memref<32x256xf32, #tpu.memory_space<vmem>>, vector<32x256xf32>
    %c0_3 = arith.constant 0 : index
    %c0_4 = arith.constant 0 : index
    %2 = vector.load %arg5[%c0_3, %c0_4] : memref<16x256xf32, #tpu.memory_space<vmem>>, vector<16x256xf32>
    %c0_5 = arith.constant 0 : index
    %c0_6 = arith.constant 0 : index
    %3 = vector.load %arg6[%c0_5, %c0_6] : memref<64x256xf32, #tpu.memory_space<vmem>>, vector<64x256xf32>
    %c0_7 = arith.constant 0 : index
    %c0_8 = arith.constant 0 : index
    %4 = vector.load %arg8[%c0_7, %c0_8] : memref<64x32xf32, #tpu.memory_space<vmem>>, vector<64x32xf32>
    %c0_9 = arith.constant 0 : index
    %c0_10 = arith.constant 0 : index
    %5 = vector.load %arg10[%c0_9, %c0_10] : memref<32x16xf32, #tpu.memory_space<vmem>>, vector<32x16xf32>
    %c0_11 = arith.constant 0 : index
    %c0_12 = arith.constant 0 : index
    %6 = vector.load %arg9[%c0_11, %c0_12] : memref<1x32xf32, #tpu.memory_space<vmem>>, vector<1x32xf32>
    %7 = vector.shape_cast %6 : vector<1x32xf32> to vector<1x32xf32>
    %8 = vector.broadcast %7 : vector<1x32xf32> to vector<8x32xf32>
    %c0_13 = arith.constant 0 : index
    %c0_14 = arith.constant 0 : index
    %9 = vector.load %arg11[%c0_13, %c0_14] : memref<1x16xf32, #tpu.memory_space<vmem>>, vector<1x16xf32>
    %10 = vector.shape_cast %9 : vector<1x16xf32> to vector<1x16xf32>
    %11 = vector.broadcast %10 : vector<1x16xf32> to vector<8x16xf32>
    %c0_15 = arith.constant 0 : index
    %c0_16 = arith.constant 0 : index
    %12 = vector.load %arg1[%c0_15, %c0_16] : memref<8x48xf32, #tpu.memory_space<vmem>>, vector<8x32xf32>
    %c0_17 = arith.constant 0 : index
    %c32 = arith.constant 32 : index
    %13 = vector.load %arg1[%c0_17, %c32] : memref<8x48xf32, #tpu.memory_space<vmem>>, vector<8x16xf32>
    %cst = arith.constant dense<0.000000e+00> : vector<8x32xf32>
    %14 = tpu.matmul %12, %0, %cst {dimension_numbers = #tpu.dot_dimension_numbers<[1], [0], [0], [1], [0, 0, 1, 1], [], []>} : vector<8x32xf32>, vector<32x32xf32>, vector<8x32xf32> -> vector<8x32xf32>
    %c0_18 = arith.constant 0 : index
    %c0_19 = arith.constant 0 : index
    %15 = vector.load %arg3[%c0_18, %c0_19] : memref<1x32xf32, #tpu.memory_space<vmem>>, vector<1x32xf32>
    %16 = vector.broadcast %15 : vector<1x32xf32> to vector<8x32xf32>
    %17 = arith.addf %14, %16 : vector<8x32xf32>
    %cst_20 = arith.constant 0.000000e+00 : f32
    %18 = vector.broadcast %cst_20 : f32 to vector<8x32xf32>
    %19 = arith.maximumf %17, %18 : vector<8x32xf32>
    %cst_21 = arith.constant dense<0.000000e+00> : vector<8x256xf32>
    %20 = tpu.matmul %19, %1, %cst_21 {dimension_numbers = #tpu.dot_dimension_numbers<[1], [0], [0], [1], [0, 0, 1, 1], [], []>} : vector<8x32xf32>, vector<32x256xf32>, vector<8x256xf32> -> vector<8x256xf32>
    %c0_22 = arith.constant 0 : index
    %c0_23 = arith.constant 0 : index
    %21 = vector.load %arg7[%c0_22, %c0_23] : memref<1x256xf32, #tpu.memory_space<vmem>>, vector<1x256xf32>
    %22 = vector.broadcast %21 : vector<1x256xf32> to vector<8x256xf32>
    %23 = arith.addf %20, %22 : vector<8x256xf32>
    %cst_24 = arith.constant 0.000000e+00 : f32
    %24 = vector.broadcast %cst_24 : f32 to vector<8x64xf32>
    %cst_25 = arith.constant 0.000000e+00 : f32
    %25 = vector.broadcast %cst_25 : f32 to vector<8x64xf32>
    %cst_26 = arith.constant dense<0.000000e+00> : vector<8x256xf32>
    %26 = tpu.matmul %13, %2, %cst_26 {dimension_numbers = #tpu.dot_dimension_numbers<[1], [0], [0], [1], [0, 0, 1, 1], [], []>} : vector<8x16xf32>, vector<16x256xf32>, vector<8x256xf32> -> vector<8x256xf32>
    %27 = arith.addf %23, %26 : vector<8x256xf32>
    %cst_27 = arith.constant dense<0.000000e+00> : vector<8x256xf32>
    %28 = tpu.matmul %24, %3, %cst_27 {dimension_numbers = #tpu.dot_dimension_numbers<[1], [0], [0], [1], [0, 0, 1, 1], [], []>} : vector<8x64xf32>, vector<64x256xf32>, vector<8x256xf32> -> vector<8x256xf32>
    %29 = arith.addf %27, %28 : vector<8x256xf32>
    %30 = vector.extract_strided_slice %29 {offsets = [0, 0], sizes = [8, 64], strides = [1, 1]} : vector<8x256xf32> to vector<8x64xf32>
    %31 = vector.extract_strided_slice %29 {offsets = [0, 64], sizes = [8, 64], strides = [1, 1]} : vector<8x256xf32> to vector<8x64xf32>
    %32 = vector.extract_strided_slice %29 {offsets = [0, 128], sizes = [8, 64], strides = [1, 1]} : vector<8x256xf32> to vector<8x64xf32>
    %33 = vector.extract_strided_slice %29 {offsets = [0, 192], sizes = [8, 64], strides = [1, 1]} : vector<8x256xf32> to vector<8x64xf32>
    %34 = arith.negf %31 : vector<8x64xf32>
    %35 = math.exp %34 : vector<8x64xf32>
    %cst_28 = arith.constant 1.000000e+00 : f32
    %36 = vector.broadcast %cst_28 : f32 to vector<8x64xf32>
    %37 = arith.addf %36, %35 : vector<8x64xf32>
    %38 = arith.divf %36, %37 : vector<8x64xf32>
    %39 = arith.mulf %38, %25 : vector<8x64xf32>
    %40 = arith.negf %30 : vector<8x64xf32>
    %41 = math.exp %40 : vector<8x64xf32>
    %cst_29 = arith.constant 1.000000e+00 : f32
    %42 = vector.broadcast %cst_29 : f32 to vector<8x64xf32>
    %43 = arith.addf %42, %41 : vector<8x64xf32>
    %44 = arith.divf %42, %43 : vector<8x64xf32>
    %45 = math.tanh %32 : vector<8x64xf32>
    %46 = arith.mulf %44, %45 : vector<8x64xf32>
    %47 = arith.addf %39, %46 : vector<8x64xf32>
    %48 = arith.negf %33 : vector<8x64xf32>
    %49 = math.exp %48 : vector<8x64xf32>
    %cst_30 = arith.constant 1.000000e+00 : f32
    %50 = vector.broadcast %cst_30 : f32 to vector<8x64xf32>
    %51 = arith.addf %50, %49 : vector<8x64xf32>
    %52 = arith.divf %50, %51 : vector<8x64xf32>
    %53 = math.tanh %47 : vector<8x64xf32>
    %54 = arith.mulf %52, %53 : vector<8x64xf32>
    %cst_31 = arith.constant dense<0.000000e+00> : vector<8x32xf32>
    %55 = tpu.matmul %54, %4, %cst_31 {dimension_numbers = #tpu.dot_dimension_numbers<[1], [0], [0], [1], [0, 0, 1, 1], [], []>} : vector<8x64xf32>, vector<64x32xf32>, vector<8x32xf32> -> vector<8x32xf32>
    %56 = arith.addf %55, %8 : vector<8x32xf32>
    %cst_32 = arith.constant 0.000000e+00 : f32
    %57 = vector.broadcast %cst_32 : f32 to vector<8x32xf32>
    %58 = arith.maximumf %56, %57 : vector<8x32xf32>
    %cst_33 = arith.constant dense<0.000000e+00> : vector<8x16xf32>
    %59 = tpu.matmul %58, %5, %cst_33 {dimension_numbers = #tpu.dot_dimension_numbers<[1], [0], [0], [1], [0, 0, 1, 1], [], []>} : vector<8x32xf32>, vector<32x16xf32>, vector<8x16xf32> -> vector<8x16xf32>
    %60 = arith.addf %59, %11 : vector<8x16xf32>
    %c0_34 = arith.constant 0 : index
    %c0_35 = arith.constant 0 : index
    %61 = vector.load %arg12[%c0_34, %c0_35] : memref<8x128xf32, #tpu.memory_space<vmem>>, vector<8x16xf32>
    tpu.vector_store %arg12[%c0_34, %c0_35], %60 {strides = array<i32>} : memref<8x128xf32, #tpu.memory_space<vmem>>, vector<8x16xf32>,
    %cst_36 = arith.constant dense<0.000000e+00> : vector<8x256xf32>
    %62 = tpu.matmul %60, %2, %cst_36 {dimension_numbers = #tpu.dot_dimension_numbers<[1], [0], [0], [1], [0, 0, 1, 1], [], []>} : vector<8x16xf32>, vector<16x256xf32>, vector<8x256xf32> -> vector<8x256xf32>
    %63 = arith.addf %23, %62 : vector<8x256xf32>
    %cst_37 = arith.constant dense<0.000000e+00> : vector<8x256xf32>
    %64 = tpu.matmul %54, %3, %cst_37 {dimension_numbers = #tpu.dot_dimension_numbers<[1], [0], [0], [1], [0, 0, 1, 1], [], []>} : vector<8x64xf32>, vector<64x256xf32>, vector<8x256xf32> -> vector<8x256xf32>
    %65 = arith.addf %63, %64 : vector<8x256xf32>
    %66 = vector.extract_strided_slice %65 {offsets = [0, 0], sizes = [8, 64], strides = [1, 1]} : vector<8x256xf32> to vector<8x64xf32>
    %67 = vector.extract_strided_slice %65 {offsets = [0, 64], sizes = [8, 64], strides = [1, 1]} : vector<8x256xf32> to vector<8x64xf32>
    %68 = vector.extract_strided_slice %65 {offsets = [0, 128], sizes = [8, 64], strides = [1, 1]} : vector<8x256xf32> to vector<8x64xf32>
    %69 = vector.extract_strided_slice %65 {offsets = [0, 192], sizes = [8, 64], strides = [1, 1]} : vector<8x256xf32> to vector<8x64xf32>
    %70 = arith.negf %67 : vector<8x64xf32>
    %71 = math.exp %70 : vector<8x64xf32>
    %cst_38 = arith.constant 1.000000e+00 : f32
    %72 = vector.broadcast %cst_38 : f32 to vector<8x64xf32>
    %73 = arith.addf %72, %71 : vector<8x64xf32>
    %74 = arith.divf %72, %73 : vector<8x64xf32>
    %75 = arith.mulf %74, %47 : vector<8x64xf32>
    %76 = arith.negf %66 : vector<8x64xf32>
    %77 = math.exp %76 : vector<8x64xf32>
    %cst_39 = arith.constant 1.000000e+00 : f32
    %78 = vector.broadcast %cst_39 : f32 to vector<8x64xf32>
    %79 = arith.addf %78, %77 : vector<8x64xf32>
    %80 = arith.divf %78, %79 : vector<8x64xf32>
    %81 = math.tanh %68 : vector<8x64xf32>
    %82 = arith.mulf %80, %81 : vector<8x64xf32>
    %83 = arith.addf %75, %82 : vector<8x64xf32>
    %84 = arith.negf %69 : vector<8x64xf32>
    %85 = math.exp %84 : vector<8x64xf32>
    %cst_40 = arith.constant 1.000000e+00 : f32
    %86 = vector.broadcast %cst_40 : f32 to vector<8x64xf32>
    %87 = arith.addf %86, %85 : vector<8x64xf32>
    %88 = arith.divf %86, %87 : vector<8x64xf32>
    %89 = math.tanh %83 : vector<8x64xf32>
    %90 = arith.mulf %88, %89 : vector<8x64xf32>
    %cst_41 = arith.constant dense<0.000000e+00> : vector<8x32xf32>
    %91 = tpu.matmul %90, %4, %cst_41 {dimension_numbers = #tpu.dot_dimension_numbers<[1], [0], [0], [1], [0, 0, 1, 1], [], []>} : vector<8x64xf32>, vector<64x32xf32>, vector<8x32xf32> -> vector<8x32xf32>
    %92 = arith.addf %91, %8 : vector<8x32xf32>
    %cst_42 = arith.constant 0.000000e+00 : f32
    %93 = vector.broadcast %cst_42 : f32 to vector<8x32xf32>
    %94 = arith.maximumf %92, %93 : vector<8x32xf32>
    %cst_43 = arith.constant dense<0.000000e+00> : vector<8x16xf32>
    %95 = tpu.matmul %94, %5, %cst_43 {dimension_numbers = #tpu.dot_dimension_numbers<[1], [0], [0], [1], [0, 0, 1, 1], [], []>} : vector<8x32xf32>, vector<32x16xf32>, vector<8x16xf32> -> vector<8x16xf32>
    %96 = arith.addf %95, %11 : vector<8x16xf32>
    %c0_44 = arith.constant 0 : index
    %c16 = arith.constant 16 : index
    %97 = vector.load %arg12[%c0_44, %c16] : memref<8x128xf32, #tpu.memory_space<vmem>>, vector<8x16xf32>
    tpu.vector_store %arg12[%c0_44, %c16], %96 {strides = array<i32>} : memref<8x128xf32, #tpu.memory_space<vmem>>, vector<8x16xf32>,
    %cst_45 = arith.constant dense<0.000000e+00> : vector<8x256xf32>
    %98 = tpu.matmul %96, %2, %cst_45 {dimension_numbers = #tpu.dot_dimension_numbers<[1], [0], [0], [1], [0, 0, 1, 1], [], []>} : vector<8x16xf32>, vector<16x256xf32>, vector<8x256xf32> -> vector<8x256xf32>
    %99 = arith.addf %23, %98 : vector<8x256xf32>
    %cst_46 = arith.constant dense<0.000000e+00> : vector<8x256xf32>
    %100 = tpu.matmul %90, %3, %cst_46 {dimension_numbers = #tpu.dot_dimension_numbers<[1], [0], [0], [1], [0, 0, 1, 1], [], []>} : vector<8x64xf32>, vector<64x256xf32>, vector<8x256xf32> -> vector<8x256xf32>
    %101 = arith.addf %99, %100 : vector<8x256xf32>
    %102 = vector.extract_strided_slice %101 {offsets = [0, 0], sizes = [8, 64], strides = [1, 1]} : vector<8x256xf32> to vector<8x64xf32>
    %103 = vector.extract_strided_slice %101 {offsets = [0, 64], sizes = [8, 64], strides = [1, 1]} : vector<8x256xf32> to vector<8x64xf32>
    %104 = vector.extract_strided_slice %101 {offsets = [0, 128], sizes = [8, 64], strides = [1, 1]} : vector<8x256xf32> to vector<8x64xf32>
    %105 = vector.extract_strided_slice %101 {offsets = [0, 192], sizes = [8, 64], strides = [1, 1]} : vector<8x256xf32> to vector<8x64xf32>
    %106 = arith.negf %103 : vector<8x64xf32>
    %107 = math.exp %106 : vector<8x64xf32>
    %cst_47 = arith.constant 1.000000e+00 : f32
    %108 = vector.broadcast %cst_47 : f32 to vector<8x64xf32>
    %109 = arith.addf %108, %107 : vector<8x64xf32>
    %110 = arith.divf %108, %109 : vector<8x64xf32>
    %111 = arith.mulf %110, %83 : vector<8x64xf32>
    %112 = arith.negf %102 : vector<8x64xf32>
    %113 = math.exp %112 : vector<8x64xf32>
    %cst_48 = arith.constant 1.000000e+00 : f32
    %114 = vector.broadcast %cst_48 : f32 to vector<8x64xf32>
    %115 = arith.addf %114, %113 : vector<8x64xf32>
    %116 = arith.divf %114, %115 : vector<8x64xf32>
    %117 = math.tanh %104 : vector<8x64xf32>
    %118 = arith.mulf %116, %117 : vector<8x64xf32>
    %119 = arith.addf %111, %118 : vector<8x64xf32>
    %120 = arith.negf %105 : vector<8x64xf32>
    %121 = math.exp %120 : vector<8x64xf32>
    %cst_49 = arith.constant 1.000000e+00 : f32
    %122 = vector.broadcast %cst_49 : f32 to vector<8x64xf32>
    %123 = arith.addf %122, %121 : vector<8x64xf32>
    %124 = arith.divf %122, %123 : vector<8x64xf32>
    %125 = math.tanh %119 : vector<8x64xf32>
    %126 = arith.mulf %124, %125 : vector<8x64xf32>
    %cst_50 = arith.constant dense<0.000000e+00> : vector<8x32xf32>
    %127 = tpu.matmul %126, %4, %cst_50 {dimension_numbers = #tpu.dot_dimension_numbers<[1], [0], [0], [1], [0, 0, 1, 1], [], []>} : vector<8x64xf32>, vector<64x32xf32>, vector<8x32xf32> -> vector<8x32xf32>
    %128 = arith.addf %127, %8 : vector<8x32xf32>
    %cst_51 = arith.constant 0.000000e+00 : f32
    %129 = vector.broadcast %cst_51 : f32 to vector<8x32xf32>
    %130 = arith.maximumf %128, %129 : vector<8x32xf32>
    %cst_52 = arith.constant dense<0.000000e+00> : vector<8x16xf32>
    %131 = tpu.matmul %130, %5, %cst_52 {dimension_numbers = #tpu.dot_dimension_numbers<[1], [0], [0], [1], [0, 0, 1, 1], [], []>} : vector<8x32xf32>, vector<32x16xf32>, vector<8x16xf32> -> vector<8x16xf32>
    %132 = arith.addf %131, %11 : vector<8x16xf32>
    %c0_53 = arith.constant 0 : index
    %c32_54 = arith.constant 32 : index
    %133 = vector.load %arg12[%c0_53, %c32_54] : memref<8x128xf32, #tpu.memory_space<vmem>>, vector<8x16xf32>
    tpu.vector_store %arg12[%c0_53, %c32_54], %132 {strides = array<i32>} : memref<8x128xf32, #tpu.memory_space<vmem>>, vector<8x16xf32>,
    %cst_55 = arith.constant dense<0.000000e+00> : vector<8x256xf32>
    %134 = tpu.matmul %132, %2, %cst_55 {dimension_numbers = #tpu.dot_dimension_numbers<[1], [0], [0], [1], [0, 0, 1, 1], [], []>} : vector<8x16xf32>, vector<16x256xf32>, vector<8x256xf32> -> vector<8x256xf32>
    %135 = arith.addf %23, %134 : vector<8x256xf32>
    %cst_56 = arith.constant dense<0.000000e+00> : vector<8x256xf32>
    %136 = tpu.matmul %126, %3, %cst_56 {dimension_numbers = #tpu.dot_dimension_numbers<[1], [0], [0], [1], [0, 0, 1, 1], [], []>} : vector<8x64xf32>, vector<64x256xf32>, vector<8x256xf32> -> vector<8x256xf32>
    %137 = arith.addf %135, %136 : vector<8x256xf32>
    %138 = vector.extract_strided_slice %137 {offsets = [0, 0], sizes = [8, 64], strides = [1, 1]} : vector<8x256xf32> to vector<8x64xf32>
    %139 = vector.extract_strided_slice %137 {offsets = [0, 64], sizes = [8, 64], strides = [1, 1]} : vector<8x256xf32> to vector<8x64xf32>
    %140 = vector.extract_strided_slice %137 {offsets = [0, 128], sizes = [8, 64], strides = [1, 1]} : vector<8x256xf32> to vector<8x64xf32>
    %141 = vector.extract_strided_slice %137 {offsets = [0, 192], sizes = [8, 64], strides = [1, 1]} : vector<8x256xf32> to vector<8x64xf32>
    %142 = arith.negf %139 : vector<8x64xf32>
    %143 = math.exp %142 : vector<8x64xf32>
    %cst_57 = arith.constant 1.000000e+00 : f32
    %144 = vector.broadcast %cst_57 : f32 to vector<8x64xf32>
    %145 = arith.addf %144, %143 : vector<8x64xf32>
    %146 = arith.divf %144, %145 : vector<8x64xf32>
    %147 = arith.mulf %146, %119 : vector<8x64xf32>
    %148 = arith.negf %138 : vector<8x64xf32>
    %149 = math.exp %148 : vector<8x64xf32>
    %cst_58 = arith.constant 1.000000e+00 : f32
    %150 = vector.broadcast %cst_58 : f32 to vector<8x64xf32>
    %151 = arith.addf %150, %149 : vector<8x64xf32>
    %152 = arith.divf %150, %151 : vector<8x64xf32>
    %153 = math.tanh %140 : vector<8x64xf32>
    %154 = arith.mulf %152, %153 : vector<8x64xf32>
    %155 = arith.addf %147, %154 : vector<8x64xf32>
    %156 = arith.negf %141 : vector<8x64xf32>
    %157 = math.exp %156 : vector<8x64xf32>
    %cst_59 = arith.constant 1.000000e+00 : f32
    %158 = vector.broadcast %cst_59 : f32 to vector<8x64xf32>
    %159 = arith.addf %158, %157 : vector<8x64xf32>
    %160 = arith.divf %158, %159 : vector<8x64xf32>
    %161 = math.tanh %155 : vector<8x64xf32>
    %162 = arith.mulf %160, %161 : vector<8x64xf32>
    %cst_60 = arith.constant dense<0.000000e+00> : vector<8x32xf32>
    %163 = tpu.matmul %162, %4, %cst_60 {dimension_numbers = #tpu.dot_dimension_numbers<[1], [0], [0], [1], [0, 0, 1, 1], [], []>} : vector<8x64xf32>, vector<64x32xf32>, vector<8x32xf32> -> vector<8x32xf32>
    %164 = arith.addf %163, %8 : vector<8x32xf32>
    %cst_61 = arith.constant 0.000000e+00 : f32
    %165 = vector.broadcast %cst_61 : f32 to vector<8x32xf32>
    %166 = arith.maximumf %164, %165 : vector<8x32xf32>
    %cst_62 = arith.constant dense<0.000000e+00> : vector<8x16xf32>
    %167 = tpu.matmul %166, %5, %cst_62 {dimension_numbers = #tpu.dot_dimension_numbers<[1], [0], [0], [1], [0, 0, 1, 1], [], []>} : vector<8x32xf32>, vector<32x16xf32>, vector<8x16xf32> -> vector<8x16xf32>
    %168 = arith.addf %167, %11 : vector<8x16xf32>
    %c0_63 = arith.constant 0 : index
    %c48 = arith.constant 48 : index
    %169 = vector.load %arg12[%c0_63, %c48] : memref<8x128xf32, #tpu.memory_space<vmem>>, vector<8x16xf32>
    tpu.vector_store %arg12[%c0_63, %c48], %168 {strides = array<i32>} : memref<8x128xf32, #tpu.memory_space<vmem>>, vector<8x16xf32>,
    %cst_64 = arith.constant dense<0.000000e+00> : vector<8x256xf32>
    %170 = tpu.matmul %168, %2, %cst_64 {dimension_numbers = #tpu.dot_dimension_numbers<[1], [0], [0], [1], [0, 0, 1, 1], [], []>} : vector<8x16xf32>, vector<16x256xf32>, vector<8x256xf32> -> vector<8x256xf32>
    %171 = arith.addf %23, %170 : vector<8x256xf32>
    %cst_65 = arith.constant dense<0.000000e+00> : vector<8x256xf32>
    %172 = tpu.matmul %162, %3, %cst_65 {dimension_numbers = #tpu.dot_dimension_numbers<[1], [0], [0], [1], [0, 0, 1, 1], [], []>} : vector<8x64xf32>, vector<64x256xf32>, vector<8x256xf32> -> vector<8x256xf32>
    %173 = arith.addf %171, %172 : vector<8x256xf32>
    %174 = vector.extract_strided_slice %173 {offsets = [0, 0], sizes = [8, 64], strides = [1, 1]} : vector<8x256xf32> to vector<8x64xf32>
    %175 = vector.extract_strided_slice %173 {offsets = [0, 64], sizes = [8, 64], strides = [1, 1]} : vector<8x256xf32> to vector<8x64xf32>
    %176 = vector.extract_strided_slice %173 {offsets = [0, 128], sizes = [8, 64], strides = [1, 1]} : vector<8x256xf32> to vector<8x64xf32>
    %177 = vector.extract_strided_slice %173 {offsets = [0, 192], sizes = [8, 64], strides = [1, 1]} : vector<8x256xf32> to vector<8x64xf32>
    %178 = arith.negf %175 : vector<8x64xf32>
    %179 = math.exp %178 : vector<8x64xf32>
    %cst_66 = arith.constant 1.000000e+00 : f32
    %180 = vector.broadcast %cst_66 : f32 to vector<8x64xf32>
    %181 = arith.addf %180, %179 : vector<8x64xf32>
    %182 = arith.divf %180, %181 : vector<8x64xf32>
    %183 = arith.mulf %182, %155 : vector<8x64xf32>
    %184 = arith.negf %174 : vector<8x64xf32>
    %185 = math.exp %184 : vector<8x64xf32>
    %cst_67 = arith.constant 1.000000e+00 : f32
    %186 = vector.broadcast %cst_67 : f32 to vector<8x64xf32>
    %187 = arith.addf %186, %185 : vector<8x64xf32>
    %188 = arith.divf %186, %187 : vector<8x64xf32>
    %189 = math.tanh %176 : vector<8x64xf32>
    %190 = arith.mulf %188, %189 : vector<8x64xf32>
    %191 = arith.addf %183, %190 : vector<8x64xf32>
    %192 = arith.negf %177 : vector<8x64xf32>
    %193 = math.exp %192 : vector<8x64xf32>
    %cst_68 = arith.constant 1.000000e+00 : f32
    %194 = vector.broadcast %cst_68 : f32 to vector<8x64xf32>
    %195 = arith.addf %194, %193 : vector<8x64xf32>
    %196 = arith.divf %194, %195 : vector<8x64xf32>
    %197 = math.tanh %191 : vector<8x64xf32>
    %198 = arith.mulf %196, %197 : vector<8x64xf32>
    %cst_69 = arith.constant dense<0.000000e+00> : vector<8x32xf32>
    %199 = tpu.matmul %198, %4, %cst_69 {dimension_numbers = #tpu.dot_dimension_numbers<[1], [0], [0], [1], [0, 0, 1, 1], [], []>} : vector<8x64xf32>, vector<64x32xf32>, vector<8x32xf32> -> vector<8x32xf32>
    %200 = arith.addf %199, %8 : vector<8x32xf32>
    %cst_70 = arith.constant 0.000000e+00 : f32
    %201 = vector.broadcast %cst_70 : f32 to vector<8x32xf32>
    %202 = arith.maximumf %200, %201 : vector<8x32xf32>
    %cst_71 = arith.constant dense<0.000000e+00> : vector<8x16xf32>
    %203 = tpu.matmul %202, %5, %cst_71 {dimension_numbers = #tpu.dot_dimension_numbers<[1], [0], [0], [1], [0, 0, 1, 1], [], []>} : vector<8x32xf32>, vector<32x16xf32>, vector<8x16xf32> -> vector<8x16xf32>
    %204 = arith.addf %203, %11 : vector<8x16xf32>
    %c0_72 = arith.constant 0 : index
    %c64 = arith.constant 64 : index
    %205 = vector.load %arg12[%c0_72, %c64] : memref<8x128xf32, #tpu.memory_space<vmem>>, vector<8x16xf32>
    tpu.vector_store %arg12[%c0_72, %c64], %204 {strides = array<i32>} : memref<8x128xf32, #tpu.memory_space<vmem>>, vector<8x16xf32>,
    %cst_73 = arith.constant dense<0.000000e+00> : vector<8x256xf32>
    %206 = tpu.matmul %204, %2, %cst_73 {dimension_numbers = #tpu.dot_dimension_numbers<[1], [0], [0], [1], [0, 0, 1, 1], [], []>} : vector<8x16xf32>, vector<16x256xf32>, vector<8x256xf32> -> vector<8x256xf32>
    %207 = arith.addf %23, %206 : vector<8x256xf32>
    %cst_74 = arith.constant dense<0.000000e+00> : vector<8x256xf32>
    %208 = tpu.matmul %198, %3, %cst_74 {dimension_numbers = #tpu.dot_dimension_numbers<[1], [0], [0], [1], [0, 0, 1, 1], [], []>} : vector<8x64xf32>, vector<64x256xf32>, vector<8x256xf32> -> vector<8x256xf32>
    %209 = arith.addf %207, %208 : vector<8x256xf32>
    %210 = vector.extract_strided_slice %209 {offsets = [0, 0], sizes = [8, 64], strides = [1, 1]} : vector<8x256xf32> to vector<8x64xf32>
    %211 = vector.extract_strided_slice %209 {offsets = [0, 64], sizes = [8, 64], strides = [1, 1]} : vector<8x256xf32> to vector<8x64xf32>
    %212 = vector.extract_strided_slice %209 {offsets = [0, 128], sizes = [8, 64], strides = [1, 1]} : vector<8x256xf32> to vector<8x64xf32>
    %213 = vector.extract_strided_slice %209 {offsets = [0, 192], sizes = [8, 64], strides = [1, 1]} : vector<8x256xf32> to vector<8x64xf32>
    %214 = arith.negf %211 : vector<8x64xf32>
    %215 = math.exp %214 : vector<8x64xf32>
    %cst_75 = arith.constant 1.000000e+00 : f32
    %216 = vector.broadcast %cst_75 : f32 to vector<8x64xf32>
    %217 = arith.addf %216, %215 : vector<8x64xf32>
    %218 = arith.divf %216, %217 : vector<8x64xf32>
    %219 = arith.mulf %218, %191 : vector<8x64xf32>
    %220 = arith.negf %210 : vector<8x64xf32>
    %221 = math.exp %220 : vector<8x64xf32>
    %cst_76 = arith.constant 1.000000e+00 : f32
    %222 = vector.broadcast %cst_76 : f32 to vector<8x64xf32>
    %223 = arith.addf %222, %221 : vector<8x64xf32>
    %224 = arith.divf %222, %223 : vector<8x64xf32>
    %225 = math.tanh %212 : vector<8x64xf32>
    %226 = arith.mulf %224, %225 : vector<8x64xf32>
    %227 = arith.addf %219, %226 : vector<8x64xf32>
    %228 = arith.negf %213 : vector<8x64xf32>
    %229 = math.exp %228 : vector<8x64xf32>
    %cst_77 = arith.constant 1.000000e+00 : f32
    %230 = vector.broadcast %cst_77 : f32 to vector<8x64xf32>
    %231 = arith.addf %230, %229 : vector<8x64xf32>
    %232 = arith.divf %230, %231 : vector<8x64xf32>
    %233 = math.tanh %227 : vector<8x64xf32>
    %234 = arith.mulf %232, %233 : vector<8x64xf32>
    %cst_78 = arith.constant dense<0.000000e+00> : vector<8x32xf32>
    %235 = tpu.matmul %234, %4, %cst_78 {dimension_numbers = #tpu.dot_dimension_numbers<[1], [0], [0], [1], [0, 0, 1, 1], [], []>} : vector<8x64xf32>, vector<64x32xf32>, vector<8x32xf32> -> vector<8x32xf32>
    %236 = arith.addf %235, %8 : vector<8x32xf32>
    %cst_79 = arith.constant 0.000000e+00 : f32
    %237 = vector.broadcast %cst_79 : f32 to vector<8x32xf32>
    %238 = arith.maximumf %236, %237 : vector<8x32xf32>
    %cst_80 = arith.constant dense<0.000000e+00> : vector<8x16xf32>
    %239 = tpu.matmul %238, %5, %cst_80 {dimension_numbers = #tpu.dot_dimension_numbers<[1], [0], [0], [1], [0, 0, 1, 1], [], []>} : vector<8x32xf32>, vector<32x16xf32>, vector<8x16xf32> -> vector<8x16xf32>
    %240 = arith.addf %239, %11 : vector<8x16xf32>
    %c0_81 = arith.constant 0 : index
    %c80 = arith.constant 80 : index
    %241 = vector.load %arg12[%c0_81, %c80] : memref<8x128xf32, #tpu.memory_space<vmem>>, vector<8x16xf32>
    tpu.vector_store %arg12[%c0_81, %c80], %240 {strides = array<i32>} : memref<8x128xf32, #tpu.memory_space<vmem>>, vector<8x16xf32>,
    %cst_82 = arith.constant dense<0.000000e+00> : vector<8x256xf32>
    %242 = tpu.matmul %240, %2, %cst_82 {dimension_numbers = #tpu.dot_dimension_numbers<[1], [0], [0], [1], [0, 0, 1, 1], [], []>} : vector<8x16xf32>, vector<16x256xf32>, vector<8x256xf32> -> vector<8x256xf32>
    %243 = arith.addf %23, %242 : vector<8x256xf32>
    %cst_83 = arith.constant dense<0.000000e+00> : vector<8x256xf32>
    %244 = tpu.matmul %234, %3, %cst_83 {dimension_numbers = #tpu.dot_dimension_numbers<[1], [0], [0], [1], [0, 0, 1, 1], [], []>} : vector<8x64xf32>, vector<64x256xf32>, vector<8x256xf32> -> vector<8x256xf32>
    %245 = arith.addf %243, %244 : vector<8x256xf32>
    %246 = vector.extract_strided_slice %245 {offsets = [0, 0], sizes = [8, 64], strides = [1, 1]} : vector<8x256xf32> to vector<8x64xf32>
    %247 = vector.extract_strided_slice %245 {offsets = [0, 64], sizes = [8, 64], strides = [1, 1]} : vector<8x256xf32> to vector<8x64xf32>
    %248 = vector.extract_strided_slice %245 {offsets = [0, 128], sizes = [8, 64], strides = [1, 1]} : vector<8x256xf32> to vector<8x64xf32>
    %249 = vector.extract_strided_slice %245 {offsets = [0, 192], sizes = [8, 64], strides = [1, 1]} : vector<8x256xf32> to vector<8x64xf32>
    %250 = arith.negf %247 : vector<8x64xf32>
    %251 = math.exp %250 : vector<8x64xf32>
    %cst_84 = arith.constant 1.000000e+00 : f32
    %252 = vector.broadcast %cst_84 : f32 to vector<8x64xf32>
    %253 = arith.addf %252, %251 : vector<8x64xf32>
    %254 = arith.divf %252, %253 : vector<8x64xf32>
    %255 = arith.mulf %254, %227 : vector<8x64xf32>
    %256 = arith.negf %246 : vector<8x64xf32>
    %257 = math.exp %256 : vector<8x64xf32>
    %cst_85 = arith.constant 1.000000e+00 : f32
    %258 = vector.broadcast %cst_85 : f32 to vector<8x64xf32>
    %259 = arith.addf %258, %257 : vector<8x64xf32>
    %260 = arith.divf %258, %259 : vector<8x64xf32>
    %261 = math.tanh %248 : vector<8x64xf32>
    %262 = arith.mulf %260, %261 : vector<8x64xf32>
    %263 = arith.addf %255, %262 : vector<8x64xf32>
    %264 = arith.negf %249 : vector<8x64xf32>
    %265 = math.exp %264 : vector<8x64xf32>
    %cst_86 = arith.constant 1.000000e+00 : f32
    %266 = vector.broadcast %cst_86 : f32 to vector<8x64xf32>
    %267 = arith.addf %266, %265 : vector<8x64xf32>
    %268 = arith.divf %266, %267 : vector<8x64xf32>
    %269 = math.tanh %263 : vector<8x64xf32>
    %270 = arith.mulf %268, %269 : vector<8x64xf32>
    %cst_87 = arith.constant dense<0.000000e+00> : vector<8x32xf32>
    %271 = tpu.matmul %270, %4, %cst_87 {dimension_numbers = #tpu.dot_dimension_numbers<[1], [0], [0], [1], [0, 0, 1, 1], [], []>} : vector<8x64xf32>, vector<64x32xf32>, vector<8x32xf32> -> vector<8x32xf32>
    %272 = arith.addf %271, %8 : vector<8x32xf32>
    %cst_88 = arith.constant 0.000000e+00 : f32
    %273 = vector.broadcast %cst_88 : f32 to vector<8x32xf32>
    %274 = arith.maximumf %272, %273 : vector<8x32xf32>
    %cst_89 = arith.constant dense<0.000000e+00> : vector<8x16xf32>
    %275 = tpu.matmul %274, %5, %cst_89 {dimension_numbers = #tpu.dot_dimension_numbers<[1], [0], [0], [1], [0, 0, 1, 1], [], []>} : vector<8x32xf32>, vector<32x16xf32>, vector<8x16xf32> -> vector<8x16xf32>
    %276 = arith.addf %275, %11 : vector<8x16xf32>
    %c0_90 = arith.constant 0 : index
    %c96 = arith.constant 96 : index
    %277 = vector.load %arg12[%c0_90, %c96] : memref<8x128xf32, #tpu.memory_space<vmem>>, vector<8x16xf32>
    tpu.vector_store %arg12[%c0_90, %c96], %276 {strides = array<i32>} : memref<8x128xf32, #tpu.memory_space<vmem>>, vector<8x16xf32>,
    %cst_91 = arith.constant dense<0.000000e+00> : vector<8x256xf32>
    %278 = tpu.matmul %276, %2, %cst_91 {dimension_numbers = #tpu.dot_dimension_numbers<[1], [0], [0], [1], [0, 0, 1, 1], [], []>} : vector<8x16xf32>, vector<16x256xf32>, vector<8x256xf32> -> vector<8x256xf32>
    %279 = arith.addf %23, %278 : vector<8x256xf32>
    %cst_92 = arith.constant dense<0.000000e+00> : vector<8x256xf32>
    %280 = tpu.matmul %270, %3, %cst_92 {dimension_numbers = #tpu.dot_dimension_numbers<[1], [0], [0], [1], [0, 0, 1, 1], [], []>} : vector<8x64xf32>, vector<64x256xf32>, vector<8x256xf32> -> vector<8x256xf32>
    %281 = arith.addf %279, %280 : vector<8x256xf32>
    %282 = vector.extract_strided_slice %281 {offsets = [0, 0], sizes = [8, 64], strides = [1, 1]} : vector<8x256xf32> to vector<8x64xf32>
    %283 = vector.extract_strided_slice %281 {offsets = [0, 64], sizes = [8, 64], strides = [1, 1]} : vector<8x256xf32> to vector<8x64xf32>
    %284 = vector.extract_strided_slice %281 {offsets = [0, 128], sizes = [8, 64], strides = [1, 1]} : vector<8x256xf32> to vector<8x64xf32>
    %285 = vector.extract_strided_slice %281 {offsets = [0, 192], sizes = [8, 64], strides = [1, 1]} : vector<8x256xf32> to vector<8x64xf32>
    %286 = arith.negf %283 : vector<8x64xf32>
    %287 = math.exp %286 : vector<8x64xf32>
    %cst_93 = arith.constant 1.000000e+00 : f32
    %288 = vector.broadcast %cst_93 : f32 to vector<8x64xf32>
    %289 = arith.addf %288, %287 : vector<8x64xf32>
    %290 = arith.divf %288, %289 : vector<8x64xf32>
    %291 = arith.mulf %290, %263 : vector<8x64xf32>
    %292 = arith.negf %282 : vector<8x64xf32>
    %293 = math.exp %292 : vector<8x64xf32>
    %cst_94 = arith.constant 1.000000e+00 : f32
    %294 = vector.broadcast %cst_94 : f32 to vector<8x64xf32>
    %295 = arith.addf %294, %293 : vector<8x64xf32>
    %296 = arith.divf %294, %295 : vector<8x64xf32>
    %297 = math.tanh %284 : vector<8x64xf32>
    %298 = arith.mulf %296, %297 : vector<8x64xf32>
    %299 = arith.addf %291, %298 : vector<8x64xf32>
    %300 = arith.negf %285 : vector<8x64xf32>
    %301 = math.exp %300 : vector<8x64xf32>
    %cst_95 = arith.constant 1.000000e+00 : f32
    %302 = vector.broadcast %cst_95 : f32 to vector<8x64xf32>
    %303 = arith.addf %302, %301 : vector<8x64xf32>
    %304 = arith.divf %302, %303 : vector<8x64xf32>
    %305 = math.tanh %299 : vector<8x64xf32>
    %306 = arith.mulf %304, %305 : vector<8x64xf32>
    %cst_96 = arith.constant dense<0.000000e+00> : vector<8x32xf32>
    %307 = tpu.matmul %306, %4, %cst_96 {dimension_numbers = #tpu.dot_dimension_numbers<[1], [0], [0], [1], [0, 0, 1, 1], [], []>} : vector<8x64xf32>, vector<64x32xf32>, vector<8x32xf32> -> vector<8x32xf32>
    %308 = arith.addf %307, %8 : vector<8x32xf32>
    %cst_97 = arith.constant 0.000000e+00 : f32
    %309 = vector.broadcast %cst_97 : f32 to vector<8x32xf32>
    %310 = arith.maximumf %308, %309 : vector<8x32xf32>
    %cst_98 = arith.constant dense<0.000000e+00> : vector<8x16xf32>
    %311 = tpu.matmul %310, %5, %cst_98 {dimension_numbers = #tpu.dot_dimension_numbers<[1], [0], [0], [1], [0, 0, 1, 1], [], []>} : vector<8x32xf32>, vector<32x16xf32>, vector<8x16xf32> -> vector<8x16xf32>
    %312 = arith.addf %311, %11 : vector<8x16xf32>
    %c0_99 = arith.constant 0 : index
    %c112 = arith.constant 112 : index
    %313 = vector.load %arg12[%c0_99, %c112] : memref<8x128xf32, #tpu.memory_space<vmem>>, vector<8x16xf32>
    tpu.vector_store %arg12[%c0_99, %c112], %312 {strides = array<i32>} : memref<8x128xf32, #tpu.memory_space<vmem>>, vector<8x16xf32>,
    return
  }
  func.func @transform_0(%arg0: i32) -> (i32, i32) {
    %c0_i32 = arith.constant 0 : i32
    %c0_i32_0 = arith.constant 0 : i32
    return %arg0, %c0_i32 : i32, i32
  }
  func.func @transform_1(%arg0: i32) -> (i32, i32) {
    %c0_i32 = arith.constant 0 : i32
    %c0_i32_0 = arith.constant 0 : i32
    %c0_i32_1 = arith.constant 0 : i32
    return %c0_i32, %c0_i32_0 : i32, i32
  }
  func.func @transform_2(%arg0: i32) -> (i32, i32) {
    %c0_i32 = arith.constant 0 : i32
    %c0_i32_0 = arith.constant 0 : i32
    %c0_i32_1 = arith.constant 0 : i32
    return %c0_i32, %c0_i32_0 : i32, i32
  }
  func.func @transform_3(%arg0: i32) -> (i32, i32) {
    %c0_i32 = arith.constant 0 : i32
    %c0_i32_0 = arith.constant 0 : i32
    %c0_i32_1 = arith.constant 0 : i32
    return %c0_i32, %c0_i32_0 : i32, i32
  }
  func.func @transform_4(%arg0: i32) -> (i32, i32) {
    %c0_i32 = arith.constant 0 : i32
    %c0_i32_0 = arith.constant 0 : i32
    %c0_i32_1 = arith.constant 0 : i32
    return %c0_i32, %c0_i32_0 : i32, i32
  }
  func.func @transform_5(%arg0: i32) -> (i32, i32) {
    %c0_i32 = arith.constant 0 : i32
    %c0_i32_0 = arith.constant 0 : i32
    %c0_i32_1 = arith.constant 0 : i32
    return %c0_i32, %c0_i32_0 : i32, i32
  }
  func.func @transform_6(%arg0: i32) -> (i32, i32) {
    %c0_i32 = arith.constant 0 : i32
    %c0_i32_0 = arith.constant 0 : i32
    %c0_i32_1 = arith.constant 0 : i32
    return %c0_i32, %c0_i32_0 : i32, i32
  }
  func.func @transform_7(%arg0: i32) -> (i32, i32) {
    %c0_i32 = arith.constant 0 : i32
    %c0_i32_0 = arith.constant 0 : i32
    %c0_i32_1 = arith.constant 0 : i32
    return %c0_i32, %c0_i32_0 : i32, i32
  }
  func.func @transform_8(%arg0: i32) -> (i32, i32) {
    %c0_i32 = arith.constant 0 : i32
    %c0_i32_0 = arith.constant 0 : i32
    %c0_i32_1 = arith.constant 0 : i32
    return %c0_i32, %c0_i32_0 : i32, i32
  }
  func.func @transform_9(%arg0: i32) -> (i32, i32) {
    %c0_i32 = arith.constant 0 : i32
    %c0_i32_0 = arith.constant 0 : i32
    %c0_i32_1 = arith.constant 0 : i32
    return %c0_i32, %c0_i32_0 : i32, i32
  }
  func.func @transform_10(%arg0: i32) -> (i32, i32) {
    %c0_i32 = arith.constant 0 : i32
    %c0_i32_0 = arith.constant 0 : i32
    %c0_i32_1 = arith.constant 0 : i32
    return %c0_i32, %c0_i32_0 : i32, i32
  }
  func.func @transform_11(%arg0: i32) -> (i32, i32) {
    %c0_i32 = arith.constant 0 : i32
    %c0_i32_0 = arith.constant 0 : i32
    return %arg0, %c0_i32 : i32, i32
  }
}

</mosaic_0001>

<llo_original>
// kernel: tpu_custom_call.1
$region0: #{tpu_custom_call.1}
  #allocation0 [shape = 'u32[]', space=smem, size = 0x4, offset = 0x4, fixed_abs, tag = 'smem constant byte address 0x4 - core index']
  #allocation1 [shape = 'u32[144,128]{1,0:T(1,128)}', space=vmem, size = 0x12000, scoped, tag = 'internal scratch']
  %s0 = inlined_call_operand.vmem [shape: f32[8,48], index: 0, kind: input, shape index: {}]
  %s1 = inlined_call_operand.hbm [shape: f32[32,32], index: 1, kind: input, shape index: {}]
  %s2 = inlined_call_operand.vmem [shape: f32[1,32], index: 2, kind: input, shape index: {}]
  %s3 = inlined_call_operand.hbm [shape: f32[32,256], index: 3, kind: input, shape index: {}]
  %s4 = inlined_call_operand.hbm [shape: f32[16,256], index: 4, kind: input, shape index: {}]
  %s5 = inlined_call_operand.vmem [shape: f32[64,256], index: 5, kind: input, shape index: {}]
  %s6 = inlined_call_operand.vmem [shape: f32[1,256], index: 6, kind: input, shape index: {}]
  %s7 = inlined_call_operand.vmem [shape: f32[64,32], index: 7, kind: input, shape index: {}]
  %s8 = inlined_call_operand.vmem [shape: f32[1,32], index: 8, kind: input, shape index: {}]
  %s9 = inlined_call_operand.vmem [shape: f32[32,16], index: 9, kind: input, shape index: {}]
  %s10 = inlined_call_operand.vmem [shape: f32[1,16], index: 10, kind: input, shape index: {}]
  %s11 = inlined_call_operand.hbm [shape: f32[8,128], index: 11, kind: output, shape index: {}]
  %s12 = sld [smem:[#allocation0]]
  $region66: #{tpu_custom_call.1} parent=0
    _
  %s14 = ssub.s32 1, %s12
  %s15 = scalar_select 0, %s14, %s12
  $region1: #{tpu_custom_call.1} parent=0
    #allocation2 [shape = 'u8[16384]{0}', space=vmem, size = 0x4000, scoped, tag = 'input window, operand 1, single buffered']
    #allocation3 [shape = 's32[1]{0}', space=sflag, size = 0x4, scoped, tag = 'scoped memory for tpu_custom_call.1']
    #allocation4 [shape = 's32[1]{0}', space=sflag, size = 0x4, scoped, tag = 'scoped memory for tpu_custom_call.1']
    #allocation5 [shape = 'u8[32768]{0}', space=vmem, size = 0x8000, scoped, tag = 'input window, operand 3, single buffered']
    #allocation6 [shape = 's32[1]{0}', space=sflag, size = 0x4, scoped, tag = 'scoped memory for tpu_custom_call.1']
    #allocation7 [shape = 'u8[16384]{0}', space=vmem, size = 0x4000, scoped, tag = 'input window, operand 4, single buffered']
    #allocation8 [shape = 'u8[4096]{0}', space=vmem, size = 0x1000, scoped, tag = 'output window, operand 0, single buffered']
    %16 = vsyncpa [#allocation3], 0
    %17 = vsyncpa [#allocation6], 0
    %18 = vsyncpa [#allocation4], 0
    // Predicated region
    $region2: #{tpu_custom_call.1} parent=1 // pred_check
      _
    $region3: #{tpu_custom_call.1} parent=1 // pred_check_branch
      %20 = sbr.rel (0) target = $region5
    $region4: #{tpu_custom_call.1} parent=1 // pred_region
      _
    $region5: #{tpu_custom_call.1} parent=1 // pred_fallthru
      _
    // Predicated region
    $region6: #{tpu_custom_call.1} parent=1 // pred_check
      _
    $region7: #{tpu_custom_call.1} parent=1 // pred_check_branch
      %22 = sbr.rel (0) target = $region9
    $region8: #{tpu_custom_call.1} parent=1 // pred_region
      %s24 = ssub.s32 512, 512
      %25 = vsyncadd [#allocation3], %s24
      %s26 = sshll.u32 [#allocation2], 4
      %s27 = int_to_ptr.vmem [resolvable:$true] %s26
      %32 = dma.hbm_to_vmem [thread:$0]  %s1, 512, %s27, [#allocation3], 128, 128, 8
    $region9: #{tpu_custom_call.1} parent=1 // pred_fallthru
      _
    // Predicated region
    $region10: #{tpu_custom_call.1} parent=1 // pred_check
      _
    $region11: #{tpu_custom_call.1} parent=1 // pred_check_branch
      %34 = sbr.rel (0) target = $region13
    $region12: #{tpu_custom_call.1} parent=1 // pred_region
      _
    $region13: #{tpu_custom_call.1} parent=1 // pred_fallthru
      _
    // Predicated region
    $region14: #{tpu_custom_call.1} parent=1 // pred_check
      _
    $region15: #{tpu_custom_call.1} parent=1 // pred_check_branch
      %36 = sbr.rel (0) target = $region17
    $region16: #{tpu_custom_call.1} parent=1 // pred_region
      %s38 = ssub.s32 1024, 1024
      %39 = vsyncadd [#allocation6], %s38
      %s40 = sshll.u32 [#allocation5], 4
      %s41 = int_to_ptr.vmem [resolvable:$true] %s40
      %46 = dma.hbm_to_vmem [thread:$0]  %s3, 1024, %s41, [#allocation6], 256, 256, 16
    $region17: #{tpu_custom_call.1} parent=1 // pred_fallthru
      _
    // Predicated region
    $region18: #{tpu_custom_call.1} parent=1 // pred_check
      _
    $region19: #{tpu_custom_call.1} parent=1 // pred_check_branch
      %48 = sbr.rel (0) target = $region21
    $region20: #{tpu_custom_call.1} parent=1 // pred_region
      %s50 = ssub.s32 512, 512
      %51 = vsyncadd [#allocation6], %s50
      %s52 = sshll.u32 [#allocation7], 4
      %s53 = int_to_ptr.vmem [resolvable:$true] %s52
      %58 = dma.hbm_to_vmem [thread:$0]  %s4, 512, %s53, [#allocation6], 256, 256, 16
    $region21: #{tpu_custom_call.1} parent=1 // pred_fallthru
      _
    // Predicated region
    $region22: #{tpu_custom_call.1} parent=1 // pred_check
      _
    $region23: #{tpu_custom_call.1} parent=1 // pred_check_branch
      %60 = sbr.rel (0) target = $region25
    $region24: #{tpu_custom_call.1} parent=1 // pred_region
      _
    $region25: #{tpu_custom_call.1} parent=1 // pred_fallthru
      _
    // Predicated region
    $region26: #{tpu_custom_call.1} parent=1 // pred_check
      _
    $region27: #{tpu_custom_call.1} parent=1 // pred_check_branch
      %62 = sbr.rel (0) target = $region29
    $region28: #{tpu_custom_call.1} parent=1 // pred_region
      _
    $region29: #{tpu_custom_call.1} parent=1 // pred_fallthru
      _
    // Predicated region
    $region30: #{tpu_custom_call.1} parent=1 // pred_check
      _
    $region31: #{tpu_custom_call.1} parent=1 // pred_check_branch
      %64 = sbr.rel (0) target = $region33
    $region32: #{tpu_custom_call.1} parent=1 // pred_region
      _
    $region33: #{tpu_custom_call.1} parent=1 // pred_fallthru
      _
    // Predicated region
    $region34: #{tpu_custom_call.1} parent=1 // pred_check
      _
    $region35: #{tpu_custom_call.1} parent=1 // pred_check_branch
      %66 = sbr.rel (0) target = $region37
    $region36: #{tpu_custom_call.1} parent=1 // pred_region
      _
    $region37: #{tpu_custom_call.1} parent=1 // pred_fallthru
      _
    // Predicated region
    $region38: #{tpu_custom_call.1} parent=1 // pred_check
      _
    $region39: #{tpu_custom_call.1} parent=1 // pred_check_branch
      %68 = sbr.rel (0) target = $region41
    $region40: #{tpu_custom_call.1} parent=1 // pred_region
      _
    $region41: #{tpu_custom_call.1} parent=1 // pred_fallthru
      _
    // Predicated region
    $region42: #{tpu_custom_call.1} parent=1 // pred_check
      _
    $region43: #{tpu_custom_call.1} parent=1 // pred_check_branch
      %70 = sbr.rel (0) target = $region45
    $region44: #{tpu_custom_call.1} parent=1 // pred_region
      _
    $region45: #{tpu_custom_call.1} parent=1 // pred_fallthru
      _
    // Predicated region
    $region46: #{tpu_custom_call.1} parent=1 // pred_check
      _
    $region47: #{tpu_custom_call.1} parent=1 // pred_check_branch
      %72 = sbr.rel (0) target = $region49
    $region48: #{tpu_custom_call.1} parent=1 // pred_region
      %73 = dma.done [#allocation3], 512
    $region49: #{tpu_custom_call.1} parent=1 // pred_fallthru
      _
    // Predicated region
    $region50: #{tpu_custom_call.1} parent=1 // pred_check
      _
    $region51: #{tpu_custom_call.1} parent=1 // pred_check_branch
      %75 = sbr.rel (0) target = $region53
    $region52: #{tpu_custom_call.1} parent=1 // pred_region
      %76 = dma.done [#allocation6], 1024
    $region53: #{tpu_custom_call.1} parent=1 // pred_fallthru
      _
    // Predicated region
    $region54: #{tpu_custom_call.1} parent=1 // pred_check
      _
    $region55: #{tpu_custom_call.1} parent=1 // pred_check_branch
      %78 = sbr.rel (0) target = $region57
    $region56: #{tpu_custom_call.1} parent=1 // pred_region
      %79 = dma.done [#allocation6], 512
    $region57: #{tpu_custom_call.1} parent=1 // pred_fallthru
      _
    %v80 = vld [vmem:[#allocation2] sm:$0xff]
    %v81 = vld [vmem:[#allocation2 + $0x8] sm:$0xff]
    %v82 = vld [vmem:[#allocation2 + $0x10] sm:$0xff]
    %v83 = vld [vmem:[#allocation2 + $0x18] sm:$0xff]
    %v84 = vld [vmem:[#allocation5] sm:$0xff]
    %v85 = vld [vmem:[#allocation5 + $0x8] sm:$0xff]
    %v86 = vld [vmem:[#allocation5 + $0x10] sm:$0xff]
    %v87 = vld [vmem:[#allocation5 + $0x18] sm:$0xff]
    %v88 = vld [vmem:[#allocation5 + $0x20] sm:$0xff]
    %v89 = vld [vmem:[#allocation5 + $0x28] sm:$0xff]
    %v90 = vld [vmem:[#allocation5 + $0x30] sm:$0xff]
    %v91 = vld [vmem:[#allocation5 + $0x38] sm:$0xff]
    %v92 = vld [vmem:[#allocation7] sm:$0xff]
    %v93 = vld [vmem:[#allocation7 + $0x8] sm:$0xff]
    %v94 = vld [vmem:[#allocation7 + $0x10] sm:$0xff]
    %v95 = vld [vmem:[#allocation7 + $0x18] sm:$0xff]
    %v96 = vld [vmem:[%s5] sm:$0xff]
    %v97 = vld [vmem:[%s5 + $0x8] sm:$0xff]
    %v98 = vld [vmem:[%s5 + $0x10] sm:$0xff]
    %v99 = vld [vmem:[%s5 + $0x18] sm:$0xff]
    %v100 = vld [vmem:[%s5 + $0x20] sm:$0xff]
    %v101 = vld [vmem:[%s5 + $0x28] sm:$0xff]
    %v102 = vld [vmem:[%s5 + $0x30] sm:$0xff]
    %v103 = vld [vmem:[%s5 + $0x38] sm:$0xff]
    %v104 = vld [vmem:[%s5 + $0x40] sm:$0xff]
    %v105 = vld [vmem:[%s5 + $0x48] sm:$0xff]
    %v106 = vld [vmem:[%s5 + $0x50] sm:$0xff]
    %v107 = vld [vmem:[%s5 + $0x58] sm:$0xff]
    %v108 = vld [vmem:[%s5 + $0x60] sm:$0xff]
    %v109 = vld [vmem:[%s5 + $0x68] sm:$0xff]
    %v110 = vld [vmem:[%s5 + $0x70] sm:$0xff]
    %v111 = vld [vmem:[%s5 + $0x78] sm:$0xff]
    %v112 = vld [vmem:[%s7] sm:$0xff]
    %v113 = vld [vmem:[%s7 + $0x8] sm:$0xff]
    %v114 = vld [vmem:[%s7 + $0x10] sm:$0xff]
    %v115 = vld [vmem:[%s7 + $0x18] sm:$0xff]
    %v116 = vld [vmem:[%s7 + $0x20] sm:$0xff]
    %v117 = vld [vmem:[%s7 + $0x28] sm:$0xff]
    %v118 = vld [vmem:[%s7 + $0x30] sm:$0xff]
    %v119 = vld [vmem:[%s7 + $0x38] sm:$0xff]
    %v120 = vld [vmem:[%s9] sm:$0xff]
    %v121 = vld [vmem:[%s9 + $0x8] sm:$0xff]
    %v122 = vld [vmem:[%s9 + $0x10] sm:$0xff]
    %v123 = vld [vmem:[%s9 + $0x18] sm:$0xff]
    %v124 = vld [vmem:[%s8] sm:$0x1]
    %v126 = vlaneseq
    %v127 = vshrl.u32 %v126, 7
    %v128 = vsub.s32 0, %v127
    %v129 = vrot.slane %v124, %v128
    %v131 = vld [vmem:[%s10] sm:$0x1]
    %v133 = vlaneseq
    %v134 = vshrl.u32 %v133, 7
    %v135 = vsub.s32 0, %v134
    %v136 = vrot.slane %v131, %v135
    %v138 = vld [vmem:[%s0] sm:$0xff]
    %v139 = vld [vmem:[%s2] sm:$0x1]
    %v141 = vlaneseq
    %v142 = vshrl.u32 %v141, 7
    %v143 = vsub.s32 0, %v142
    %v144 = vrot.slane %v139, %v143
    %vm146 = vcmask 261120
    %v148 = vsel %vm146, %v138, 0
    %150 = vmatprep.subr.mxu0 0.0
    %151 = vmatpush1.msra.mxu0 0.0
    %152 = vmatprep.subr.mxu0 0.0
    %153 = vmatpush1.msra.mxu0 0.0
    %154 = vmatprep.subr.mxu0 0.0
    %155 = vmatpush1.msra.mxu0 0.0
    %156 = vmatprep.subr.mxu0 0.0
    %157 = vmatpush1.msra.mxu0 0.0
    %158 = vmatprep.subr.mxu0 0.0
    %159 = vmatpush1.msra.mxu0 0.0
    %160 = vmatprep.subr.mxu0 0.0
    %161 = vmatpush1.msra.mxu0 0.0
    %162 = vmatprep.subr.mxu0 0.0
    %163 = vmatpush1.msra.mxu0 0.0
    %164 = vmatprep.subr.mxu0 0.0
    %165 = vmatpush1.msra.mxu0 0.0
    %166 = vmatprep.subr.mxu0 0.0
    %167 = vmatpush1.msra.mxu0 0.0
    %168 = vmatprep.subr.mxu0 0.0
    %169 = vmatpush1.msra.mxu0 0.0
    %170 = vmatprep.subr.mxu0 0.0
    %171 = vmatpush1.msra.mxu0 0.0
    %172 = vmatprep.subr.mxu0 0.0
    %173 = vmatpush1.msra.mxu0 0.0
    %174 = vmatprep.subr.mxu0 0.0
    %175 = vmatpush1.msra.mxu0 %v83
    %176 = vmatprep.subr.mxu0 0.0
    %177 = vmatpush1.msra.mxu0 %v82
    %178 = vmatprep.subr.mxu0 0.0
    %179 = vmatpush1.msra.mxu0 %v81
    %180 = vmatprep.subr.mxu0 0.0
    %181 = vmatpush1.msra.mxu0 %v80
    %182 = vmatprep.subr.mxu0 0.0
    %183 = vmatpush2.msra.mxu0 0.0
    %184 = vmatprep.subr.mxu0 0.0
    %185 = vmatpush2.msra.mxu0 0.0
    %186 = vmatprep.subr.mxu0 0.0
    %187 = vmatpush2.msra.mxu0 0.0
    %188 = vmatprep.subr.mxu0 0.0
    %189 = vmatpush2.msra.mxu0 0.0
    %190 = vmatprep.subr.mxu0 0.0
    %191 = vmatpush2.msra.mxu0 0.0
    %192 = vmatprep.subr.mxu0 0.0
    %193 = vmatpush2.msra.mxu0 0.0
    %194 = vmatprep.subr.mxu0 0.0
    %195 = vmatpush2.msra.mxu0 0.0
    %196 = vmatprep.subr.mxu0 0.0
    %197 = vmatpush2.msra.mxu0 0.0
    %198 = vmatprep.subr.mxu0 0.0
    %199 = vmatpush2.msra.mxu0 0.0
    %200 = vmatprep.subr.mxu0 0.0
    %201 = vmatpush2.msra.mxu0 0.0
    %202 = vmatprep.subr.mxu0 0.0
    %203 = vmatpush2.msra.mxu0 0.0
    %204 = vmatprep.subr.mxu0 0.0
    %205 = vmatpush2.msra.mxu0 0.0
    %206 = vmatprep.subr.mxu0 0.0
    %207 = vmatpush2.msra.mxu0 0.0
    %208 = vmatprep.subr.mxu0 0.0
    %209 = vmatpush2.msra.mxu0 0.0
    %210 = vmatprep.subr.mxu0 0.0
    %211 = vmatpush2.msra.mxu0 0.0
    %212 = vmatprep.subr.mxu0 0.0
    %213 = vmatpush2.msra.mxu0 0.0
    %214 = vmatprep.mubr.f32.mxu0 0.0
    %215 = vmatmul.mubr.f32.gmra.mxu0 %v148
    %v216 = vpop.f32.mrf.mxu0
    %v217 = vadd.f32 %v144, %v216
    %v218 = vpop.f32.mrf.mxu0
    %219 = vdwg.mxu0
    %v220 = vmax.f32 %v217, 0.0
    %v221 = vld [vmem:[%s6] sm:$0x3]
    %v223 = vlaneseq
    %v224 = vshrl.u32 %v223, 7
    %v225 = vsub.s32 0, %v224
    %v226 = vrot.slane %v221, %v225
    %v227 = vlaneseq
    %v228 = vshrl.u32 %v227, 7
    %v229 = vsub.s32 1, %v228
    %v230 = vrot.slane %v221, %v229
    %v234 = vsel %vm146, %v220, 0
    %236 = vmatprep.subr.mxu0 0.0
    %237 = vmatpush1.msra.mxu0 0.0
    %238 = vmatprep.subr.mxu0 0.0
    %239 = vmatpush1.msra.mxu0 0.0
    %240 = vmatprep.subr.mxu0 0.0
    %241 = vmatpush1.msra.mxu0 0.0
    %242 = vmatprep.subr.mxu0 0.0
    %243 = vmatpush1.msra.mxu0 0.0
    %244 = vmatprep.subr.mxu0 0.0
    %245 = vmatpush1.msra.mxu0 0.0
    %246 = vmatprep.subr.mxu0 0.0
    %247 = vmatpush1.msra.mxu0 0.0
    %248 = vmatprep.subr.mxu0 0.0
    %249 = vmatpush1.msra.mxu0 0.0
    %250 = vmatprep.subr.mxu0 0.0
    %251 = vmatpush1.msra.mxu0 0.0
    %252 = vmatprep.subr.mxu0 0.0
    %253 = vmatpush1.msra.mxu0 0.0
    %254 = vmatprep.subr.mxu0 0.0
    %255 = vmatpush1.msra.mxu0 0.0
    %256 = vmatprep.subr.mxu0 0.0
    %257 = vmatpush1.msra.mxu0 0.0
    %258 = vmatprep.subr.mxu0 0.0
    %259 = vmatpush1.msra.mxu0 0.0
    %260 = vmatprep.subr.mxu0 %v91
    %261 = vmatpush1.msra.mxu0 %v90
    %262 = vmatprep.subr.mxu0 %v89
    %263 = vmatpush1.msra.mxu0 %v88
    %264 = vmatprep.subr.mxu0 %v87
    %265 = vmatpush1.msra.mxu0 %v86
    %266 = vmatprep.subr.mxu0 %v85
    %267 = vmatpush1.msra.mxu0 %v84
    %268 = vmatprep.subr.mxu0 0.0
    %269 = vmatpush2.msra.mxu0 0.0
    %270 = vmatprep.subr.mxu0 0.0
    %271 = vmatpush2.msra.mxu0 0.0
    %272 = vmatprep.subr.mxu0 0.0
    %273 = vmatpush2.msra.mxu0 0.0
    %274 = vmatprep.subr.mxu0 0.0
    %275 = vmatpush2.msra.mxu0 0.0
    %276 = vmatprep.subr.mxu0 0.0
    %277 = vmatpush2.msra.mxu0 0.0
    %278 = vmatprep.subr.mxu0 0.0
    %279 = vmatpush2.msra.mxu0 0.0
    %280 = vmatprep.subr.mxu0 0.0
    %281 = vmatpush2.msra.mxu0 0.0
    %282 = vmatprep.subr.mxu0 0.0
    %283 = vmatpush2.msra.mxu0 0.0
    %284 = vmatprep.subr.mxu0 0.0
    %285 = vmatpush2.msra.mxu0 0.0
    %286 = vmatprep.subr.mxu0 0.0
    %287 = vmatpush2.msra.mxu0 0.0
    %288 = vmatprep.subr.mxu0 0.0
    %289 = vmatpush2.msra.mxu0 0.0
    %290 = vmatprep.subr.mxu0 0.0
    %291 = vmatpush2.msra.mxu0 0.0
    %292 = vmatprep.subr.mxu0 0.0
    %293 = vmatpush2.msra.mxu0 0.0
    %294 = vmatprep.subr.mxu0 0.0
    %295 = vmatpush2.msra.mxu0 0.0
    %296 = vmatprep.subr.mxu0 0.0
    %297 = vmatpush2.msra.mxu0 0.0
    %298 = vmatprep.subr.mxu0 0.0
    %299 = vmatpush2.msra.mxu0 0.0
    %300 = vmatprep.mubr.f32.mxu0 0.0
    %301 = vmatmul.mubr.f32.gmra.mxu0 %v234
    %v302 = vpop.f32.mrf.mxu0
    %v303 = vadd.f32 %v226, %v302
    %v304 = vpop.f32.mrf.mxu0
    %v305 = vadd.f32 %v230, %v304
    %306 = vdwg.mxu0
    %307 = vrot.lane.b32.xlu0 %v138, 96
    %v308 = vpop.permute.xlu0 %307
    %vm309 = vcmask 130048
    %v310 = vsel %vm309, %v308, 0
    %312 = vmatprep.subr.mxu0 0.0
    %313 = vmatpush1.msra.mxu0 0.0
    %314 = vmatprep.subr.mxu0 0.0
    %315 = vmatpush1.msra.mxu0 0.0
    %316 = vmatprep.subr.mxu0 0.0
    %317 = vmatpush1.msra.mxu0 0.0
    %318 = vmatprep.subr.mxu0 0.0
    %319 = vmatpush1.msra.mxu0 0.0
    %320 = vmatprep.subr.mxu0 0.0
    %321 = vmatpush1.msra.mxu0 0.0
    %322 = vmatprep.subr.mxu0 0.0
    %323 = vmatpush1.msra.mxu0 0.0
    %324 = vmatprep.subr.mxu0 0.0
    %325 = vmatpush1.msra.mxu0 0.0
    %326 = vmatprep.subr.mxu0 0.0
    %327 = vmatpush1.msra.mxu0 0.0
    %328 = vmatprep.subr.mxu0 0.0
    %329 = vmatpush1.msra.mxu0 0.0
    %330 = vmatprep.subr.mxu0 0.0
    %331 = vmatpush1.msra.mxu0 0.0
    %332 = vmatprep.subr.mxu0 0.0
    %333 = vmatpush1.msra.mxu0 0.0
    %334 = vmatprep.subr.mxu0 0.0
    %335 = vmatpush1.msra.mxu0 0.0
    %336 = vmatprep.subr.mxu0 0.0
    %337 = vmatpush1.msra.mxu0 0.0
    %338 = vmatprep.subr.mxu0 0.0
    %339 = vmatpush1.msra.mxu0 0.0
    %340 = vmatprep.subr.mxu0 %v95
    %341 = vmatpush1.msra.mxu0 %v94
    %342 = vmatprep.subr.mxu0 %v93
    %343 = vmatpush1.msra.mxu0 %v92
    %344 = vmatprep.subr.mxu0 0.0
    %345 = vmatpush2.msra.mxu0 0.0
    %346 = vmatprep.subr.mxu0 0.0
    %347 = vmatpush2.msra.mxu0 0.0
    %348 = vmatprep.subr.mxu0 0.0
    %349 = vmatpush2.msra.mxu0 0.0
    %350 = vmatprep.subr.mxu0 0.0
    %351 = vmatpush2.msra.mxu0 0.0
    %352 = vmatprep.subr.mxu0 0.0
    %353 = vmatpush2.msra.mxu0 0.0
    %354 = vmatprep.subr.mxu0 0.0
    %355 = vmatpush2.msra.mxu0 0.0
    %356 = vmatprep.subr.mxu0 0.0
    %357 = vmatpush2.msra.mxu0 0.0
    %358 = vmatprep.subr.mxu0 0.0
    %359 = vmatpush2.msra.mxu0 0.0
    %360 = vmatprep.subr.mxu0 0.0
    %361 = vmatpush2.msra.mxu0 0.0
    %362 = vmatprep.subr.mxu0 0.0
    %363 = vmatpush2.msra.mxu0 0.0
    %364 = vmatprep.subr.mxu0 0.0
    %365 = vmatpush2.msra.mxu0 0.0
    %366 = vmatprep.subr.mxu0 0.0
    %367 = vmatpush2.msra.mxu0 0.0
    %368 = vmatprep.subr.mxu0 0.0
    %369 = vmatpush2.msra.mxu0 0.0
    %370 = vmatprep.subr.mxu0 0.0
    %371 = vmatpush2.msra.mxu0 0.0
    %372 = vmatprep.subr.mxu0 0.0
    %373 = vmatpush2.msra.mxu0 0.0
    %374 = vmatprep.subr.mxu0 0.0
    %375 = vmatpush2.msra.mxu0 0.0
    %376 = vmatprep.mubr.f32.mxu0 0.0
    %377 = vmatmul.mubr.f32.gmra.mxu0 %v310
    %v378 = vpop.f32.mrf.mxu0
    %v379 = vadd.f32 0.0, %v378
    %v380 = vpop.f32.mrf.mxu0
    %v381 = vadd.f32 0.0, %v380
    %382 = vdwg.mxu0
    %v383 = vadd.f32 %v303, %v379
    %v384 = vadd.f32 %v305, %v381
    %vm385 = vcmask 523264
    %v387 = vsel %vm385, 0.0, 0
    %389 = vmatprep.subr.mxu0 0.0
    %390 = vmatpush1.msra.mxu0 0.0
    %391 = vmatprep.subr.mxu0 0.0
    %392 = vmatpush1.msra.mxu0 0.0
    %393 = vmatprep.subr.mxu0 0.0
    %394 = vmatpush1.msra.mxu0 0.0
    %395 = vmatprep.subr.mxu0 0.0
    %396 = vmatpush1.msra.mxu0 0.0
    %397 = vmatprep.subr.mxu0 0.0
    %398 = vmatpush1.msra.mxu0 0.0
    %399 = vmatprep.subr.mxu0 0.0
    %400 = vmatpush1.msra.mxu0 0.0
    %401 = vmatprep.subr.mxu0 0.0
    %402 = vmatpush1.msra.mxu0 0.0
    %403 = vmatprep.subr.mxu0 0.0
    %404 = vmatpush1.msra.mxu0 0.0
    %405 = vmatprep.subr.mxu0 %v111
    %406 = vmatpush1.msra.mxu0 %v110
    %407 = vmatprep.subr.mxu0 %v109
    %408 = vmatpush1.msra.mxu0 %v108
    %409 = vmatprep.subr.mxu0 %v107
    %410 = vmatpush1.msra.mxu0 %v106
    %411 = vmatprep.subr.mxu0 %v105
    %412 = vmatpush1.msra.mxu0 %v104
    %413 = vmatprep.subr.mxu0 %v103
    %414 = vmatpush1.msra.mxu0 %v102
    %415 = vmatprep.subr.mxu0 %v101
    %416 = vmatpush1.msra.mxu0 %v100
    %417 = vmatprep.subr.mxu0 %v99
    %418 = vmatpush1.msra.mxu0 %v98
    %419 = vmatprep.subr.mxu0 %v97
    %420 = vmatpush1.msra.mxu0 %v96
    %421 = vmatprep.subr.mxu0 0.0
    %422 = vmatpush2.msra.mxu0 0.0
    %423 = vmatprep.subr.mxu0 0.0
    %424 = vmatpush2.msra.mxu0 0.0
    %425 = vmatprep.subr.mxu0 0.0
    %426 = vmatpush2.msra.mxu0 0.0
    %427 = vmatprep.subr.mxu0 0.0
    %428 = vmatpush2.msra.mxu0 0.0
    %429 = vmatprep.subr.mxu0 0.0
    %430 = vmatpush2.msra.mxu0 0.0
    %431 = vmatprep.subr.mxu0 0.0
    %432 = vmatpush2.msra.mxu0 0.0
    %433 = vmatprep.subr.mxu0 0.0
    %434 = vmatpush2.msra.mxu0 0.0
    %435 = vmatprep.subr.mxu0 0.0
    %436 = vmatpush2.msra.mxu0 0.0
    %437 = vmatprep.subr.mxu0 0.0
    %438 = vmatpush2.msra.mxu0 0.0
    %439 = vmatprep.subr.mxu0 0.0
    %440 = vmatpush2.msra.mxu0 0.0
    %441 = vmatprep.subr.mxu0 0.0
    %442 = vmatpush2.msra.mxu0 0.0
    %443 = vmatprep.subr.mxu0 0.0
    %444 = vmatpush2.msra.mxu0 0.0
    %445 = vmatprep.subr.mxu0 0.0
    %446 = vmatpush2.msra.mxu0 0.0
    %447 = vmatprep.subr.mxu0 0.0
    %448 = vmatpush2.msra.mxu0 0.0
    %449 = vmatprep.subr.mxu0 0.0
    %450 = vmatpush2.msra.mxu0 0.0
    %451 = vmatprep.subr.mxu0 0.0
    %452 = vmatpush2.msra.mxu0 0.0
    %453 = vmatprep.mubr.f32.mxu0 0.0
    %454 = vmatmul.mubr.f32.gmra.mxu0 %v387
    %v455 = vpop.f32.mrf.mxu0
    %v456 = vadd.f32 0.0, %v455
    %v457 = vpop.f32.mrf.mxu0
    %v458 = vadd.f32 0.0, %v457
    %459 = vdwg.mxu0
    %v460 = vadd.f32 %v383, %v456
    %v461 = vadd.f32 %v384, %v458
    %v462 = vxor.u32 %v460, 2147483648
    %v463 = vmul.f32 %v462, 1.442695
    %v464 = vpow.pop %v463
    %v465 = vadd.f32 %v464, 1.0
    %v466 = vrcp.pop %v465
    %v467 = vmul.f32 1.0, %v466
    %v468 = vmul.f32 %v467, 0.0
    %v469 = vtanh.pop %v461
    %v470 = vmul.f32 %v467, %v469
    %472 = vrot.lane.b32.xlu0 %v470, 64
    %v473 = vpop.permute.xlu0 %472
    %v475 = vadd.f32 %v468, %v473
    %v476 = vxor.u32 %v461, 2147483648
    %v477 = vmul.f32 %v476, 1.442695
    %v478 = vpow.pop %v477
    %v479 = vadd.f32 %v478, 1.0
    %v480 = vrcp.pop %v479
    %v481 = vmul.f32 1.0, %v480
    %v482 = vtanh.pop %v475
    %v483 = vmul.f32 %v481, %v482
    %485 = vrot.lane.b32.xlu0 %v483, 64
    %v486 = vpop.permute.xlu0 %485
    %v487 = vsel %vm385, %v486, 0
    %489 = vmatprep.subr.mxu0 0.0
    %490 = vmatpush1.msra.mxu0 0.0
    %491 = vmatprep.subr.mxu0 0.0
    %492 = vmatpush1.msra.mxu0 0.0
    %493 = vmatprep.subr.mxu0 0.0
    %494 = vmatpush1.msra.mxu0 0.0
    %495 = vmatprep.subr.mxu0 0.0
    %496 = vmatpush1.msra.mxu0 0.0
    %497 = vmatprep.subr.mxu0 0.0
    %498 = vmatpush1.msra.mxu0 0.0
    %499 = vmatprep.subr.mxu0 0.0
    %500 = vmatpush1.msra.mxu0 0.0
    %501 = vmatprep.subr.mxu0 0.0
    %502 = vmatpush1.msra.mxu0 0.0
    %503 = vmatprep.subr.mxu0 0.0
    %504 = vmatpush1.msra.mxu0 0.0
    %505 = vmatprep.subr.mxu0 0.0
    %506 = vmatpush1.msra.mxu0 %v119
    %507 = vmatprep.subr.mxu0 0.0
    %508 = vmatpush1.msra.mxu0 %v118
    %509 = vmatprep.subr.mxu0 0.0
    %510 = vmatpush1.msra.mxu0 %v117
    %511 = vmatprep.subr.mxu0 0.0
    %512 = vmatpush1.msra.mxu0 %v116
    %513 = vmatprep.subr.mxu0 0.0
    %514 = vmatpush1.msra.mxu0 %v115
    %515 = vmatprep.subr.mxu0 0.0
    %516 = vmatpush1.msra.mxu0 %v114
    %517 = vmatprep.subr.mxu0 0.0
    %518 = vmatpush1.msra.mxu0 %v113
    %519 = vmatprep.subr.mxu0 0.0
    %520 = vmatpush1.msra.mxu0 %v112
    %521 = vmatprep.subr.mxu0 0.0
    %522 = vmatpush2.msra.mxu0 0.0
    %523 = vmatprep.subr.mxu0 0.0
    %524 = vmatpush2.msra.mxu0 0.0
    %525 = vmatprep.subr.mxu0 0.0
    %526 = vmatpush2.msra.mxu0 0.0
    %527 = vmatprep.subr.mxu0 0.0
    %528 = vmatpush2.msra.mxu0 0.0
    %529 = vmatprep.subr.mxu0 0.0
    %530 = vmatpush2.msra.mxu0 0.0
    %531 = vmatprep.subr.mxu0 0.0
    %532 = vmatpush2.msra.mxu0 0.0
    %533 = vmatprep.subr.mxu0 0.0
    %534 = vmatpush2.msra.mxu0 0.0
    %535 = vmatprep.subr.mxu0 0.0
    %536 = vmatpush2.msra.mxu0 0.0
    %537 = vmatprep.subr.mxu0 0.0
    %538 = vmatpush2.msra.mxu0 0.0
    %539 = vmatprep.subr.mxu0 0.0
    %540 = vmatpush2.msra.mxu0 0.0
    %541 = vmatprep.subr.mxu0 0.0
    %542 = vmatpush2.msra.mxu0 0.0
    %543 = vmatprep.subr.mxu0 0.0
    %544 = vmatpush2.msra.mxu0 0.0
    %545 = vmatprep.subr.mxu0 0.0
    %546 = vmatpush2.msra.mxu0 0.0
    %547 = vmatprep.subr.mxu0 0.0
    %548 = vmatpush2.msra.mxu0 0.0
    %549 = vmatprep.subr.mxu0 0.0
    %550 = vmatpush2.msra.mxu0 0.0
    %551 = vmatprep.subr.mxu0 0.0
    %552 = vmatpush2.msra.mxu0 0.0
    %553 = vmatprep.mubr.f32.mxu0 0.0
    %554 = vmatmul.mubr.f32.gmra.mxu0 %v487
    %v555 = vpop.f32.mrf.mxu0
    %v556 = vadd.f32 %v129, %v555
    %v557 = vpop.f32.mrf.mxu0
    %558 = vdwg.mxu0
    %v559 = vmax.f32 %v556, 0.0
    %v561 = vsel %vm146, %v559, 0
    %563 = vmatprep.subr.mxu0 0.0
    %564 = vmatpush1.msra.mxu0 0.0
    %565 = vmatprep.subr.mxu0 0.0
    %566 = vmatpush1.msra.mxu0 0.0
    %567 = vmatprep.subr.mxu0 0.0
    %568 = vmatpush1.msra.mxu0 0.0
    %569 = vmatprep.subr.mxu0 0.0
    %570 = vmatpush1.msra.mxu0 0.0
    %571 = vmatprep.subr.mxu0 0.0
    %572 = vmatpush1.msra.mxu0 0.0
    %573 = vmatprep.subr.mxu0 0.0
    %574 = vmatpush1.msra.mxu0 0.0
    %575 = vmatprep.subr.mxu0 0.0
    %576 = vmatpush1.msra.mxu0 0.0
    %577 = vmatprep.subr.mxu0 0.0
    %578 = vmatpush1.msra.mxu0 0.0
    %579 = vmatprep.subr.mxu0 0.0
    %580 = vmatpush1.msra.mxu0 0.0
    %581 = vmatprep.subr.mxu0 0.0
    %582 = vmatpush1.msra.mxu0 0.0
    %583 = vmatprep.subr.mxu0 0.0
    %584 = vmatpush1.msra.mxu0 0.0
    %585 = vmatprep.subr.mxu0 0.0
    %586 = vmatpush1.msra.mxu0 0.0
    %587 = vmatprep.subr.mxu0 0.0
    %588 = vmatpush1.msra.mxu0 %v123
    %589 = vmatprep.subr.mxu0 0.0
    %590 = vmatpush1.msra.mxu0 %v122
    %591 = vmatprep.subr.mxu0 0.0
    %592 = vmatpush1.msra.mxu0 %v121
    %593 = vmatprep.subr.mxu0 0.0
    %594 = vmatpush1.msra.mxu0 %v120
    %595 = vmatprep.subr.mxu0 0.0
    %596 = vmatpush2.msra.mxu0 0.0
    %597 = vmatprep.subr.mxu0 0.0
    %598 = vmatpush2.msra.mxu0 0.0
    %599 = vmatprep.subr.mxu0 0.0
    %600 = vmatpush2.msra.mxu0 0.0
    %601 = vmatprep.subr.mxu0 0.0
    %602 = vmatpush2.msra.mxu0 0.0
    %603 = vmatprep.subr.mxu0 0.0
    %604 = vmatpush2.msra.mxu0 0.0
    %605 = vmatprep.subr.mxu0 0.0
    %606 = vmatpush2.msra.mxu0 0.0
    %607 = vmatprep.subr.mxu0 0.0
    %608 = vmatpush2.msra.mxu0 0.0
    %609 = vmatprep.subr.mxu0 0.0
    %610 = vmatpush2.msra.mxu0 0.0
    %611 = vmatprep.subr.mxu0 0.0
    %612 = vmatpush2.msra.mxu0 0.0
    %613 = vmatprep.subr.mxu0 0.0
    %614 = vmatpush2.msra.mxu0 0.0
    %615 = vmatprep.subr.mxu0 0.0
    %616 = vmatpush2.msra.mxu0 0.0
    %617 = vmatprep.subr.mxu0 0.0
    %618 = vmatpush2.msra.mxu0 0.0
    %619 = vmatprep.subr.mxu0 0.0
    %620 = vmatpush2.msra.mxu0 0.0
    %621 = vmatprep.subr.mxu0 0.0
    %622 = vmatpush2.msra.mxu0 0.0
    %623 = vmatprep.subr.mxu0 0.0
    %624 = vmatpush2.msra.mxu0 0.0
    %625 = vmatprep.subr.mxu0 0.0
    %626 = vmatpush2.msra.mxu0 0.0
    %627 = vmatprep.mubr.f32.mxu0 0.0
    %628 = vmatmul.mubr.f32.gmra.mxu0 %v561
    %v629 = vpop.f32.mrf.mxu0
    %v630 = vadd.f32 %v136, %v629
    %v631 = vpop.f32.mrf.mxu0
    %632 = vdwg.mxu0
    %633 = vst.msk [vmem:[#allocation8] sm:$0xff] %vm309, %v630
    %v635 = vsel %vm309, %v630, 0
    %637 = vmatprep.subr.mxu0 0.0
    %638 = vmatpush1.msra.mxu0 0.0
    %639 = vmatprep.subr.mxu0 0.0
    %640 = vmatpush1.msra.mxu0 0.0
    %641 = vmatprep.subr.mxu0 0.0
    %642 = vmatpush1.msra.mxu0 0.0
    %643 = vmatprep.subr.mxu0 0.0
    %644 = vmatpush1.msra.mxu0 0.0
    %645 = vmatprep.subr.mxu0 0.0
    %646 = vmatpush1.msra.mxu0 0.0
    %647 = vmatprep.subr.mxu0 0.0
    %648 = vmatpush1.msra.mxu0 0.0
    %649 = vmatprep.subr.mxu0 0.0
    %650 = vmatpush1.msra.mxu0 0.0
    %651 = vmatprep.subr.mxu0 0.0
    %652 = vmatpush1.msra.mxu0 0.0
    %653 = vmatprep.subr.mxu0 0.0
    %654 = vmatpush1.msra.mxu0 0.0
    %655 = vmatprep.subr.mxu0 0.0
    %656 = vmatpush1.msra.mxu0 0.0
    %657 = vmatprep.subr.mxu0 0.0
    %658 = vmatpush1.msra.mxu0 0.0
    %659 = vmatprep.subr.mxu0 0.0
    %660 = vmatpush1.msra.mxu0 0.0
    %661 = vmatprep.subr.mxu0 0.0
    %662 = vmatpush1.msra.mxu0 0.0
    %663 = vmatprep.subr.mxu0 0.0
    %664 = vmatpush1.msra.mxu0 0.0
    %665 = vmatprep.subr.mxu0 %v95
    %666 = vmatpush1.msra.mxu0 %v94
    %667 = vmatprep.subr.mxu0 %v93
    %668 = vmatpush1.msra.mxu0 %v92
    %669 = vmatprep.subr.mxu0 0.0
    %670 = vmatpush2.msra.mxu0 0.0
    %671 = vmatprep.subr.mxu0 0.0
    %672 = vmatpush2.msra.mxu0 0.0
    %673 = vmatprep.subr.mxu0 0.0
    %674 = vmatpush2.msra.mxu0 0.0
    %675 = vmatprep.subr.mxu0 0.0
    %676 = vmatpush2.msra.mxu0 0.0
    %677 = vmatprep.subr.mxu0 0.0
    %678 = vmatpush2.msra.mxu0 0.0
    %679 = vmatprep.subr.mxu0 0.0
    %680 = vmatpush2.msra.mxu0 0.0
    %681 = vmatprep.subr.mxu0 0.0
    %682 = vmatpush2.msra.mxu0 0.0
    %683 = vmatprep.subr.mxu0 0.0
    %684 = vmatpush2.msra.mxu0 0.0
    %685 = vmatprep.subr.mxu0 0.0
    %686 = vmatpush2.msra.mxu0 0.0
    %687 = vmatprep.subr.mxu0 0.0
    %688 = vmatpush2.msra.mxu0 0.0
    %689 = vmatprep.subr.mxu0 0.0
    %690 = vmatpush2.msra.mxu0 0.0
    %691 = vmatprep.subr.mxu0 0.0
    %692 = vmatpush2.msra.mxu0 0.0
    %693 = vmatprep.subr.mxu0 0.0
    %694 = vmatpush2.msra.mxu0 0.0
    %695 = vmatprep.subr.mxu0 0.0
    %696 = vmatpush2.msra.mxu0 0.0
    %697 = vmatprep.subr.mxu0 0.0
    %698 = vmatpush2.msra.mxu0 0.0
    %699 = vmatprep.subr.mxu0 0.0
    %700 = vmatpush2.msra.mxu0 0.0
    %701 = vmatprep.mubr.f32.mxu0 0.0
    %702 = vmatmul.mubr.f32.gmra.mxu0 %v635
    %v703 = vpop.f32.mrf.mxu0
    %v704 = vadd.f32 0.0, %v703
    %v705 = vpop.f32.mrf.mxu0
    %v706 = vadd.f32 0.0, %v705
    %707 = vdwg.mxu0
    %v708 = vadd.f32 %v303, %v704
    %v709 = vadd.f32 %v305, %v706
    %710 = vmatprep.subr.mxu0 0.0
    %711 = vmatpush1.msra.mxu0 0.0
    %712 = vmatprep.subr.mxu0 0.0
    %713 = vmatpush1.msra.mxu0 0.0
    %714 = vmatprep.subr.mxu0 0.0
    %715 = vmatpush1.msra.mxu0 0.0
    %716 = vmatprep.subr.mxu0 0.0
    %717 = vmatpush1.msra.mxu0 0.0
    %718 = vmatprep.subr.mxu0 0.0
    %719 = vmatpush1.msra.mxu0 0.0
    %720 = vmatprep.subr.mxu0 0.0
    %721 = vmatpush1.msra.mxu0 0.0
    %722 = vmatprep.subr.mxu0 0.0
    %723 = vmatpush1.msra.mxu0 0.0
    %724 = vmatprep.subr.mxu0 0.0
    %725 = vmatpush1.msra.mxu0 0.0
    %726 = vmatprep.subr.mxu0 %v111
    %727 = vmatpush1.msra.mxu0 %v110
    %728 = vmatprep.subr.mxu0 %v109
    %729 = vmatpush1.msra.mxu0 %v108
    %730 = vmatprep.subr.mxu0 %v107
    %731 = vmatpush1.msra.mxu0 %v106
    %732 = vmatprep.subr.mxu0 %v105
    %733 = vmatpush1.msra.mxu0 %v104
    %734 = vmatprep.subr.mxu0 %v103
    %735 = vmatpush1.msra.mxu0 %v102
    %736 = vmatprep.subr.mxu0 %v101
    %737 = vmatpush1.msra.mxu0 %v100
    %738 = vmatprep.subr.mxu0 %v99
    %739 = vmatpush1.msra.mxu0 %v98
    %740 = vmatprep.subr.mxu0 %v97
    %741 = vmatpush1.msra.mxu0 %v96
    %742 = vmatprep.subr.mxu0 0.0
    %743 = vmatpush2.msra.mxu0 0.0
    %744 = vmatprep.subr.mxu0 0.0
    %745 = vmatpush2.msra.mxu0 0.0
    %746 = vmatprep.subr.mxu0 0.0
    %747 = vmatpush2.msra.mxu0 0.0
    %748 = vmatprep.subr.mxu0 0.0
    %749 = vmatpush2.msra.mxu0 0.0
    %750 = vmatprep.subr.mxu0 0.0
    %751 = vmatpush2.msra.mxu0 0.0
    %752 = vmatprep.subr.mxu0 0.0
    %753 = vmatpush2.msra.mxu0 0.0
    %754 = vmatprep.subr.mxu0 0.0
    %755 = vmatpush2.msra.mxu0 0.0
    %756 = vmatprep.subr.mxu0 0.0
    %757 = vmatpush2.msra.mxu0 0.0
    %758 = vmatprep.subr.mxu0 0.0
    %759 = vmatpush2.msra.mxu0 0.0
    %760 = vmatprep.subr.mxu0 0.0
    %761 = vmatpush2.msra.mxu0 0.0
    %762 = vmatprep.subr.mxu0 0.0
    %763 = vmatpush2.msra.mxu0 0.0
    %764 = vmatprep.subr.mxu0 0.0
    %765 = vmatpush2.msra.mxu0 0.0
    %766 = vmatprep.subr.mxu0 0.0
    %767 = vmatpush2.msra.mxu0 0.0
    %768 = vmatprep.subr.mxu0 0.0
    %769 = vmatpush2.msra.mxu0 0.0
    %770 = vmatprep.subr.mxu0 0.0
    %771 = vmatpush2.msra.mxu0 0.0
    %772 = vmatprep.subr.mxu0 0.0
    %773 = vmatpush2.msra.mxu0 0.0
    %774 = vmatprep.mubr.f32.mxu0 0.0
    %775 = vmatmul.mubr.f32.gmra.mxu0 %v487
    %v776 = vpop.f32.mrf.mxu0
    %v777 = vadd.f32 0.0, %v776
    %v778 = vpop.f32.mrf.mxu0
    %v779 = vadd.f32 0.0, %v778
    %780 = vdwg.mxu0
    %v781 = vadd.f32 %v708, %v777
    %v782 = vadd.f32 %v709, %v779
    %v783 = vxor.u32 %v781, 2147483648
    %v784 = vmul.f32 %v783, 1.442695
    %v785 = vpow.pop %v784
    %v786 = vadd.f32 %v785, 1.0
    %v787 = vrcp.pop %v786
    %v788 = vmul.f32 1.0, %v787
    %v789 = vmul.f32 %v788, %v475
    %v790 = vtanh.pop %v782
    %v791 = vmul.f32 %v788, %v790
    %793 = vrot.lane.b32.xlu0 %v791, 64
    %v794 = vpop.permute.xlu0 %793
    %v796 = vadd.f32 %v789, %v794
    %v797 = vxor.u32 %v782, 2147483648
    %v798 = vmul.f32 %v797, 1.442695
    %v799 = vpow.pop %v798
    %v800 = vadd.f32 %v799, 1.0
    %v801 = vrcp.pop %v800
    %v802 = vmul.f32 1.0, %v801
    %v803 = vtanh.pop %v796
    %v804 = vmul.f32 %v802, %v803
    %806 = vrot.lane.b32.xlu0 %v804, 64
    %v807 = vpop.permute.xlu0 %806
    %v808 = vsel %vm385, %v807, 0
    %810 = vmatprep.subr.mxu0 0.0
    %811 = vmatpush1.msra.mxu0 0.0
    %812 = vmatprep.subr.mxu0 0.0
    %813 = vmatpush1.msra.mxu0 0.0
    %814 = vmatprep.subr.mxu0 0.0
    %815 = vmatpush1.msra.mxu0 0.0
    %816 = vmatprep.subr.mxu0 0.0
    %817 = vmatpush1.msra.mxu0 0.0
    %818 = vmatprep.subr.mxu0 0.0
    %819 = vmatpush1.msra.mxu0 0.0
    %820 = vmatprep.subr.mxu0 0.0
    %821 = vmatpush1.msra.mxu0 0.0
    %822 = vmatprep.subr.mxu0 0.0
    %823 = vmatpush1.msra.mxu0 0.0
    %824 = vmatprep.subr.mxu0 0.0
    %825 = vmatpush1.msra.mxu0 0.0
    %826 = vmatprep.subr.mxu0 0.0
    %827 = vmatpush1.msra.mxu0 %v119
    %828 = vmatprep.subr.mxu0 0.0
    %829 = vmatpush1.msra.mxu0 %v118
    %830 = vmatprep.subr.mxu0 0.0
    %831 = vmatpush1.msra.mxu0 %v117
    %832 = vmatprep.subr.mxu0 0.0
    %833 = vmatpush1.msra.mxu0 %v116
    %834 = vmatprep.subr.mxu0 0.0
    %835 = vmatpush1.msra.mxu0 %v115
    %836 = vmatprep.subr.mxu0 0.0
    %837 = vmatpush1.msra.mxu0 %v114
    %838 = vmatprep.subr.mxu0 0.0
    %839 = vmatpush1.msra.mxu0 %v113
    %840 = vmatprep.subr.mxu0 0.0
    %841 = vmatpush1.msra.mxu0 %v112
    %842 = vmatprep.subr.mxu0 0.0
    %843 = vmatpush2.msra.mxu0 0.0
    %844 = vmatprep.subr.mxu0 0.0
    %845 = vmatpush2.msra.mxu0 0.0
    %846 = vmatprep.subr.mxu0 0.0
    %847 = vmatpush2.msra.mxu0 0.0
    %848 = vmatprep.subr.mxu0 0.0
    %849 = vmatpush2.msra.mxu0 0.0
    %850 = vmatprep.subr.mxu0 0.0
    %851 = vmatpush2.msra.mxu0 0.0
    %852 = vmatprep.subr.mxu0 0.0
    %853 = vmatpush2.msra.mxu0 0.0
    %854 = vmatprep.subr.mxu0 0.0
    %855 = vmatpush2.msra.mxu0 0.0
    %856 = vmatprep.subr.mxu0 0.0
    %857 = vmatpush2.msra.mxu0 0.0
    %858 = vmatprep.subr.mxu0 0.0
    %859 = vmatpush2.msra.mxu0 0.0
    %860 = vmatprep.subr.mxu0 0.0
    %861 = vmatpush2.msra.mxu0 0.0
    %862 = vmatprep.subr.mxu0 0.0
    %863 = vmatpush2.msra.mxu0 0.0
    %864 = vmatprep.subr.mxu0 0.0
    %865 = vmatpush2.msra.mxu0 0.0
    %866 = vmatprep.subr.mxu0 0.0
    %867 = vmatpush2.msra.mxu0 0.0
    %868 = vmatprep.subr.mxu0 0.0
    %869 = vmatpush2.msra.mxu0 0.0
    %870 = vmatprep.subr.mxu0 0.0
    %871 = vmatpush2.msra.mxu0 0.0
    %872 = vmatprep.subr.mxu0 0.0
    %873 = vmatpush2.msra.mxu0 0.0
    %874 = vmatprep.mubr.f32.mxu0 0.0
    %875 = vmatmul.mubr.f32.gmra.mxu0 %v808
    %v876 = vpop.f32.mrf.mxu0
    %v877 = vadd.f32 %v129, %v876
    %v878 = vpop.f32.mrf.mxu0
    %879 = vdwg.mxu0
    %v880 = vmax.f32 %v877, 0.0
    %v882 = vsel %vm146, %v880, 0
    %884 = vmatprep.subr.mxu0 0.0
    %885 = vmatpush1.msra.mxu0 0.0
    %886 = vmatprep.subr.mxu0 0.0
    %887 = vmatpush1.msra.mxu0 0.0
    %888 = vmatprep.subr.mxu0 0.0
    %889 = vmatpush1.msra.mxu0 0.0
    %890 = vmatprep.subr.mxu0 0.0
    %891 = vmatpush1.msra.mxu0 0.0
    %892 = vmatprep.subr.mxu0 0.0
    %893 = vmatpush1.msra.mxu0 0.0
    %894 = vmatprep.subr.mxu0 0.0
    %895 = vmatpush1.msra.mxu0 0.0
    %896 = vmatprep.subr.mxu0 0.0
    %897 = vmatpush1.msra.mxu0 0.0
    %898 = vmatprep.subr.mxu0 0.0
    %899 = vmatpush1.msra.mxu0 0.0
    %900 = vmatprep.subr.mxu0 0.0
    %901 = vmatpush1.msra.mxu0 0.0
    %902 = vmatprep.subr.mxu0 0.0
    %903 = vmatpush1.msra.mxu0 0.0
    %904 = vmatprep.subr.mxu0 0.0
    %905 = vmatpush1.msra.mxu0 0.0
    %906 = vmatprep.subr.mxu0 0.0
    %907 = vmatpush1.msra.mxu0 0.0
    %908 = vmatprep.subr.mxu0 0.0
    %909 = vmatpush1.msra.mxu0 %v123
    %910 = vmatprep.subr.mxu0 0.0
    %911 = vmatpush1.msra.mxu0 %v122
    %912 = vmatprep.subr.mxu0 0.0
    %913 = vmatpush1.msra.mxu0 %v121
    %914 = vmatprep.subr.mxu0 0.0
    %915 = vmatpush1.msra.mxu0 %v120
    %916 = vmatprep.subr.mxu0 0.0
    %917 = vmatpush2.msra.mxu0 0.0
    %918 = vmatprep.subr.mxu0 0.0
    %919 = vmatpush2.msra.mxu0 0.0
    %920 = vmatprep.subr.mxu0 0.0
    %921 = vmatpush2.msra.mxu0 0.0
    %922 = vmatprep.subr.mxu0 0.0
    %923 = vmatpush2.msra.mxu0 0.0
    %924 = vmatprep.subr.mxu0 0.0
    %925 = vmatpush2.msra.mxu0 0.0
    %926 = vmatprep.subr.mxu0 0.0
    %927 = vmatpush2.msra.mxu0 0.0
    %928 = vmatprep.subr.mxu0 0.0
    %929 = vmatpush2.msra.mxu0 0.0
    %930 = vmatprep.subr.mxu0 0.0
    %931 = vmatpush2.msra.mxu0 0.0
    %932 = vmatprep.subr.mxu0 0.0
    %933 = vmatpush2.msra.mxu0 0.0
    %934 = vmatprep.subr.mxu0 0.0
    %935 = vmatpush2.msra.mxu0 0.0
    %936 = vmatprep.subr.mxu0 0.0
    %937 = vmatpush2.msra.mxu0 0.0
    %938 = vmatprep.subr.mxu0 0.0
    %939 = vmatpush2.msra.mxu0 0.0
    %940 = vmatprep.subr.mxu0 0.0
    %941 = vmatpush2.msra.mxu0 0.0
    %942 = vmatprep.subr.mxu0 0.0
    %943 = vmatpush2.msra.mxu0 0.0
    %944 = vmatprep.subr.mxu0 0.0
    %945 = vmatpush2.msra.mxu0 0.0
    %946 = vmatprep.subr.mxu0 0.0
    %947 = vmatpush2.msra.mxu0 0.0
    %948 = vmatprep.mubr.f32.mxu0 0.0
    %949 = vmatmul.mubr.f32.gmra.mxu0 %v882
    %v950 = vpop.f32.mrf.mxu0
    %v951 = vadd.f32 %v136, %v950
    %v952 = vpop.f32.mrf.mxu0
    %953 = vdwg.mxu0
    %955 = vrot.lane.b32.xlu0 %v951, 16
    %v956 = vpop.permute.xlu0 %955
    %vm958 = vcmask 261248
    %959 = vst.msk [vmem:[#allocation8] sm:$0xff] %vm958, %v956
    %v960 = vsel %vm309, %v951, 0
    %962 = vmatprep.subr.mxu0 0.0
    %963 = vmatpush1.msra.mxu0 0.0
    %964 = vmatprep.subr.mxu0 0.0
    %965 = vmatpush1.msra.mxu0 0.0
    %966 = vmatprep.subr.mxu0 0.0
    %967 = vmatpush1.msra.mxu0 0.0
    %968 = vmatprep.subr.mxu0 0.0
    %969 = vmatpush1.msra.mxu0 0.0
    %970 = vmatprep.subr.mxu0 0.0
    %971 = vmatpush1.msra.mxu0 0.0
    %972 = vmatprep.subr.mxu0 0.0
    %973 = vmatpush1.msra.mxu0 0.0
    %974 = vmatprep.subr.mxu0 0.0
    %975 = vmatpush1.msra.mxu0 0.0
    %976 = vmatprep.subr.mxu0 0.0
    %977 = vmatpush1.msra.mxu0 0.0
    %978 = vmatprep.subr.mxu0 0.0
    %979 = vmatpush1.msra.mxu0 0.0
    %980 = vmatprep.subr.mxu0 0.0
    %981 = vmatpush1.msra.mxu0 0.0
    %982 = vmatprep.subr.mxu0 0.0
    %983 = vmatpush1.msra.mxu0 0.0
    %984 = vmatprep.subr.mxu0 0.0
    %985 = vmatpush1.msra.mxu0 0.0
    %986 = vmatprep.subr.mxu0 0.0
    %987 = vmatpush1.msra.mxu0 0.0
    %988 = vmatprep.subr.mxu0 0.0
    %989 = vmatpush1.msra.mxu0 0.0
    %990 = vmatprep.subr.mxu0 %v95
    %991 = vmatpush1.msra.mxu0 %v94
    %992 = vmatprep.subr.mxu0 %v93
    %993 = vmatpush1.msra.mxu0 %v92
    %994 = vmatprep.subr.mxu0 0.0
    %995 = vmatpush2.msra.mxu0 0.0
    %996 = vmatprep.subr.mxu0 0.0
    %997 = vmatpush2.msra.mxu0 0.0
    %998 = vmatprep.subr.mxu0 0.0
    %999 = vmatpush2.msra.mxu0 0.0
    %1000 = vmatprep.subr.mxu0 0.0
    %1001 = vmatpush2.msra.mxu0 0.0
    %1002 = vmatprep.subr.mxu0 0.0
    %1003 = vmatpush2.msra.mxu0 0.0
    %1004 = vmatprep.subr.mxu0 0.0
    %1005 = vmatpush2.msra.mxu0 0.0
    %1006 = vmatprep.subr.mxu0 0.0
    %1007 = vmatpush2.msra.mxu0 0.0
    %1008 = vmatprep.subr.mxu0 0.0
    %1009 = vmatpush2.msra.mxu0 0.0
    %1010 = vmatprep.subr.mxu0 0.0
    %1011 = vmatpush2.msra.mxu0 0.0
    %1012 = vmatprep.subr.mxu0 0.0
    %1013 = vmatpush2.msra.mxu0 0.0
    %1014 = vmatprep.subr.mxu0 0.0
    %1015 = vmatpush2.msra.mxu0 0.0
    %1016 = vmatprep.subr.mxu0 0.0
    %1017 = vmatpush2.msra.mxu0 0.0
    %1018 = vmatprep.subr.mxu0 0.0
    %1019 = vmatpush2.msra.mxu0 0.0
    %1020 = vmatprep.subr.mxu0 0.0
    %1021 = vmatpush2.msra.mxu0 0.0
    %1022 = vmatprep.subr.mxu0 0.0
    %1023 = vmatpush2.msra.mxu0 0.0
    %1024 = vmatprep.subr.mxu0 0.0
    %1025 = vmatpush2.msra.mxu0 0.0
    %1026 = vmatprep.mubr.f32.mxu0 0.0
    %1027 = vmatmul.mubr.f32.gmra.mxu0 %v960
    %v1028 = vpop.f32.mrf.mxu0
    %v1029 = vadd.f32 0.0, %v1028
    %v1030 = vpop.f32.mrf.mxu0
    %v1031 = vadd.f32 0.0, %v1030
    %1032 = vdwg.mxu0
    %v1033 = vadd.f32 %v303, %v1029
    %v1034 = vadd.f32 %v305, %v1031
    %1035 = vmatprep.subr.mxu0 0.0
    %1036 = vmatpush1.msra.mxu0 0.0
    %1037 = vmatprep.subr.mxu0 0.0
    %1038 = vmatpush1.msra.mxu0 0.0
    %1039 = vmatprep.subr.mxu0 0.0
    %1040 = vmatpush1.msra.mxu0 0.0
    %1041 = vmatprep.subr.mxu0 0.0
    %1042 = vmatpush1.msra.mxu0 0.0
    %1043 = vmatprep.subr.mxu0 0.0
    %1044 = vmatpush1.msra.mxu0 0.0
    %1045 = vmatprep.subr.mxu0 0.0
    %1046 = vmatpush1.msra.mxu0 0.0
    %1047 = vmatprep.subr.mxu0 0.0
    %1048 = vmatpush1.msra.mxu0 0.0
    %1049 = vmatprep.subr.mxu0 0.0
    %1050 = vmatpush1.msra.mxu0 0.0
    %1051 = vmatprep.subr.mxu0 %v111
    %1052 = vmatpush1.msra.mxu0 %v110
    %1053 = vmatprep.subr.mxu0 %v109
    %1054 = vmatpush1.msra.mxu0 %v108
    %1055 = vmatprep.subr.mxu0 %v107
    %1056 = vmatpush1.msra.mxu0 %v106
    %1057 = vmatprep.subr.mxu0 %v105
    %1058 = vmatpush1.msra.mxu0 %v104
    %1059 = vmatprep.subr.mxu0 %v103
    %1060 = vmatpush1.msra.mxu0 %v102
    %1061 = vmatprep.subr.mxu0 %v101
    %1062 = vmatpush1.msra.mxu0 %v100
    %1063 = vmatprep.subr.mxu0 %v99
    %1064 = vmatpush1.msra.mxu0 %v98
    %1065 = vmatprep.subr.mxu0 %v97
    %1066 = vmatpush1.msra.mxu0 %v96
    %1067 = vmatprep.subr.mxu0 0.0
    %1068 = vmatpush2.msra.mxu0 0.0
    %1069 = vmatprep.subr.mxu0 0.0
    %1070 = vmatpush2.msra.mxu0 0.0
    %1071 = vmatprep.subr.mxu0 0.0
    %1072 = vmatpush2.msra.mxu0 0.0
    %1073 = vmatprep.subr.mxu0 0.0
    %1074 = vmatpush2.msra.mxu0 0.0
    %1075 = vmatprep.subr.mxu0 0.0
    %1076 = vmatpush2.msra.mxu0 0.0
    %1077 = vmatprep.subr.mxu0 0.0
    %1078 = vmatpush2.msra.mxu0 0.0
    %1079 = vmatprep.subr.mxu0 0.0
    %1080 = vmatpush2.msra.mxu0 0.0
    %1081 = vmatprep.subr.mxu0 0.0
    %1082 = vmatpush2.msra.mxu0 0.0
    %1083 = vmatprep.subr.mxu0 0.0
    %1084 = vmatpush2.msra.mxu0 0.0
    %1085 = vmatprep.subr.mxu0 0.0
    %1086 = vmatpush2.msra.mxu0 0.0
    %1087 = vmatprep.subr.mxu0 0.0
    %1088 = vmatpush2.msra.mxu0 0.0
    %1089 = vmatprep.subr.mxu0 0.0
    %1090 = vmatpush2.msra.mxu0 0.0
    %1091 = vmatprep.subr.mxu0 0.0
    %1092 = vmatpush2.msra.mxu0 0.0
    %1093 = vmatprep.subr.mxu0 0.0
    %1094 = vmatpush2.msra.mxu0 0.0
    %1095 = vmatprep.subr.mxu0 0.0
    %1096 = vmatpush2.msra.mxu0 0.0
    %1097 = vmatprep.subr.mxu0 0.0
    %1098 = vmatpush2.msra.mxu0 0.0
    %1099 = vmatprep.mubr.f32.mxu0 0.0
    %1100 = vmatmul.mubr.f32.gmra.mxu0 %v808
    %v1101 = vpop.f32.mrf.mxu0
    %v1102 = vadd.f32 0.0, %v1101
    %v1103 = vpop.f32.mrf.mxu0
    %v1104 = vadd.f32 0.0, %v1103
    %1105 = vdwg.mxu0
    %v1106 = vadd.f32 %v1033, %v1102
    %v1107 = vadd.f32 %v1034, %v1104
    %v1108 = vxor.u32 %v1106, 2147483648
    %v1109 = vmul.f32 %v1108, 1.442695
    %v1110 = vpow.pop %v1109
    %v1111 = vadd.f32 %v1110, 1.0
    %v1112 = vrcp.pop %v1111
    %v1113 = vmul.f32 1.0, %v1112
    %v1114 = vmul.f32 %v1113, %v796
    %v1115 = vtanh.pop %v1107
    %v1116 = vmul.f32 %v1113, %v1115
    %1118 = vrot.lane.b32.xlu0 %v1116, 64
    %v1119 = vpop.permute.xlu0 %1118
    %v1121 = vadd.f32 %v1114, %v1119
    %v1122 = vxor.u32 %v1107, 2147483648
    %v1123 = vmul.f32 %v1122, 1.442695
    %v1124 = vpow.pop %v1123
    %v1125 = vadd.f32 %v1124, 1.0
    %v1126 = vrcp.pop %v1125
    %v1127 = vmul.f32 1.0, %v1126
    %v1128 = vtanh.pop %v1121
    %v1129 = vmul.f32 %v1127, %v1128
    %1131 = vrot.lane.b32.xlu0 %v1129, 64
    %v1132 = vpop.permute.xlu0 %1131
    %v1133 = vsel %vm385, %v1132, 0
    %1135 = vmatprep.subr.mxu0 0.0
    %1136 = vmatpush1.msra.mxu0 0.0
    %1137 = vmatprep.subr.mxu0 0.0
    %1138 = vmatpush1.msra.mxu0 0.0
    %1139 = vmatprep.subr.mxu0 0.0
    %1140 = vmatpush1.msra.mxu0 0.0
    %1141 = vmatprep.subr.mxu0 0.0
    %1142 = vmatpush1.msra.mxu0 0.0
    %1143 = vmatprep.subr.mxu0 0.0
    %1144 = vmatpush1.msra.mxu0 0.0
    %1145 = vmatprep.subr.mxu0 0.0
    %1146 = vmatpush1.msra.mxu0 0.0
    %1147 = vmatprep.subr.mxu0 0.0
    %1148 = vmatpush1.msra.mxu0 0.0
    %1149 = vmatprep.subr.mxu0 0.0
    %1150 = vmatpush1.msra.mxu0 0.0
    %1151 = vmatprep.subr.mxu0 0.0
    %1152 = vmatpush1.msra.mxu0 %v119
    %1153 = vmatprep.subr.mxu0 0.0
    %1154 = vmatpush1.msra.mxu0 %v118
    %1155 = vmatprep.subr.mxu0 0.0
    %1156 = vmatpush1.msra.mxu0 %v117
    %1157 = vmatprep.subr.mxu0 0.0
    %1158 = vmatpush1.msra.mxu0 %v116
    %1159 = vmatprep.subr.mxu0 0.0
    %1160 = vmatpush1.msra.mxu0 %v115
    %1161 = vmatprep.subr.mxu0 0.0
    %1162 = vmatpush1.msra.mxu0 %v114
    %1163 = vmatprep.subr.mxu0 0.0
    %1164 = vmatpush1.msra.mxu0 %v113
    %1165 = vmatprep.subr.mxu0 0.0
    %1166 = vmatpush1.msra.mxu0 %v112
    %1167 = vmatprep.subr.mxu0 0.0
    %1168 = vmatpush2.msra.mxu0 0.0
    %1169 = vmatprep.subr.mxu0 0.0
    %1170 = vmatpush2.msra.mxu0 0.0
    %1171 = vmatprep.subr.mxu0 0.0
    %1172 = vmatpush2.msra.mxu0 0.0
    %1173 = vmatprep.subr.mxu0 0.0
    %1174 = vmatpush2.msra.mxu0 0.0
    %1175 = vmatprep.subr.mxu0 0.0
    %1176 = vmatpush2.msra.mxu0 0.0
    %1177 = vmatprep.subr.mxu0 0.0
    %1178 = vmatpush2.msra.mxu0 0.0
    %1179 = vmatprep.subr.mxu0 0.0
    %1180 = vmatpush2.msra.mxu0 0.0
    %1181 = vmatprep.subr.mxu0 0.0
    %1182 = vmatpush2.msra.mxu0 0.0
    %1183 = vmatprep.subr.mxu0 0.0
    %1184 = vmatpush2.msra.mxu0 0.0
    %1185 = vmatprep.subr.mxu0 0.0
    %1186 = vmatpush2.msra.mxu0 0.0
    %1187 = vmatprep.subr.mxu0 0.0
    %1188 = vmatpush2.msra.mxu0 0.0
    %1189 = vmatprep.subr.mxu0 0.0
    %1190 = vmatpush2.msra.mxu0 0.0
    %1191 = vmatprep.subr.mxu0 0.0
    %1192 = vmatpush2.msra.mxu0 0.0
    %1193 = vmatprep.subr.mxu0 0.0
    %1194 = vmatpush2.msra.mxu0 0.0
    %1195 = vmatprep.subr.mxu0 0.0
    %1196 = vmatpush2.msra.mxu0 0.0
    %1197 = vmatprep.subr.mxu0 0.0
    %1198 = vmatpush2.msra.mxu0 0.0
    %1199 = vmatprep.mubr.f32.mxu0 0.0
    %1200 = vmatmul.mubr.f32.gmra.mxu0 %v1133
    %v1201 = vpop.f32.mrf.mxu0
    %v1202 = vadd.f32 %v129, %v1201
    %v1203 = vpop.f32.mrf.mxu0
    %1204 = vdwg.mxu0
    %v1205 = vmax.f32 %v1202, 0.0
    %v1207 = vsel %vm146, %v1205, 0
    %1209 = vmatprep.subr.mxu0 0.0
    %1210 = vmatpush1.msra.mxu0 0.0
    %1211 = vmatprep.subr.mxu0 0.0
    %1212 = vmatpush1.msra.mxu0 0.0
    %1213 = vmatprep.subr.mxu0 0.0
    %1214 = vmatpush1.msra.mxu0 0.0
    %1215 = vmatprep.subr.mxu0 0.0
    %1216 = vmatpush1.msra.mxu0 0.0
    %1217 = vmatprep.subr.mxu0 0.0
    %1218 = vmatpush1.msra.mxu0 0.0
    %1219 = vmatprep.subr.mxu0 0.0
    %1220 = vmatpush1.msra.mxu0 0.0
    %1221 = vmatprep.subr.mxu0 0.0
    %1222 = vmatpush1.msra.mxu0 0.0
    %1223 = vmatprep.subr.mxu0 0.0
    %1224 = vmatpush1.msra.mxu0 0.0
    %1225 = vmatprep.subr.mxu0 0.0
    %1226 = vmatpush1.msra.mxu0 0.0
    %1227 = vmatprep.subr.mxu0 0.0
    %1228 = vmatpush1.msra.mxu0 0.0
    %1229 = vmatprep.subr.mxu0 0.0
    %1230 = vmatpush1.msra.mxu0 0.0
    %1231 = vmatprep.subr.mxu0 0.0
    %1232 = vmatpush1.msra.mxu0 0.0
    %1233 = vmatprep.subr.mxu0 0.0
    %1234 = vmatpush1.msra.mxu0 %v123
    %1235 = vmatprep.subr.mxu0 0.0
    %1236 = vmatpush1.msra.mxu0 %v122
    %1237 = vmatprep.subr.mxu0 0.0
    %1238 = vmatpush1.msra.mxu0 %v121
    %1239 = vmatprep.subr.mxu0 0.0
    %1240 = vmatpush1.msra.mxu0 %v120
    %1241 = vmatprep.subr.mxu0 0.0
    %1242 = vmatpush2.msra.mxu0 0.0
    %1243 = vmatprep.subr.mxu0 0.0
    %1244 = vmatpush2.msra.mxu0 0.0
    %1245 = vmatprep.subr.mxu0 0.0
    %1246 = vmatpush2.msra.mxu0 0.0
    %1247 = vmatprep.subr.mxu0 0.0
    %1248 = vmatpush2.msra.mxu0 0.0
    %1249 = vmatprep.subr.mxu0 0.0
    %1250 = vmatpush2.msra.mxu0 0.0
    %1251 = vmatprep.subr.mxu0 0.0
    %1252 = vmatpush2.msra.mxu0 0.0
    %1253 = vmatprep.subr.mxu0 0.0
    %1254 = vmatpush2.msra.mxu0 0.0
    %1255 = vmatprep.subr.mxu0 0.0
    %1256 = vmatpush2.msra.mxu0 0.0
    %1257 = vmatprep.subr.mxu0 0.0
    %1258 = vmatpush2.msra.mxu0 0.0
    %1259 = vmatprep.subr.mxu0 0.0
    %1260 = vmatpush2.msra.mxu0 0.0
    %1261 = vmatprep.subr.mxu0 0.0
    %1262 = vmatpush2.msra.mxu0 0.0
    %1263 = vmatprep.subr.mxu0 0.0
    %1264 = vmatpush2.msra.mxu0 0.0
    %1265 = vmatprep.subr.mxu0 0.0
    %1266 = vmatpush2.msra.mxu0 0.0
    %1267 = vmatprep.subr.mxu0 0.0
    %1268 = vmatpush2.msra.mxu0 0.0
    %1269 = vmatprep.subr.mxu0 0.0
    %1270 = vmatpush2.msra.mxu0 0.0
    %1271 = vmatprep.subr.mxu0 0.0
    %1272 = vmatpush2.msra.mxu0 0.0
    %1273 = vmatprep.mubr.f32.mxu0 0.0
    %1274 = vmatmul.mubr.f32.gmra.mxu0 %v1207
    %v1275 = vpop.f32.mrf.mxu0
    %v1276 = vadd.f32 %v136, %v1275
    %v1277 = vpop.f32.mrf.mxu0
    %1278 = vdwg.mxu0
    %1280 = vrot.lane.b32.xlu0 %v1276, 32
    %v1281 = vpop.permute.xlu0 %1280
    %vm1283 = vcmask 392448
    %1284 = vst.msk [vmem:[#allocation8] sm:$0xff] %vm1283, %v1281
    %v1285 = vsel %vm309, %v1276, 0
    %1287 = vmatprep.subr.mxu0 0.0
    %1288 = vmatpush1.msra.mxu0 0.0
    %1289 = vmatprep.subr.mxu0 0.0
    %1290 = vmatpush1.msra.mxu0 0.0
    %1291 = vmatprep.subr.mxu0 0.0
    %1292 = vmatpush1.msra.mxu0 0.0
    %1293 = vmatprep.subr.mxu0 0.0
    %1294 = vmatpush1.msra.mxu0 0.0
    %1295 = vmatprep.subr.mxu0 0.0
    %1296 = vmatpush1.msra.mxu0 0.0
    %1297 = vmatprep.subr.mxu0 0.0
    %1298 = vmatpush1.msra.mxu0 0.0
    %1299 = vmatprep.subr.mxu0 0.0
    %1300 = vmatpush1.msra.mxu0 0.0
    %1301 = vmatprep.subr.mxu0 0.0
    %1302 = vmatpush1.msra.mxu0 0.0
    %1303 = vmatprep.subr.mxu0 0.0
    %1304 = vmatpush1.msra.mxu0 0.0
    %1305 = vmatprep.subr.mxu0 0.0
    %1306 = vmatpush1.msra.mxu0 0.0
    %1307 = vmatprep.subr.mxu0 0.0
    %1308 = vmatpush1.msra.mxu0 0.0
    %1309 = vmatprep.subr.mxu0 0.0
    %1310 = vmatpush1.msra.mxu0 0.0
    %1311 = vmatprep.subr.mxu0 0.0
    %1312 = vmatpush1.msra.mxu0 0.0
    %1313 = vmatprep.subr.mxu0 0.0
    %1314 = vmatpush1.msra.mxu0 0.0
    %1315 = vmatprep.subr.mxu0 %v95
    %1316 = vmatpush1.msra.mxu0 %v94
    %1317 = vmatprep.subr.mxu0 %v93
    %1318 = vmatpush1.msra.mxu0 %v92
    %1319 = vmatprep.subr.mxu0 0.0
    %1320 = vmatpush2.msra.mxu0 0.0
    %1321 = vmatprep.subr.mxu0 0.0
    %1322 = vmatpush2.msra.mxu0 0.0
    %1323 = vmatprep.subr.mxu0 0.0
    %1324 = vmatpush2.msra.mxu0 0.0
    %1325 = vmatprep.subr.mxu0 0.0
    %1326 = vmatpush2.msra.mxu0 0.0
    %1327 = vmatprep.subr.mxu0 0.0
    %1328 = vmatpush2.msra.mxu0 0.0
    %1329 = vmatprep.subr.mxu0 0.0
    %1330 = vmatpush2.msra.mxu0 0.0
    %1331 = vmatprep.subr.mxu0 0.0
    %1332 = vmatpush2.msra.mxu0 0.0
    %1333 = vmatprep.subr.mxu0 0.0
    %1334 = vmatpush2.msra.mxu0 0.0
    %1335 = vmatprep.subr.mxu0 0.0
    %1336 = vmatpush2.msra.mxu0 0.0
    %1337 = vmatprep.subr.mxu0 0.0
    %1338 = vmatpush2.msra.mxu0 0.0
    %1339 = vmatprep.subr.mxu0 0.0
    %1340 = vmatpush2.msra.mxu0 0.0
    %1341 = vmatprep.subr.mxu0 0.0
    %1342 = vmatpush2.msra.mxu0 0.0
    %1343 = vmatprep.subr.mxu0 0.0
    %1344 = vmatpush2.msra.mxu0 0.0
    %1345 = vmatprep.subr.mxu0 0.0
    %1346 = vmatpush2.msra.mxu0 0.0
    %1347 = vmatprep.subr.mxu0 0.0
    %1348 = vmatpush2.msra.mxu0 0.0
    %1349 = vmatprep.subr.mxu0 0.0
    %1350 = vmatpush2.msra.mxu0 0.0
    %1351 = vmatprep.mubr.f32.mxu0 0.0
    %1352 = vmatmul.mubr.f32.gmra.mxu0 %v1285
    %v1353 = vpop.f32.mrf.mxu0
    %v1354 = vadd.f32 0.0, %v1353
    %v1355 = vpop.f32.mrf.mxu0
    %v1356 = vadd.f32 0.0, %v1355
    %1357 = vdwg.mxu0
    %v1358 = vadd.f32 %v303, %v1354
    %v1359 = vadd.f32 %v305, %v1356
    %1360 = vmatprep.subr.mxu0 0.0
    %1361 = vmatpush1.msra.mxu0 0.0
    %1362 = vmatprep.subr.mxu0 0.0
    %1363 = vmatpush1.msra.mxu0 0.0
    %1364 = vmatprep.subr.mxu0 0.0
    %1365 = vmatpush1.msra.mxu0 0.0
    %1366 = vmatprep.subr.mxu0 0.0
    %1367 = vmatpush1.msra.mxu0 0.0
    %1368 = vmatprep.subr.mxu0 0.0
    %1369 = vmatpush1.msra.mxu0 0.0
    %1370 = vmatprep.subr.mxu0 0.0
    %1371 = vmatpush1.msra.mxu0 0.0
    %1372 = vmatprep.subr.mxu0 0.0
    %1373 = vmatpush1.msra.mxu0 0.0
    %1374 = vmatprep.subr.mxu0 0.0
    %1375 = vmatpush1.msra.mxu0 0.0
    %1376 = vmatprep.subr.mxu0 %v111
    %1377 = vmatpush1.msra.mxu0 %v110
    %1378 = vmatprep.subr.mxu0 %v109
    %1379 = vmatpush1.msra.mxu0 %v108
    %1380 = vmatprep.subr.mxu0 %v107
    %1381 = vmatpush1.msra.mxu0 %v106
    %1382 = vmatprep.subr.mxu0 %v105
    %1383 = vmatpush1.msra.mxu0 %v104
    %1384 = vmatprep.subr.mxu0 %v103
    %1385 = vmatpush1.msra.mxu0 %v102
    %1386 = vmatprep.subr.mxu0 %v101
    %1387 = vmatpush1.msra.mxu0 %v100
    %1388 = vmatprep.subr.mxu0 %v99
    %1389 = vmatpush1.msra.mxu0 %v98
    %1390 = vmatprep.subr.mxu0 %v97
    %1391 = vmatpush1.msra.mxu0 %v96
    %1392 = vmatprep.subr.mxu0 0.0
    %1393 = vmatpush2.msra.mxu0 0.0
    %1394 = vmatprep.subr.mxu0 0.0
    %1395 = vmatpush2.msra.mxu0 0.0
    %1396 = vmatprep.subr.mxu0 0.0
    %1397 = vmatpush2.msra.mxu0 0.0
    %1398 = vmatprep.subr.mxu0 0.0
    %1399 = vmatpush2.msra.mxu0 0.0
    %1400 = vmatprep.subr.mxu0 0.0
    %1401 = vmatpush2.msra.mxu0 0.0
    %1402 = vmatprep.subr.mxu0 0.0
    %1403 = vmatpush2.msra.mxu0 0.0
    %1404 = vmatprep.subr.mxu0 0.0
    %1405 = vmatpush2.msra.mxu0 0.0
    %1406 = vmatprep.subr.mxu0 0.0
    %1407 = vmatpush2.msra.mxu0 0.0
    %1408 = vmatprep.subr.mxu0 0.0
    %1409 = vmatpush2.msra.mxu0 0.0
    %1410 = vmatprep.subr.mxu0 0.0
    %1411 = vmatpush2.msra.mxu0 0.0
    %1412 = vmatprep.subr.mxu0 0.0
    %1413 = vmatpush2.msra.mxu0 0.0
    %1414 = vmatprep.subr.mxu0 0.0
    %1415 = vmatpush2.msra.mxu0 0.0
    %1416 = vmatprep.subr.mxu0 0.0
    %1417 = vmatpush2.msra.mxu0 0.0
    %1418 = vmatprep.subr.mxu0 0.0
    %1419 = vmatpush2.msra.mxu0 0.0
    %1420 = vmatprep.subr.mxu0 0.0
    %1421 = vmatpush2.msra.mxu0 0.0
    %1422 = vmatprep.subr.mxu0 0.0
    %1423 = vmatpush2.msra.mxu0 0.0
    %1424 = vmatprep.mubr.f32.mxu0 0.0
    %1425 = vmatmul.mubr.f32.gmra.mxu0 %v1133
    %v1426 = vpop.f32.mrf.mxu0
    %v1427 = vadd.f32 0.0, %v1426
    %v1428 = vpop.f32.mrf.mxu0
    %v1429 = vadd.f32 0.0, %v1428
    %1430 = vdwg.mxu0
    %v1431 = vadd.f32 %v1358, %v1427
    %v1432 = vadd.f32 %v1359, %v1429
    %v1433 = vxor.u32 %v1431, 2147483648
    %v1434 = vmul.f32 %v1433, 1.442695
    %v1435 = vpow.pop %v1434
    %v1436 = vadd.f32 %v1435, 1.0
    %v1437 = vrcp.pop %v1436
    %v1438 = vmul.f32 1.0, %v1437
    %v1439 = vmul.f32 %v1438, %v1121
    %v1440 = vtanh.pop %v1432
    %v1441 = vmul.f32 %v1438, %v1440
    %1443 = vrot.lane.b32.xlu0 %v1441, 64
    %v1444 = vpop.permute.xlu0 %1443
    %v1446 = vadd.f32 %v1439, %v1444
    %v1447 = vxor.u32 %v1432, 2147483648
    %v1448 = vmul.f32 %v1447, 1.442695
    %v1449 = vpow.pop %v1448
    %v1450 = vadd.f32 %v1449, 1.0
    %v1451 = vrcp.pop %v1450
    %v1452 = vmul.f32 1.0, %v1451
    %v1453 = vtanh.pop %v1446
    %v1454 = vmul.f32 %v1452, %v1453
    %1456 = vrot.lane.b32.xlu0 %v1454, 64
    %v1457 = vpop.permute.xlu0 %1456
    %v1458 = vsel %vm385, %v1457, 0
    %1460 = vmatprep.subr.mxu0 0.0
    %1461 = vmatpush1.msra.mxu0 0.0
    %1462 = vmatprep.subr.mxu0 0.0
    %1463 = vmatpush1.msra.mxu0 0.0
    %1464 = vmatprep.subr.mxu0 0.0
    %1465 = vmatpush1.msra.mxu0 0.0
    %1466 = vmatprep.subr.mxu0 0.0
    %1467 = vmatpush1.msra.mxu0 0.0
    %1468 = vmatprep.subr.mxu0 0.0
    %1469 = vmatpush1.msra.mxu0 0.0
    %1470 = vmatprep.subr.mxu0 0.0
    %1471 = vmatpush1.msra.mxu0 0.0
    %1472 = vmatprep.subr.mxu0 0.0
    %1473 = vmatpush1.msra.mxu0 0.0
    %1474 = vmatprep.subr.mxu0 0.0
    %1475 = vmatpush1.msra.mxu0 0.0
    %1476 = vmatprep.subr.mxu0 0.0
    %1477 = vmatpush1.msra.mxu0 %v119
    %1478 = vmatprep.subr.mxu0 0.0
    %1479 = vmatpush1.msra.mxu0 %v118
    %1480 = vmatprep.subr.mxu0 0.0
    %1481 = vmatpush1.msra.mxu0 %v117
    %1482 = vmatprep.subr.mxu0 0.0
    %1483 = vmatpush1.msra.mxu0 %v116
    %1484 = vmatprep.subr.mxu0 0.0
    %1485 = vmatpush1.msra.mxu0 %v115
    %1486 = vmatprep.subr.mxu0 0.0
    %1487 = vmatpush1.msra.mxu0 %v114
    %1488 = vmatprep.subr.mxu0 0.0
    %1489 = vmatpush1.msra.mxu0 %v113
    %1490 = vmatprep.subr.mxu0 0.0
    %1491 = vmatpush1.msra.mxu0 %v112
    %1492 = vmatprep.subr.mxu0 0.0
    %1493 = vmatpush2.msra.mxu0 0.0
    %1494 = vmatprep.subr.mxu0 0.0
    %1495 = vmatpush2.msra.mxu0 0.0
    %1496 = vmatprep.subr.mxu0 0.0
    %1497 = vmatpush2.msra.mxu0 0.0
    %1498 = vmatprep.subr.mxu0 0.0
    %1499 = vmatpush2.msra.mxu0 0.0
    %1500 = vmatprep.subr.mxu0 0.0
    %1501 = vmatpush2.msra.mxu0 0.0
    %1502 = vmatprep.subr.mxu0 0.0
    %1503 = vmatpush2.msra.mxu0 0.0
    %1504 = vmatprep.subr.mxu0 0.0
    %1505 = vmatpush2.msra.mxu0 0.0
    %1506 = vmatprep.subr.mxu0 0.0
    %1507 = vmatpush2.msra.mxu0 0.0
    %1508 = vmatprep.subr.mxu0 0.0
    %1509 = vmatpush2.msra.mxu0 0.0
    %1510 = vmatprep.subr.mxu0 0.0
    %1511 = vmatpush2.msra.mxu0 0.0
    %1512 = vmatprep.subr.mxu0 0.0
    %1513 = vmatpush2.msra.mxu0 0.0
    %1514 = vmatprep.subr.mxu0 0.0
    %1515 = vmatpush2.msra.mxu0 0.0
    %1516 = vmatprep.subr.mxu0 0.0
    %1517 = vmatpush2.msra.mxu0 0.0
    %1518 = vmatprep.subr.mxu0 0.0
    %1519 = vmatpush2.msra.mxu0 0.0
    %1520 = vmatprep.subr.mxu0 0.0
    %1521 = vmatpush2.msra.mxu0 0.0
    %1522 = vmatprep.subr.mxu0 0.0
    %1523 = vmatpush2.msra.mxu0 0.0
    %1524 = vmatprep.mubr.f32.mxu0 0.0
    %1525 = vmatmul.mubr.f32.gmra.mxu0 %v1458
    %v1526 = vpop.f32.mrf.mxu0
    %v1527 = vadd.f32 %v129, %v1526
    %v1528 = vpop.f32.mrf.mxu0
    %1529 = vdwg.mxu0
    %v1530 = vmax.f32 %v1527, 0.0
    %v1532 = vsel %vm146, %v1530, 0
    %1534 = vmatprep.subr.mxu0 0.0
    %1535 = vmatpush1.msra.mxu0 0.0
    %1536 = vmatprep.subr.mxu0 0.0
    %1537 = vmatpush1.msra.mxu0 0.0
    %1538 = vmatprep.subr.mxu0 0.0
    %1539 = vmatpush1.msra.mxu0 0.0
    %1540 = vmatprep.subr.mxu0 0.0
    %1541 = vmatpush1.msra.mxu0 0.0
    %1542 = vmatprep.subr.mxu0 0.0
    %1543 = vmatpush1.msra.mxu0 0.0
    %1544 = vmatprep.subr.mxu0 0.0
    %1545 = vmatpush1.msra.mxu0 0.0
    %1546 = vmatprep.subr.mxu0 0.0
    %1547 = vmatpush1.msra.mxu0 0.0
    %1548 = vmatprep.subr.mxu0 0.0
    %1549 = vmatpush1.msra.mxu0 0.0
    %1550 = vmatprep.subr.mxu0 0.0
    %1551 = vmatpush1.msra.mxu0 0.0
    %1552 = vmatprep.subr.mxu0 0.0
    %1553 = vmatpush1.msra.mxu0 0.0
    %1554 = vmatprep.subr.mxu0 0.0
    %1555 = vmatpush1.msra.mxu0 0.0
    %1556 = vmatprep.subr.mxu0 0.0
    %1557 = vmatpush1.msra.mxu0 0.0
    %1558 = vmatprep.subr.mxu0 0.0
    %1559 = vmatpush1.msra.mxu0 %v123
    %1560 = vmatprep.subr.mxu0 0.0
    %1561 = vmatpush1.msra.mxu0 %v122
    %1562 = vmatprep.subr.mxu0 0.0
    %1563 = vmatpush1.msra.mxu0 %v121
    %1564 = vmatprep.subr.mxu0 0.0
    %1565 = vmatpush1.msra.mxu0 %v120
    %1566 = vmatprep.subr.mxu0 0.0
    %1567 = vmatpush2.msra.mxu0 0.0
    %1568 = vmatprep.subr.mxu0 0.0
    %1569 = vmatpush2.msra.mxu0 0.0
    %1570 = vmatprep.subr.mxu0 0.0
    %1571 = vmatpush2.msra.mxu0 0.0
    %1572 = vmatprep.subr.mxu0 0.0
    %1573 = vmatpush2.msra.mxu0 0.0
    %1574 = vmatprep.subr.mxu0 0.0
    %1575 = vmatpush2.msra.mxu0 0.0
    %1576 = vmatprep.subr.mxu0 0.0
    %1577 = vmatpush2.msra.mxu0 0.0
    %1578 = vmatprep.subr.mxu0 0.0
    %1579 = vmatpush2.msra.mxu0 0.0
    %1580 = vmatprep.subr.mxu0 0.0
    %1581 = vmatpush2.msra.mxu0 0.0
    %1582 = vmatprep.subr.mxu0 0.0
    %1583 = vmatpush2.msra.mxu0 0.0
    %1584 = vmatprep.subr.mxu0 0.0
    %1585 = vmatpush2.msra.mxu0 0.0
    %1586 = vmatprep.subr.mxu0 0.0
    %1587 = vmatpush2.msra.mxu0 0.0
    %1588 = vmatprep.subr.mxu0 0.0
    %1589 = vmatpush2.msra.mxu0 0.0
    %1590 = vmatprep.subr.mxu0 0.0
    %1591 = vmatpush2.msra.mxu0 0.0
    %1592 = vmatprep.subr.mxu0 0.0
    %1593 = vmatpush2.msra.mxu0 0.0
    %1594 = vmatprep.subr.mxu0 0.0
    %1595 = vmatpush2.msra.mxu0 0.0
    %1596 = vmatprep.subr.mxu0 0.0
    %1597 = vmatpush2.msra.mxu0 0.0
    %1598 = vmatprep.mubr.f32.mxu0 0.0
    %1599 = vmatmul.mubr.f32.gmra.mxu0 %v1532
    %v1600 = vpop.f32.mrf.mxu0
    %v1601 = vadd.f32 %v136, %v1600
    %v1602 = vpop.f32.mrf.mxu0
    %1603 = vdwg.mxu0
    %1605 = vrot.lane.b32.xlu0 %v1601, 48
    %v1606 = vpop.permute.xlu0 %1605
    %vm1608 = vcmask 523648
    %1609 = vst.msk [vmem:[#allocation8] sm:$0xff] %vm1608, %v1606
    %v1610 = vsel %vm309, %v1601, 0
    %1612 = vmatprep.subr.mxu0 0.0
    %1613 = vmatpush1.msra.mxu0 0.0
    %1614 = vmatprep.subr.mxu0 0.0
    %1615 = vmatpush1.msra.mxu0 0.0
    %1616 = vmatprep.subr.mxu0 0.0
    %1617 = vmatpush1.msra.mxu0 0.0
    %1618 = vmatprep.subr.mxu0 0.0
    %1619 = vmatpush1.msra.mxu0 0.0
    %1620 = vmatprep.subr.mxu0 0.0
    %1621 = vmatpush1.msra.mxu0 0.0
    %1622 = vmatprep.subr.mxu0 0.0
    %1623 = vmatpush1.msra.mxu0 0.0
    %1624 = vmatprep.subr.mxu0 0.0
    %1625 = vmatpush1.msra.mxu0 0.0
    %1626 = vmatprep.subr.mxu0 0.0
    %1627 = vmatpush1.msra.mxu0 0.0
    %1628 = vmatprep.subr.mxu0 0.0
    %1629 = vmatpush1.msra.mxu0 0.0
    %1630 = vmatprep.subr.mxu0 0.0
    %1631 = vmatpush1.msra.mxu0 0.0
    %1632 = vmatprep.subr.mxu0 0.0
    %1633 = vmatpush1.msra.mxu0 0.0
    %1634 = vmatprep.subr.mxu0 0.0
    %1635 = vmatpush1.msra.mxu0 0.0
    %1636 = vmatprep.subr.mxu0 0.0
    %1637 = vmatpush1.msra.mxu0 0.0
    %1638 = vmatprep.subr.mxu0 0.0
    %1639 = vmatpush1.msra.mxu0 0.0
    %1640 = vmatprep.subr.mxu0 %v95
    %1641 = vmatpush1.msra.mxu0 %v94
    %1642 = vmatprep.subr.mxu0 %v93
    %1643 = vmatpush1.msra.mxu0 %v92
    %1644 = vmatprep.subr.mxu0 0.0
    %1645 = vmatpush2.msra.mxu0 0.0
    %1646 = vmatprep.subr.mxu0 0.0
    %1647 = vmatpush2.msra.mxu0 0.0
    %1648 = vmatprep.subr.mxu0 0.0
    %1649 = vmatpush2.msra.mxu0 0.0
    %1650 = vmatprep.subr.mxu0 0.0
    %1651 = vmatpush2.msra.mxu0 0.0
    %1652 = vmatprep.subr.mxu0 0.0
    %1653 = vmatpush2.msra.mxu0 0.0
    %1654 = vmatprep.subr.mxu0 0.0
    %1655 = vmatpush2.msra.mxu0 0.0
    %1656 = vmatprep.subr.mxu0 0.0
    %1657 = vmatpush2.msra.mxu0 0.0
    %1658 = vmatprep.subr.mxu0 0.0
    %1659 = vmatpush2.msra.mxu0 0.0
    %1660 = vmatprep.subr.mxu0 0.0
    %1661 = vmatpush2.msra.mxu0 0.0
    %1662 = vmatprep.subr.mxu0 0.0
    %1663 = vmatpush2.msra.mxu0 0.0
    %1664 = vmatprep.subr.mxu0 0.0
    %1665 = vmatpush2.msra.mxu0 0.0
    %1666 = vmatprep.subr.mxu0 0.0
    %1667 = vmatpush2.msra.mxu0 0.0
    %1668 = vmatprep.subr.mxu0 0.0
    %1669 = vmatpush2.msra.mxu0 0.0
    %1670 = vmatprep.subr.mxu0 0.0
    %1671 = vmatpush2.msra.mxu0 0.0
    %1672 = vmatprep.subr.mxu0 0.0
    %1673 = vmatpush2.msra.mxu0 0.0
    %1674 = vmatprep.subr.mxu0 0.0
    %1675 = vmatpush2.msra.mxu0 0.0
    %1676 = vmatprep.mubr.f32.mxu0 0.0
    %1677 = vmatmul.mubr.f32.gmra.mxu0 %v1610
    %v1678 = vpop.f32.mrf.mxu0
    %v1679 = vadd.f32 0.0, %v1678
    %v1680 = vpop.f32.mrf.mxu0
    %v1681 = vadd.f32 0.0, %v1680
    %1682 = vdwg.mxu0
    %v1683 = vadd.f32 %v303, %v1679
    %v1684 = vadd.f32 %v305, %v1681
    %1685 = vmatprep.subr.mxu0 0.0
    %1686 = vmatpush1.msra.mxu0 0.0
    %1687 = vmatprep.subr.mxu0 0.0
    %1688 = vmatpush1.msra.mxu0 0.0
    %1689 = vmatprep.subr.mxu0 0.0
    %1690 = vmatpush1.msra.mxu0 0.0
    %1691 = vmatprep.subr.mxu0 0.0
    %1692 = vmatpush1.msra.mxu0 0.0
    %1693 = vmatprep.subr.mxu0 0.0
    %1694 = vmatpush1.msra.mxu0 0.0
    %1695 = vmatprep.subr.mxu0 0.0
    %1696 = vmatpush1.msra.mxu0 0.0
    %1697 = vmatprep.subr.mxu0 0.0
    %1698 = vmatpush1.msra.mxu0 0.0
    %1699 = vmatprep.subr.mxu0 0.0
    %1700 = vmatpush1.msra.mxu0 0.0
    %1701 = vmatprep.subr.mxu0 %v111
    %1702 = vmatpush1.msra.mxu0 %v110
    %1703 = vmatprep.subr.mxu0 %v109
    %1704 = vmatpush1.msra.mxu0 %v108
    %1705 = vmatprep.subr.mxu0 %v107
    %1706 = vmatpush1.msra.mxu0 %v106
    %1707 = vmatprep.subr.mxu0 %v105
    %1708 = vmatpush1.msra.mxu0 %v104
    %1709 = vmatprep.subr.mxu0 %v103
    %1710 = vmatpush1.msra.mxu0 %v102
    %1711 = vmatprep.subr.mxu0 %v101
    %1712 = vmatpush1.msra.mxu0 %v100
    %1713 = vmatprep.subr.mxu0 %v99
    %1714 = vmatpush1.msra.mxu0 %v98
    %1715 = vmatprep.subr.mxu0 %v97
    %1716 = vmatpush1.msra.mxu0 %v96
    %1717 = vmatprep.subr.mxu0 0.0
    %1718 = vmatpush2.msra.mxu0 0.0
    %1719 = vmatprep.subr.mxu0 0.0
    %1720 = vmatpush2.msra.mxu0 0.0
    %1721 = vmatprep.subr.mxu0 0.0
    %1722 = vmatpush2.msra.mxu0 0.0
    %1723 = vmatprep.subr.mxu0 0.0
    %1724 = vmatpush2.msra.mxu0 0.0
    %1725 = vmatprep.subr.mxu0 0.0
    %1726 = vmatpush2.msra.mxu0 0.0
    %1727 = vmatprep.subr.mxu0 0.0
    %1728 = vmatpush2.msra.mxu0 0.0
    %1729 = vmatprep.subr.mxu0 0.0
    %1730 = vmatpush2.msra.mxu0 0.0
    %1731 = vmatprep.subr.mxu0 0.0
    %1732 = vmatpush2.msra.mxu0 0.0
    %1733 = vmatprep.subr.mxu0 0.0
    %1734 = vmatpush2.msra.mxu0 0.0
    %1735 = vmatprep.subr.mxu0 0.0
    %1736 = vmatpush2.msra.mxu0 0.0
    %1737 = vmatprep.subr.mxu0 0.0
    %1738 = vmatpush2.msra.mxu0 0.0
    %1739 = vmatprep.subr.mxu0 0.0
    %1740 = vmatpush2.msra.mxu0 0.0
    %1741 = vmatprep.subr.mxu0 0.0
    %1742 = vmatpush2.msra.mxu0 0.0
    %1743 = vmatprep.subr.mxu0 0.0
    %1744 = vmatpush2.msra.mxu0 0.0
    %1745 = vmatprep.subr.mxu0 0.0
    %1746 = vmatpush2.msra.mxu0 0.0
    %1747 = vmatprep.subr.mxu0 0.0
    %1748 = vmatpush2.msra.mxu0 0.0
    %1749 = vmatprep.mubr.f32.mxu0 0.0
    %1750 = vmatmul.mubr.f32.gmra.mxu0 %v1458
    %v1751 = vpop.f32.mrf.mxu0
    %v1752 = vadd.f32 0.0, %v1751
    %v1753 = vpop.f32.mrf.mxu0
    %v1754 = vadd.f32 0.0, %v1753
    %1755 = vdwg.mxu0
    %v1756 = vadd.f32 %v1683, %v1752
    %v1757 = vadd.f32 %v1684, %v1754
    %v1758 = vxor.u32 %v1756, 2147483648
    %v1759 = vmul.f32 %v1758, 1.442695
    %v1760 = vpow.pop %v1759
    %v1761 = vadd.f32 %v1760, 1.0
    %v1762 = vrcp.pop %v1761
    %v1763 = vmul.f32 1.0, %v1762
    %v1764 = vmul.f32 %v1763, %v1446
    %v1765 = vtanh.pop %v1757
    %v1766 = vmul.f32 %v1763, %v1765
    %1768 = vrot.lane.b32.xlu0 %v1766, 64
    %v1769 = vpop.permute.xlu0 %1768
    %v1771 = vadd.f32 %v1764, %v1769
    %v1772 = vxor.u32 %v1757, 2147483648
    %v1773 = vmul.f32 %v1772, 1.442695
    %v1774 = vpow.pop %v1773
    %v1775 = vadd.f32 %v1774, 1.0
    %v1776 = vrcp.pop %v1775
    %v1777 = vmul.f32 1.0, %v1776
    %v1778 = vtanh.pop %v1771
    %v1779 = vmul.f32 %v1777, %v1778
    %1781 = vrot.lane.b32.xlu0 %v1779, 64
    %v1782 = vpop.permute.xlu0 %1781
    %v1783 = vsel %vm385, %v1782, 0
    %1785 = vmatprep.subr.mxu0 0.0
    %1786 = vmatpush1.msra.mxu0 0.0
    %1787 = vmatprep.subr.mxu0 0.0
    %1788 = vmatpush1.msra.mxu0 0.0
    %1789 = vmatprep.subr.mxu0 0.0
    %1790 = vmatpush1.msra.mxu0 0.0
    %1791 = vmatprep.subr.mxu0 0.0
    %1792 = vmatpush1.msra.mxu0 0.0
    %1793 = vmatprep.subr.mxu0 0.0
    %1794 = vmatpush1.msra.mxu0 0.0
    %1795 = vmatprep.subr.mxu0 0.0
    %1796 = vmatpush1.msra.mxu0 0.0
    %1797 = vmatprep.subr.mxu0 0.0
    %1798 = vmatpush1.msra.mxu0 0.0
    %1799 = vmatprep.subr.mxu0 0.0
    %1800 = vmatpush1.msra.mxu0 0.0
    %1801 = vmatprep.subr.mxu0 0.0
    %1802 = vmatpush1.msra.mxu0 %v119
    %1803 = vmatprep.subr.mxu0 0.0
    %1804 = vmatpush1.msra.mxu0 %v118
    %1805 = vmatprep.subr.mxu0 0.0
    %1806 = vmatpush1.msra.mxu0 %v117
    %1807 = vmatprep.subr.mxu0 0.0
    %1808 = vmatpush1.msra.mxu0 %v116
    %1809 = vmatprep.subr.mxu0 0.0
    %1810 = vmatpush1.msra.mxu0 %v115
    %1811 = vmatprep.subr.mxu0 0.0
    %1812 = vmatpush1.msra.mxu0 %v114
    %1813 = vmatprep.subr.mxu0 0.0
    %1814 = vmatpush1.msra.mxu0 %v113
    %1815 = vmatprep.subr.mxu0 0.0
    %1816 = vmatpush1.msra.mxu0 %v112
    %1817 = vmatprep.subr.mxu0 0.0
    %1818 = vmatpush2.msra.mxu0 0.0
    %1819 = vmatprep.subr.mxu0 0.0
    %1820 = vmatpush2.msra.mxu0 0.0
    %1821 = vmatprep.subr.mxu0 0.0
    %1822 = vmatpush2.msra.mxu0 0.0
    %1823 = vmatprep.subr.mxu0 0.0
    %1824 = vmatpush2.msra.mxu0 0.0
    %1825 = vmatprep.subr.mxu0 0.0
    %1826 = vmatpush2.msra.mxu0 0.0
    %1827 = vmatprep.subr.mxu0 0.0
    %1828 = vmatpush2.msra.mxu0 0.0
    %1829 = vmatprep.subr.mxu0 0.0
    %1830 = vmatpush2.msra.mxu0 0.0
    %1831 = vmatprep.subr.mxu0 0.0
    %1832 = vmatpush2.msra.mxu0 0.0
    %1833 = vmatprep.subr.mxu0 0.0
    %1834 = vmatpush2.msra.mxu0 0.0
    %1835 = vmatprep.subr.mxu0 0.0
    %1836 = vmatpush2.msra.mxu0 0.0
    %1837 = vmatprep.subr.mxu0 0.0
    %1838 = vmatpush2.msra.mxu0 0.0
    %1839 = vmatprep.subr.mxu0 0.0
    %1840 = vmatpush2.msra.mxu0 0.0
    %1841 = vmatprep.subr.mxu0 0.0
    %1842 = vmatpush2.msra.mxu0 0.0
    %1843 = vmatprep.subr.mxu0 0.0
    %1844 = vmatpush2.msra.mxu0 0.0
    %1845 = vmatprep.subr.mxu0 0.0
    %1846 = vmatpush2.msra.mxu0 0.0
    %1847 = vmatprep.subr.mxu0 0.0
    %1848 = vmatpush2.msra.mxu0 0.0
    %1849 = vmatprep.mubr.f32.mxu0 0.0
    %1850 = vmatmul.mubr.f32.gmra.mxu0 %v1783
    %v1851 = vpop.f32.mrf.mxu0
    %v1852 = vadd.f32 %v129, %v1851
    %v1853 = vpop.f32.mrf.mxu0
    %1854 = vdwg.mxu0
    %v1855 = vmax.f32 %v1852, 0.0
    %v1857 = vsel %vm146, %v1855, 0
    %1859 = vmatprep.subr.mxu0 0.0
    %1860 = vmatpush1.msra.mxu0 0.0
    %1861 = vmatprep.subr.mxu0 0.0
    %1862 = vmatpush1.msra.mxu0 0.0
    %1863 = vmatprep.subr.mxu0 0.0
    %1864 = vmatpush1.msra.mxu0 0.0
    %1865 = vmatprep.subr.mxu0 0.0
    %1866 = vmatpush1.msra.mxu0 0.0
    %1867 = vmatprep.subr.mxu0 0.0
    %1868 = vmatpush1.msra.mxu0 0.0
    %1869 = vmatprep.subr.mxu0 0.0
    %1870 = vmatpush1.msra.mxu0 0.0
    %1871 = vmatprep.subr.mxu0 0.0
    %1872 = vmatpush1.msra.mxu0 0.0
    %1873 = vmatprep.subr.mxu0 0.0
    %1874 = vmatpush1.msra.mxu0 0.0
    %1875 = vmatprep.subr.mxu0 0.0
    %1876 = vmatpush1.msra.mxu0 0.0
    %1877 = vmatprep.subr.mxu0 0.0
    %1878 = vmatpush1.msra.mxu0 0.0
    %1879 = vmatprep.subr.mxu0 0.0
    %1880 = vmatpush1.msra.mxu0 0.0
    %1881 = vmatprep.subr.mxu0 0.0
    %1882 = vmatpush1.msra.mxu0 0.0
    %1883 = vmatprep.subr.mxu0 0.0
    %1884 = vmatpush1.msra.mxu0 %v123
    %1885 = vmatprep.subr.mxu0 0.0
    %1886 = vmatpush1.msra.mxu0 %v122
    %1887 = vmatprep.subr.mxu0 0.0
    %1888 = vmatpush1.msra.mxu0 %v121
    %1889 = vmatprep.subr.mxu0 0.0
    %1890 = vmatpush1.msra.mxu0 %v120
    %1891 = vmatprep.subr.mxu0 0.0
    %1892 = vmatpush2.msra.mxu0 0.0
    %1893 = vmatprep.subr.mxu0 0.0
    %1894 = vmatpush2.msra.mxu0 0.0
    %1895 = vmatprep.subr.mxu0 0.0
    %1896 = vmatpush2.msra.mxu0 0.0
    %1897 = vmatprep.subr.mxu0 0.0
    %1898 = vmatpush2.msra.mxu0 0.0
    %1899 = vmatprep.subr.mxu0 0.0
    %1900 = vmatpush2.msra.mxu0 0.0
    %1901 = vmatprep.subr.mxu0 0.0
    %1902 = vmatpush2.msra.mxu0 0.0
    %1903 = vmatprep.subr.mxu0 0.0
    %1904 = vmatpush2.msra.mxu0 0.0
    %1905 = vmatprep.subr.mxu0 0.0
    %1906 = vmatpush2.msra.mxu0 0.0
    %1907 = vmatprep.subr.mxu0 0.0
    %1908 = vmatpush2.msra.mxu0 0.0
    %1909 = vmatprep.subr.mxu0 0.0
    %1910 = vmatpush2.msra.mxu0 0.0
    %1911 = vmatprep.subr.mxu0 0.0
    %1912 = vmatpush2.msra.mxu0 0.0
    %1913 = vmatprep.subr.mxu0 0.0
    %1914 = vmatpush2.msra.mxu0 0.0
    %1915 = vmatprep.subr.mxu0 0.0
    %1916 = vmatpush2.msra.mxu0 0.0
    %1917 = vmatprep.subr.mxu0 0.0
    %1918 = vmatpush2.msra.mxu0 0.0
    %1919 = vmatprep.subr.mxu0 0.0
    %1920 = vmatpush2.msra.mxu0 0.0
    %1921 = vmatprep.subr.mxu0 0.0
    %1922 = vmatpush2.msra.mxu0 0.0
    %1923 = vmatprep.mubr.f32.mxu0 0.0
    %1924 = vmatmul.mubr.f32.gmra.mxu0 %v1857
    %v1925 = vpop.f32.mrf.mxu0
    %v1926 = vadd.f32 %v136, %v1925
    %v1927 = vpop.f32.mrf.mxu0
    %1928 = vdwg.mxu0
    %1930 = vrot.lane.b32.xlu0 %v1926, 64
    %v1931 = vpop.permute.xlu0 %1930
    %vm1933 = vcmask 654848
    %1934 = vst.msk [vmem:[#allocation8] sm:$0xff] %vm1933, %v1931
    %v1935 = vsel %vm309, %v1926, 0
    %1937 = vmatprep.subr.mxu0 0.0
    %1938 = vmatpush1.msra.mxu0 0.0
    %1939 = vmatprep.subr.mxu0 0.0
    %1940 = vmatpush1.msra.mxu0 0.0
    %1941 = vmatprep.subr.mxu0 0.0
    %1942 = vmatpush1.msra.mxu0 0.0
    %1943 = vmatprep.subr.mxu0 0.0
    %1944 = vmatpush1.msra.mxu0 0.0
    %1945 = vmatprep.subr.mxu0 0.0
    %1946 = vmatpush1.msra.mxu0 0.0
    %1947 = vmatprep.subr.mxu0 0.0
    %1948 = vmatpush1.msra.mxu0 0.0
    %1949 = vmatprep.subr.mxu0 0.0
    %1950 = vmatpush1.msra.mxu0 0.0
    %1951 = vmatprep.subr.mxu0 0.0
    %1952 = vmatpush1.msra.mxu0 0.0
    %1953 = vmatprep.subr.mxu0 0.0
    %1954 = vmatpush1.msra.mxu0 0.0
    %1955 = vmatprep.subr.mxu0 0.0
    %1956 = vmatpush1.msra.mxu0 0.0
    %1957 = vmatprep.subr.mxu0 0.0
    %1958 = vmatpush1.msra.mxu0 0.0
    %1959 = vmatprep.subr.mxu0 0.0
    %1960 = vmatpush1.msra.mxu0 0.0
    %1961 = vmatprep.subr.mxu0 0.0
    %1962 = vmatpush1.msra.mxu0 0.0
    %1963 = vmatprep.subr.mxu0 0.0
    %1964 = vmatpush1.msra.mxu0 0.0
    %1965 = vmatprep.subr.mxu0 %v95
    %1966 = vmatpush1.msra.mxu0 %v94
    %1967 = vmatprep.subr.mxu0 %v93
    %1968 = vmatpush1.msra.mxu0 %v92
    %1969 = vmatprep.subr.mxu0 0.0
    %1970 = vmatpush2.msra.mxu0 0.0
    %1971 = vmatprep.subr.mxu0 0.0
    %1972 = vmatpush2.msra.mxu0 0.0
    %1973 = vmatprep.subr.mxu0 0.0
    %1974 = vmatpush2.msra.mxu0 0.0
    %1975 = vmatprep.subr.mxu0 0.0
    %1976 = vmatpush2.msra.mxu0 0.0
    %1977 = vmatprep.subr.mxu0 0.0
    %1978 = vmatpush2.msra.mxu0 0.0
    %1979 = vmatprep.subr.mxu0 0.0
    %1980 = vmatpush2.msra.mxu0 0.0
    %1981 = vmatprep.subr.mxu0 0.0
    %1982 = vmatpush2.msra.mxu0 0.0
    %1983 = vmatprep.subr.mxu0 0.0
    %1984 = vmatpush2.msra.mxu0 0.0
    %1985 = vmatprep.subr.mxu0 0.0
    %1986 = vmatpush2.msra.mxu0 0.0
    %1987 = vmatprep.subr.mxu0 0.0
    %1988 = vmatpush2.msra.mxu0 0.0
    %1989 = vmatprep.subr.mxu0 0.0
    %1990 = vmatpush2.msra.mxu0 0.0
    %1991 = vmatprep.subr.mxu0 0.0
    %1992 = vmatpush2.msra.mxu0 0.0
    %1993 = vmatprep.subr.mxu0 0.0
    %1994 = vmatpush2.msra.mxu0 0.0
    %1995 = vmatprep.subr.mxu0 0.0
    %1996 = vmatpush2.msra.mxu0 0.0
    %1997 = vmatprep.subr.mxu0 0.0
    %1998 = vmatpush2.msra.mxu0 0.0
    %1999 = vmatprep.subr.mxu0 0.0
    %2000 = vmatpush2.msra.mxu0 0.0
    %2001 = vmatprep.mubr.f32.mxu0 0.0
    %2002 = vmatmul.mubr.f32.gmra.mxu0 %v1935
    %v2003 = vpop.f32.mrf.mxu0
    %v2004 = vadd.f32 0.0, %v2003
    %v2005 = vpop.f32.mrf.mxu0
    %v2006 = vadd.f32 0.0, %v2005
    %2007 = vdwg.mxu0
    %v2008 = vadd.f32 %v303, %v2004
    %v2009 = vadd.f32 %v305, %v2006
    %2010 = vmatprep.subr.mxu0 0.0
    %2011 = vmatpush1.msra.mxu0 0.0
    %2012 = vmatprep.subr.mxu0 0.0
    %2013 = vmatpush1.msra.mxu0 0.0
    %2014 = vmatprep.subr.mxu0 0.0
    %2015 = vmatpush1.msra.mxu0 0.0
    %2016 = vmatprep.subr.mxu0 0.0
    %2017 = vmatpush1.msra.mxu0 0.0
    %2018 = vmatprep.subr.mxu0 0.0
    %2019 = vmatpush1.msra.mxu0 0.0
    %2020 = vmatprep.subr.mxu0 0.0
    %2021 = vmatpush1.msra.mxu0 0.0
    %2022 = vmatprep.subr.mxu0 0.0
    %2023 = vmatpush1.msra.mxu0 0.0
    %2024 = vmatprep.subr.mxu0 0.0
    %2025 = vmatpush1.msra.mxu0 0.0
    %2026 = vmatprep.subr.mxu0 %v111
    %2027 = vmatpush1.msra.mxu0 %v110
    %2028 = vmatprep.subr.mxu0 %v109
    %2029 = vmatpush1.msra.mxu0 %v108
    %2030 = vmatprep.subr.mxu0 %v107
    %2031 = vmatpush1.msra.mxu0 %v106
    %2032 = vmatprep.subr.mxu0 %v105
    %2033 = vmatpush1.msra.mxu0 %v104
    %2034 = vmatprep.subr.mxu0 %v103
    %2035 = vmatpush1.msra.mxu0 %v102
    %2036 = vmatprep.subr.mxu0 %v101
    %2037 = vmatpush1.msra.mxu0 %v100
    %2038 = vmatprep.subr.mxu0 %v99
    %2039 = vmatpush1.msra.mxu0 %v98
    %2040 = vmatprep.subr.mxu0 %v97
    %2041 = vmatpush1.msra.mxu0 %v96
    %2042 = vmatprep.subr.mxu0 0.0
    %2043 = vmatpush2.msra.mxu0 0.0
    %2044 = vmatprep.subr.mxu0 0.0
    %2045 = vmatpush2.msra.mxu0 0.0
    %2046 = vmatprep.subr.mxu0 0.0
    %2047 = vmatpush2.msra.mxu0 0.0
    %2048 = vmatprep.subr.mxu0 0.0
    %2049 = vmatpush2.msra.mxu0 0.0
    %2050 = vmatprep.subr.mxu0 0.0
    %2051 = vmatpush2.msra.mxu0 0.0
    %2052 = vmatprep.subr.mxu0 0.0
    %2053 = vmatpush2.msra.mxu0 0.0
    %2054 = vmatprep.subr.mxu0 0.0
    %2055 = vmatpush2.msra.mxu0 0.0
    %2056 = vmatprep.subr.mxu0 0.0
    %2057 = vmatpush2.msra.mxu0 0.0
    %2058 = vmatprep.subr.mxu0 0.0
    %2059 = vmatpush2.msra.mxu0 0.0
    %2060 = vmatprep.subr.mxu0 0.0
    %2061 = vmatpush2.msra.mxu0 0.0
    %2062 = vmatprep.subr.mxu0 0.0
    %2063 = vmatpush2.msra.mxu0 0.0
    %2064 = vmatprep.subr.mxu0 0.0
    %2065 = vmatpush2.msra.mxu0 0.0
    %2066 = vmatprep.subr.mxu0 0.0
    %2067 = vmatpush2.msra.mxu0 0.0
    %2068 = vmatprep.subr.mxu0 0.0
    %2069 = vmatpush2.msra.mxu0 0.0
    %2070 = vmatprep.subr.mxu0 0.0
    %2071 = vmatpush2.msra.mxu0 0.0
    %2072 = vmatprep.subr.mxu0 0.0
    %2073 = vmatpush2.msra.mxu0 0.0
    %2074 = vmatprep.mubr.f32.mxu0 0.0
    %2075 = vmatmul.mubr.f32.gmra.mxu0 %v1783
    %v2076 = vpop.f32.mrf.mxu0
    %v2077 = vadd.f32 0.0, %v2076
    %v2078 = vpop.f32.mrf.mxu0
    %v2079 = vadd.f32 0.0, %v2078
    %2080 = vdwg.mxu0
    %v2081 = vadd.f32 %v2008, %v2077
    %v2082 = vadd.f32 %v2009, %v2079
    %v2083 = vxor.u32 %v2081, 2147483648
    %v2084 = vmul.f32 %v2083, 1.442695
    %v2085 = vpow.pop %v2084
    %v2086 = vadd.f32 %v2085, 1.0
    %v2087 = vrcp.pop %v2086
    %v2088 = vmul.f32 1.0, %v2087
    %v2089 = vmul.f32 %v2088, %v1771
    %v2090 = vtanh.pop %v2082
    %v2091 = vmul.f32 %v2088, %v2090
    %2093 = vrot.lane.b32.xlu0 %v2091, 64
    %v2094 = vpop.permute.xlu0 %2093
    %v2096 = vadd.f32 %v2089, %v2094
    %v2097 = vxor.u32 %v2082, 2147483648
    %v2098 = vmul.f32 %v2097, 1.442695
    %v2099 = vpow.pop %v2098
    %v2100 = vadd.f32 %v2099, 1.0
    %v2101 = vrcp.pop %v2100
    %v2102 = vmul.f32 1.0, %v2101
    %v2103 = vtanh.pop %v2096
    %v2104 = vmul.f32 %v2102, %v2103
    %2106 = vrot.lane.b32.xlu0 %v2104, 64
    %v2107 = vpop.permute.xlu0 %2106
    %v2108 = vsel %vm385, %v2107, 0
    %2110 = vmatprep.subr.mxu0 0.0
    %2111 = vmatpush1.msra.mxu0 0.0
    %2112 = vmatprep.subr.mxu0 0.0
    %2113 = vmatpush1.msra.mxu0 0.0
    %2114 = vmatprep.subr.mxu0 0.0
    %2115 = vmatpush1.msra.mxu0 0.0
    %2116 = vmatprep.subr.mxu0 0.0
    %2117 = vmatpush1.msra.mxu0 0.0
    %2118 = vmatprep.subr.mxu0 0.0
    %2119 = vmatpush1.msra.mxu0 0.0
    %2120 = vmatprep.subr.mxu0 0.0
    %2121 = vmatpush1.msra.mxu0 0.0
    %2122 = vmatprep.subr.mxu0 0.0
    %2123 = vmatpush1.msra.mxu0 0.0
    %2124 = vmatprep.subr.mxu0 0.0
    %2125 = vmatpush1.msra.mxu0 0.0
    %2126 = vmatprep.subr.mxu0 0.0
    %2127 = vmatpush1.msra.mxu0 %v119
    %2128 = vmatprep.subr.mxu0 0.0
    %2129 = vmatpush1.msra.mxu0 %v118
    %2130 = vmatprep.subr.mxu0 0.0
    %2131 = vmatpush1.msra.mxu0 %v117
    %2132 = vmatprep.subr.mxu0 0.0
    %2133 = vmatpush1.msra.mxu0 %v116
    %2134 = vmatprep.subr.mxu0 0.0
    %2135 = vmatpush1.msra.mxu0 %v115
    %2136 = vmatprep.subr.mxu0 0.0
    %2137 = vmatpush1.msra.mxu0 %v114
    %2138 = vmatprep.subr.mxu0 0.0
    %2139 = vmatpush1.msra.mxu0 %v113
    %2140 = vmatprep.subr.mxu0 0.0
    %2141 = vmatpush1.msra.mxu0 %v112
    %2142 = vmatprep.subr.mxu0 0.0
    %2143 = vmatpush2.msra.mxu0 0.0
    %2144 = vmatprep.subr.mxu0 0.0
    %2145 = vmatpush2.msra.mxu0 0.0
    %2146 = vmatprep.subr.mxu0 0.0
    %2147 = vmatpush2.msra.mxu0 0.0
    %2148 = vmatprep.subr.mxu0 0.0
    %2149 = vmatpush2.msra.mxu0 0.0
    %2150 = vmatprep.subr.mxu0 0.0
    %2151 = vmatpush2.msra.mxu0 0.0
    %2152 = vmatprep.subr.mxu0 0.0
    %2153 = vmatpush2.msra.mxu0 0.0
    %2154 = vmatprep.subr.mxu0 0.0
    %2155 = vmatpush2.msra.mxu0 0.0
    %2156 = vmatprep.subr.mxu0 0.0
    %2157 = vmatpush2.msra.mxu0 0.0
    %2158 = vmatprep.subr.mxu0 0.0
    %2159 = vmatpush2.msra.mxu0 0.0
    %2160 = vmatprep.subr.mxu0 0.0
    %2161 = vmatpush2.msra.mxu0 0.0
    %2162 = vmatprep.subr.mxu0 0.0
    %2163 = vmatpush2.msra.mxu0 0.0
    %2164 = vmatprep.subr.mxu0 0.0
    %2165 = vmatpush2.msra.mxu0 0.0
    %2166 = vmatprep.subr.mxu0 0.0
    %2167 = vmatpush2.msra.mxu0 0.0
    %2168 = vmatprep.subr.mxu0 0.0
    %2169 = vmatpush2.msra.mxu0 0.0
    %2170 = vmatprep.subr.mxu0 0.0
    %2171 = vmatpush2.msra.mxu0 0.0
    %2172 = vmatprep.subr.mxu0 0.0
    %2173 = vmatpush2.msra.mxu0 0.0
    %2174 = vmatprep.mubr.f32.mxu0 0.0
    %2175 = vmatmul.mubr.f32.gmra.mxu0 %v2108
    %v2176 = vpop.f32.mrf.mxu0
    %v2177 = vadd.f32 %v129, %v2176
    %v2178 = vpop.f32.mrf.mxu0
    %2179 = vdwg.mxu0
    %v2180 = vmax.f32 %v2177, 0.0
    %v2182 = vsel %vm146, %v2180, 0
    %2184 = vmatprep.subr.mxu0 0.0
    %2185 = vmatpush1.msra.mxu0 0.0
    %2186 = vmatprep.subr.mxu0 0.0
    %2187 = vmatpush1.msra.mxu0 0.0
    %2188 = vmatprep.subr.mxu0 0.0
    %2189 = vmatpush1.msra.mxu0 0.0
    %2190 = vmatprep.subr.mxu0 0.0
    %2191 = vmatpush1.msra.mxu0 0.0
    %2192 = vmatprep.subr.mxu0 0.0
    %2193 = vmatpush1.msra.mxu0 0.0
    %2194 = vmatprep.subr.mxu0 0.0
    %2195 = vmatpush1.msra.mxu0 0.0
    %2196 = vmatprep.subr.mxu0 0.0
    %2197 = vmatpush1.msra.mxu0 0.0
    %2198 = vmatprep.subr.mxu0 0.0
    %2199 = vmatpush1.msra.mxu0 0.0
    %2200 = vmatprep.subr.mxu0 0.0
    %2201 = vmatpush1.msra.mxu0 0.0
    %2202 = vmatprep.subr.mxu0 0.0
    %2203 = vmatpush1.msra.mxu0 0.0
    %2204 = vmatprep.subr.mxu0 0.0
    %2205 = vmatpush1.msra.mxu0 0.0
    %2206 = vmatprep.subr.mxu0 0.0
    %2207 = vmatpush1.msra.mxu0 0.0
    %2208 = vmatprep.subr.mxu0 0.0
    %2209 = vmatpush1.msra.mxu0 %v123
    %2210 = vmatprep.subr.mxu0 0.0
    %2211 = vmatpush1.msra.mxu0 %v122
    %2212 = vmatprep.subr.mxu0 0.0
    %2213 = vmatpush1.msra.mxu0 %v121
    %2214 = vmatprep.subr.mxu0 0.0
    %2215 = vmatpush1.msra.mxu0 %v120
    %2216 = vmatprep.subr.mxu0 0.0
    %2217 = vmatpush2.msra.mxu0 0.0
    %2218 = vmatprep.subr.mxu0 0.0
    %2219 = vmatpush2.msra.mxu0 0.0
    %2220 = vmatprep.subr.mxu0 0.0
    %2221 = vmatpush2.msra.mxu0 0.0
    %2222 = vmatprep.subr.mxu0 0.0
    %2223 = vmatpush2.msra.mxu0 0.0
    %2224 = vmatprep.subr.mxu0 0.0
    %2225 = vmatpush2.msra.mxu0 0.0
    %2226 = vmatprep.subr.mxu0 0.0
    %2227 = vmatpush2.msra.mxu0 0.0
    %2228 = vmatprep.subr.mxu0 0.0
    %2229 = vmatpush2.msra.mxu0 0.0
    %2230 = vmatprep.subr.mxu0 0.0
    %2231 = vmatpush2.msra.mxu0 0.0
    %2232 = vmatprep.subr.mxu0 0.0
    %2233 = vmatpush2.msra.mxu0 0.0
    %2234 = vmatprep.subr.mxu0 0.0
    %2235 = vmatpush2.msra.mxu0 0.0
    %2236 = vmatprep.subr.mxu0 0.0
    %2237 = vmatpush2.msra.mxu0 0.0
    %2238 = vmatprep.subr.mxu0 0.0
    %2239 = vmatpush2.msra.mxu0 0.0
    %2240 = vmatprep.subr.mxu0 0.0
    %2241 = vmatpush2.msra.mxu0 0.0
    %2242 = vmatprep.subr.mxu0 0.0
    %2243 = vmatpush2.msra.mxu0 0.0
    %2244 = vmatprep.subr.mxu0 0.0
    %2245 = vmatpush2.msra.mxu0 0.0
    %2246 = vmatprep.subr.mxu0 0.0
    %2247 = vmatpush2.msra.mxu0 0.0
    %2248 = vmatprep.mubr.f32.mxu0 0.0
    %2249 = vmatmul.mubr.f32.gmra.mxu0 %v2182
    %v2250 = vpop.f32.mrf.mxu0
    %v2251 = vadd.f32 %v136, %v2250
    %v2252 = vpop.f32.mrf.mxu0
    %2253 = vdwg.mxu0
    %2255 = vrot.lane.b32.xlu0 %v2251, 80
    %v2256 = vpop.permute.xlu0 %2255
    %vm2258 = vcmask 786048
    %2259 = vst.msk [vmem:[#allocation8] sm:$0xff] %vm2258, %v2256
    %v2260 = vsel %vm309, %v2251, 0
    %2262 = vmatprep.subr.mxu0 0.0
    %2263 = vmatpush1.msra.mxu0 0.0
    %2264 = vmatprep.subr.mxu0 0.0
    %2265 = vmatpush1.msra.mxu0 0.0
    %2266 = vmatprep.subr.mxu0 0.0
    %2267 = vmatpush1.msra.mxu0 0.0
    %2268 = vmatprep.subr.mxu0 0.0
    %2269 = vmatpush1.msra.mxu0 0.0
    %2270 = vmatprep.subr.mxu0 0.0
    %2271 = vmatpush1.msra.mxu0 0.0
    %2272 = vmatprep.subr.mxu0 0.0
    %2273 = vmatpush1.msra.mxu0 0.0
    %2274 = vmatprep.subr.mxu0 0.0
    %2275 = vmatpush1.msra.mxu0 0.0
    %2276 = vmatprep.subr.mxu0 0.0
    %2277 = vmatpush1.msra.mxu0 0.0
    %2278 = vmatprep.subr.mxu0 0.0
    %2279 = vmatpush1.msra.mxu0 0.0
    %2280 = vmatprep.subr.mxu0 0.0
    %2281 = vmatpush1.msra.mxu0 0.0
    %2282 = vmatprep.subr.mxu0 0.0
    %2283 = vmatpush1.msra.mxu0 0.0
    %2284 = vmatprep.subr.mxu0 0.0
    %2285 = vmatpush1.msra.mxu0 0.0
    %2286 = vmatprep.subr.mxu0 0.0
    %2287 = vmatpush1.msra.mxu0 0.0
    %2288 = vmatprep.subr.mxu0 0.0
    %2289 = vmatpush1.msra.mxu0 0.0
    %2290 = vmatprep.subr.mxu0 %v95
    %2291 = vmatpush1.msra.mxu0 %v94
    %2292 = vmatprep.subr.mxu0 %v93
    %2293 = vmatpush1.msra.mxu0 %v92
    %2294 = vmatprep.subr.mxu0 0.0
    %2295 = vmatpush2.msra.mxu0 0.0
    %2296 = vmatprep.subr.mxu0 0.0
    %2297 = vmatpush2.msra.mxu0 0.0
    %2298 = vmatprep.subr.mxu0 0.0
    %2299 = vmatpush2.msra.mxu0 0.0
    %2300 = vmatprep.subr.mxu0 0.0
    %2301 = vmatpush2.msra.mxu0 0.0
    %2302 = vmatprep.subr.mxu0 0.0
    %2303 = vmatpush2.msra.mxu0 0.0
    %2304 = vmatprep.subr.mxu0 0.0
    %2305 = vmatpush2.msra.mxu0 0.0
    %2306 = vmatprep.subr.mxu0 0.0
    %2307 = vmatpush2.msra.mxu0 0.0
    %2308 = vmatprep.subr.mxu0 0.0
    %2309 = vmatpush2.msra.mxu0 0.0
    %2310 = vmatprep.subr.mxu0 0.0
    %2311 = vmatpush2.msra.mxu0 0.0
    %2312 = vmatprep.subr.mxu0 0.0
    %2313 = vmatpush2.msra.mxu0 0.0
    %2314 = vmatprep.subr.mxu0 0.0
    %2315 = vmatpush2.msra.mxu0 0.0
    %2316 = vmatprep.subr.mxu0 0.0
    %2317 = vmatpush2.msra.mxu0 0.0
    %2318 = vmatprep.subr.mxu0 0.0
    %2319 = vmatpush2.msra.mxu0 0.0
    %2320 = vmatprep.subr.mxu0 0.0
    %2321 = vmatpush2.msra.mxu0 0.0
    %2322 = vmatprep.subr.mxu0 0.0
    %2323 = vmatpush2.msra.mxu0 0.0
    %2324 = vmatprep.subr.mxu0 0.0
    %2325 = vmatpush2.msra.mxu0 0.0
    %2326 = vmatprep.mubr.f32.mxu0 0.0
    %2327 = vmatmul.mubr.f32.gmra.mxu0 %v2260
    %v2328 = vpop.f32.mrf.mxu0
    %v2329 = vadd.f32 0.0, %v2328
    %v2330 = vpop.f32.mrf.mxu0
    %v2331 = vadd.f32 0.0, %v2330
    %2332 = vdwg.mxu0
    %v2333 = vadd.f32 %v303, %v2329
    %v2334 = vadd.f32 %v305, %v2331
    %2335 = vmatprep.subr.mxu0 0.0
    %2336 = vmatpush1.msra.mxu0 0.0
    %2337 = vmatprep.subr.mxu0 0.0
    %2338 = vmatpush1.msra.mxu0 0.0
    %2339 = vmatprep.subr.mxu0 0.0
    %2340 = vmatpush1.msra.mxu0 0.0
    %2341 = vmatprep.subr.mxu0 0.0
    %2342 = vmatpush1.msra.mxu0 0.0
    %2343 = vmatprep.subr.mxu0 0.0
    %2344 = vmatpush1.msra.mxu0 0.0
    %2345 = vmatprep.subr.mxu0 0.0
    %2346 = vmatpush1.msra.mxu0 0.0
    %2347 = vmatprep.subr.mxu0 0.0
    %2348 = vmatpush1.msra.mxu0 0.0
    %2349 = vmatprep.subr.mxu0 0.0
    %2350 = vmatpush1.msra.mxu0 0.0
    %2351 = vmatprep.subr.mxu0 %v111
    %2352 = vmatpush1.msra.mxu0 %v110
    %2353 = vmatprep.subr.mxu0 %v109
    %2354 = vmatpush1.msra.mxu0 %v108
    %2355 = vmatprep.subr.mxu0 %v107
    %2356 = vmatpush1.msra.mxu0 %v106
    %2357 = vmatprep.subr.mxu0 %v105
    %2358 = vmatpush1.msra.mxu0 %v104
    %2359 = vmatprep.subr.mxu0 %v103
    %2360 = vmatpush1.msra.mxu0 %v102
    %2361 = vmatprep.subr.mxu0 %v101
    %2362 = vmatpush1.msra.mxu0 %v100
    %2363 = vmatprep.subr.mxu0 %v99
    %2364 = vmatpush1.msra.mxu0 %v98
    %2365 = vmatprep.subr.mxu0 %v97
    %2366 = vmatpush1.msra.mxu0 %v96
    %2367 = vmatprep.subr.mxu0 0.0
    %2368 = vmatpush2.msra.mxu0 0.0
    %2369 = vmatprep.subr.mxu0 0.0
    %2370 = vmatpush2.msra.mxu0 0.0
    %2371 = vmatprep.subr.mxu0 0.0
    %2372 = vmatpush2.msra.mxu0 0.0
    %2373 = vmatprep.subr.mxu0 0.0
    %2374 = vmatpush2.msra.mxu0 0.0
    %2375 = vmatprep.subr.mxu0 0.0
    %2376 = vmatpush2.msra.mxu0 0.0
    %2377 = vmatprep.subr.mxu0 0.0
    %2378 = vmatpush2.msra.mxu0 0.0
    %2379 = vmatprep.subr.mxu0 0.0
    %2380 = vmatpush2.msra.mxu0 0.0
    %2381 = vmatprep.subr.mxu0 0.0
    %2382 = vmatpush2.msra.mxu0 0.0
    %2383 = vmatprep.subr.mxu0 0.0
    %2384 = vmatpush2.msra.mxu0 0.0
    %2385 = vmatprep.subr.mxu0 0.0
    %2386 = vmatpush2.msra.mxu0 0.0
    %2387 = vmatprep.subr.mxu0 0.0
    %2388 = vmatpush2.msra.mxu0 0.0
    %2389 = vmatprep.subr.mxu0 0.0
    %2390 = vmatpush2.msra.mxu0 0.0
    %2391 = vmatprep.subr.mxu0 0.0
    %2392 = vmatpush2.msra.mxu0 0.0
    %2393 = vmatprep.subr.mxu0 0.0
    %2394 = vmatpush2.msra.mxu0 0.0
    %2395 = vmatprep.subr.mxu0 0.0
    %2396 = vmatpush2.msra.mxu0 0.0
    %2397 = vmatprep.subr.mxu0 0.0
    %2398 = vmatpush2.msra.mxu0 0.0
    %2399 = vmatprep.mubr.f32.mxu0 0.0
    %2400 = vmatmul.mubr.f32.gmra.mxu0 %v2108
    %v2401 = vpop.f32.mrf.mxu0
    %v2402 = vadd.f32 0.0, %v2401
    %v2403 = vpop.f32.mrf.mxu0
    %v2404 = vadd.f32 0.0, %v2403
    %2405 = vdwg.mxu0
    %v2406 = vadd.f32 %v2333, %v2402
    %v2407 = vadd.f32 %v2334, %v2404
    %v2408 = vxor.u32 %v2406, 2147483648
    %v2409 = vmul.f32 %v2408, 1.442695
    %v2410 = vpow.pop %v2409
    %v2411 = vadd.f32 %v2410, 1.0
    %v2412 = vrcp.pop %v2411
    %v2413 = vmul.f32 1.0, %v2412
    %v2414 = vmul.f32 %v2413, %v2096
    %v2415 = vtanh.pop %v2407
    %v2416 = vmul.f32 %v2413, %v2415
    %2418 = vrot.lane.b32.xlu0 %v2416, 64
    %v2419 = vpop.permute.xlu0 %2418
    %v2421 = vadd.f32 %v2414, %v2419
    %v2422 = vxor.u32 %v2407, 2147483648
    %v2423 = vmul.f32 %v2422, 1.442695
    %v2424 = vpow.pop %v2423
    %v2425 = vadd.f32 %v2424, 1.0
    %v2426 = vrcp.pop %v2425
    %v2427 = vmul.f32 1.0, %v2426
    %v2428 = vtanh.pop %v2421
    %v2429 = vmul.f32 %v2427, %v2428
    %2431 = vrot.lane.b32.xlu0 %v2429, 64
    %v2432 = vpop.permute.xlu0 %2431
    %v2433 = vsel %vm385, %v2432, 0
    %2435 = vmatprep.subr.mxu0 0.0
    %2436 = vmatpush1.msra.mxu0 0.0
    %2437 = vmatprep.subr.mxu0 0.0
    %2438 = vmatpush1.msra.mxu0 0.0
    %2439 = vmatprep.subr.mxu0 0.0
    %2440 = vmatpush1.msra.mxu0 0.0
    %2441 = vmatprep.subr.mxu0 0.0
    %2442 = vmatpush1.msra.mxu0 0.0
    %2443 = vmatprep.subr.mxu0 0.0
    %2444 = vmatpush1.msra.mxu0 0.0
    %2445 = vmatprep.subr.mxu0 0.0
    %2446 = vmatpush1.msra.mxu0 0.0
    %2447 = vmatprep.subr.mxu0 0.0
    %2448 = vmatpush1.msra.mxu0 0.0
    %2449 = vmatprep.subr.mxu0 0.0
    %2450 = vmatpush1.msra.mxu0 0.0
    %2451 = vmatprep.subr.mxu0 0.0
    %2452 = vmatpush1.msra.mxu0 %v119
    %2453 = vmatprep.subr.mxu0 0.0
    %2454 = vmatpush1.msra.mxu0 %v118
    %2455 = vmatprep.subr.mxu0 0.0
    %2456 = vmatpush1.msra.mxu0 %v117
    %2457 = vmatprep.subr.mxu0 0.0
    %2458 = vmatpush1.msra.mxu0 %v116
    %2459 = vmatprep.subr.mxu0 0.0
    %2460 = vmatpush1.msra.mxu0 %v115
    %2461 = vmatprep.subr.mxu0 0.0
    %2462 = vmatpush1.msra.mxu0 %v114
    %2463 = vmatprep.subr.mxu0 0.0
    %2464 = vmatpush1.msra.mxu0 %v113
    %2465 = vmatprep.subr.mxu0 0.0
    %2466 = vmatpush1.msra.mxu0 %v112
    %2467 = vmatprep.subr.mxu0 0.0
    %2468 = vmatpush2.msra.mxu0 0.0
    %2469 = vmatprep.subr.mxu0 0.0
    %2470 = vmatpush2.msra.mxu0 0.0
    %2471 = vmatprep.subr.mxu0 0.0
    %2472 = vmatpush2.msra.mxu0 0.0
    %2473 = vmatprep.subr.mxu0 0.0
    %2474 = vmatpush2.msra.mxu0 0.0
    %2475 = vmatprep.subr.mxu0 0.0
    %2476 = vmatpush2.msra.mxu0 0.0
    %2477 = vmatprep.subr.mxu0 0.0
    %2478 = vmatpush2.msra.mxu0 0.0
    %2479 = vmatprep.subr.mxu0 0.0
    %2480 = vmatpush2.msra.mxu0 0.0
    %2481 = vmatprep.subr.mxu0 0.0
    %2482 = vmatpush2.msra.mxu0 0.0
    %2483 = vmatprep.subr.mxu0 0.0
    %2484 = vmatpush2.msra.mxu0 0.0
    %2485 = vmatprep.subr.mxu0 0.0
    %2486 = vmatpush2.msra.mxu0 0.0
    %2487 = vmatprep.subr.mxu0 0.0
    %2488 = vmatpush2.msra.mxu0 0.0
    %2489 = vmatprep.subr.mxu0 0.0
    %2490 = vmatpush2.msra.mxu0 0.0
    %2491 = vmatprep.subr.mxu0 0.0
    %2492 = vmatpush2.msra.mxu0 0.0
    %2493 = vmatprep.subr.mxu0 0.0
    %2494 = vmatpush2.msra.mxu0 0.0
    %2495 = vmatprep.subr.mxu0 0.0
    %2496 = vmatpush2.msra.mxu0 0.0
    %2497 = vmatprep.subr.mxu0 0.0
    %2498 = vmatpush2.msra.mxu0 0.0
    %2499 = vmatprep.mubr.f32.mxu0 0.0
    %2500 = vmatmul.mubr.f32.gmra.mxu0 %v2433
    %v2501 = vpop.f32.mrf.mxu0
    %v2502 = vadd.f32 %v129, %v2501
    %v2503 = vpop.f32.mrf.mxu0
    %2504 = vdwg.mxu0
    %v2505 = vmax.f32 %v2502, 0.0
    %v2507 = vsel %vm146, %v2505, 0
    %2509 = vmatprep.subr.mxu0 0.0
    %2510 = vmatpush1.msra.mxu0 0.0
    %2511 = vmatprep.subr.mxu0 0.0
    %2512 = vmatpush1.msra.mxu0 0.0
    %2513 = vmatprep.subr.mxu0 0.0
    %2514 = vmatpush1.msra.mxu0 0.0
    %2515 = vmatprep.subr.mxu0 0.0
    %2516 = vmatpush1.msra.mxu0 0.0
    %2517 = vmatprep.subr.mxu0 0.0
    %2518 = vmatpush1.msra.mxu0 0.0
    %2519 = vmatprep.subr.mxu0 0.0
    %2520 = vmatpush1.msra.mxu0 0.0
    %2521 = vmatprep.subr.mxu0 0.0
    %2522 = vmatpush1.msra.mxu0 0.0
    %2523 = vmatprep.subr.mxu0 0.0
    %2524 = vmatpush1.msra.mxu0 0.0
    %2525 = vmatprep.subr.mxu0 0.0
    %2526 = vmatpush1.msra.mxu0 0.0
    %2527 = vmatprep.subr.mxu0 0.0
    %2528 = vmatpush1.msra.mxu0 0.0
    %2529 = vmatprep.subr.mxu0 0.0
    %2530 = vmatpush1.msra.mxu0 0.0
    %2531 = vmatprep.subr.mxu0 0.0
    %2532 = vmatpush1.msra.mxu0 0.0
    %2533 = vmatprep.subr.mxu0 0.0
    %2534 = vmatpush1.msra.mxu0 %v123
    %2535 = vmatprep.subr.mxu0 0.0
    %2536 = vmatpush1.msra.mxu0 %v122
    %2537 = vmatprep.subr.mxu0 0.0
    %2538 = vmatpush1.msra.mxu0 %v121
    %2539 = vmatprep.subr.mxu0 0.0
    %2540 = vmatpush1.msra.mxu0 %v120
    %2541 = vmatprep.subr.mxu0 0.0
    %2542 = vmatpush2.msra.mxu0 0.0
    %2543 = vmatprep.subr.mxu0 0.0
    %2544 = vmatpush2.msra.mxu0 0.0
    %2545 = vmatprep.subr.mxu0 0.0
    %2546 = vmatpush2.msra.mxu0 0.0
    %2547 = vmatprep.subr.mxu0 0.0
    %2548 = vmatpush2.msra.mxu0 0.0
    %2549 = vmatprep.subr.mxu0 0.0
    %2550 = vmatpush2.msra.mxu0 0.0
    %2551 = vmatprep.subr.mxu0 0.0
    %2552 = vmatpush2.msra.mxu0 0.0
    %2553 = vmatprep.subr.mxu0 0.0
    %2554 = vmatpush2.msra.mxu0 0.0
    %2555 = vmatprep.subr.mxu0 0.0
    %2556 = vmatpush2.msra.mxu0 0.0
    %2557 = vmatprep.subr.mxu0 0.0
    %2558 = vmatpush2.msra.mxu0 0.0
    %2559 = vmatprep.subr.mxu0 0.0
    %2560 = vmatpush2.msra.mxu0 0.0
    %2561 = vmatprep.subr.mxu0 0.0
    %2562 = vmatpush2.msra.mxu0 0.0
    %2563 = vmatprep.subr.mxu0 0.0
    %2564 = vmatpush2.msra.mxu0 0.0
    %2565 = vmatprep.subr.mxu0 0.0
    %2566 = vmatpush2.msra.mxu0 0.0
    %2567 = vmatprep.subr.mxu0 0.0
    %2568 = vmatpush2.msra.mxu0 0.0
    %2569 = vmatprep.subr.mxu0 0.0
    %2570 = vmatpush2.msra.mxu0 0.0
    %2571 = vmatprep.subr.mxu0 0.0
    %2572 = vmatpush2.msra.mxu0 0.0
    %2573 = vmatprep.mubr.f32.mxu0 0.0
    %2574 = vmatmul.mubr.f32.gmra.mxu0 %v2507
    %v2575 = vpop.f32.mrf.mxu0
    %v2576 = vadd.f32 %v136, %v2575
    %v2577 = vpop.f32.mrf.mxu0
    %2578 = vdwg.mxu0
    %2580 = vrot.lane.b32.xlu0 %v2576, 96
    %v2581 = vpop.permute.xlu0 %2580
    %vm2583 = vcmask 917248
    %2584 = vst.msk [vmem:[#allocation8] sm:$0xff] %vm2583, %v2581
    %v2585 = vsel %vm309, %v2576, 0
    %2587 = vmatprep.subr.mxu0 0.0
    %2588 = vmatpush1.msra.mxu0 0.0
    %2589 = vmatprep.subr.mxu0 0.0
    %2590 = vmatpush1.msra.mxu0 0.0
    %2591 = vmatprep.subr.mxu0 0.0
    %2592 = vmatpush1.msra.mxu0 0.0
    %2593 = vmatprep.subr.mxu0 0.0
    %2594 = vmatpush1.msra.mxu0 0.0
    %2595 = vmatprep.subr.mxu0 0.0
    %2596 = vmatpush1.msra.mxu0 0.0
    %2597 = vmatprep.subr.mxu0 0.0
    %2598 = vmatpush1.msra.mxu0 0.0
    %2599 = vmatprep.subr.mxu0 0.0
    %2600 = vmatpush1.msra.mxu0 0.0
    %2601 = vmatprep.subr.mxu0 0.0
    %2602 = vmatpush1.msra.mxu0 0.0
    %2603 = vmatprep.subr.mxu0 0.0
    %2604 = vmatpush1.msra.mxu0 0.0
    %2605 = vmatprep.subr.mxu0 0.0
    %2606 = vmatpush1.msra.mxu0 0.0
    %2607 = vmatprep.subr.mxu0 0.0
    %2608 = vmatpush1.msra.mxu0 0.0
    %2609 = vmatprep.subr.mxu0 0.0
    %2610 = vmatpush1.msra.mxu0 0.0
    %2611 = vmatprep.subr.mxu0 0.0
    %2612 = vmatpush1.msra.mxu0 0.0
    %2613 = vmatprep.subr.mxu0 0.0
    %2614 = vmatpush1.msra.mxu0 0.0
    %2615 = vmatprep.subr.mxu0 %v95
    %2616 = vmatpush1.msra.mxu0 %v94
    %2617 = vmatprep.subr.mxu0 %v93
    %2618 = vmatpush1.msra.mxu0 %v92
    %2619 = vmatprep.subr.mxu0 0.0
    %2620 = vmatpush2.msra.mxu0 0.0
    %2621 = vmatprep.subr.mxu0 0.0
    %2622 = vmatpush2.msra.mxu0 0.0
    %2623 = vmatprep.subr.mxu0 0.0
    %2624 = vmatpush2.msra.mxu0 0.0
    %2625 = vmatprep.subr.mxu0 0.0
    %2626 = vmatpush2.msra.mxu0 0.0
    %2627 = vmatprep.subr.mxu0 0.0
    %2628 = vmatpush2.msra.mxu0 0.0
    %2629 = vmatprep.subr.mxu0 0.0
    %2630 = vmatpush2.msra.mxu0 0.0
    %2631 = vmatprep.subr.mxu0 0.0
    %2632 = vmatpush2.msra.mxu0 0.0
    %2633 = vmatprep.subr.mxu0 0.0
    %2634 = vmatpush2.msra.mxu0 0.0
    %2635 = vmatprep.subr.mxu0 0.0
    %2636 = vmatpush2.msra.mxu0 0.0
    %2637 = vmatprep.subr.mxu0 0.0
    %2638 = vmatpush2.msra.mxu0 0.0
    %2639 = vmatprep.subr.mxu0 0.0
    %2640 = vmatpush2.msra.mxu0 0.0
    %2641 = vmatprep.subr.mxu0 0.0
    %2642 = vmatpush2.msra.mxu0 0.0
    %2643 = vmatprep.subr.mxu0 0.0
    %2644 = vmatpush2.msra.mxu0 0.0
    %2645 = vmatprep.subr.mxu0 0.0
    %2646 = vmatpush2.msra.mxu0 0.0
    %2647 = vmatprep.subr.mxu0 0.0
    %2648 = vmatpush2.msra.mxu0 0.0
    %2649 = vmatprep.subr.mxu0 0.0
    %2650 = vmatpush2.msra.mxu0 0.0
    %2651 = vmatprep.mubr.f32.mxu0 0.0
    %2652 = vmatmul.mubr.f32.gmra.mxu0 %v2585
    %v2653 = vpop.f32.mrf.mxu0
    %v2654 = vadd.f32 0.0, %v2653
    %v2655 = vpop.f32.mrf.mxu0
    %v2656 = vadd.f32 0.0, %v2655
    %2657 = vdwg.mxu0
    %v2658 = vadd.f32 %v303, %v2654
    %v2659 = vadd.f32 %v305, %v2656
    %2660 = vmatprep.subr.mxu0 0.0
    %2661 = vmatpush1.msra.mxu0 0.0
    %2662 = vmatprep.subr.mxu0 0.0
    %2663 = vmatpush1.msra.mxu0 0.0
    %2664 = vmatprep.subr.mxu0 0.0
    %2665 = vmatpush1.msra.mxu0 0.0
    %2666 = vmatprep.subr.mxu0 0.0
    %2667 = vmatpush1.msra.mxu0 0.0
    %2668 = vmatprep.subr.mxu0 0.0
    %2669 = vmatpush1.msra.mxu0 0.0
    %2670 = vmatprep.subr.mxu0 0.0
    %2671 = vmatpush1.msra.mxu0 0.0
    %2672 = vmatprep.subr.mxu0 0.0
    %2673 = vmatpush1.msra.mxu0 0.0
    %2674 = vmatprep.subr.mxu0 0.0
    %2675 = vmatpush1.msra.mxu0 0.0
    %2676 = vmatprep.subr.mxu0 %v111
    %2677 = vmatpush1.msra.mxu0 %v110
    %2678 = vmatprep.subr.mxu0 %v109
    %2679 = vmatpush1.msra.mxu0 %v108
    %2680 = vmatprep.subr.mxu0 %v107
    %2681 = vmatpush1.msra.mxu0 %v106
    %2682 = vmatprep.subr.mxu0 %v105
    %2683 = vmatpush1.msra.mxu0 %v104
    %2684 = vmatprep.subr.mxu0 %v103
    %2685 = vmatpush1.msra.mxu0 %v102
    %2686 = vmatprep.subr.mxu0 %v101
    %2687 = vmatpush1.msra.mxu0 %v100
    %2688 = vmatprep.subr.mxu0 %v99
    %2689 = vmatpush1.msra.mxu0 %v98
    %2690 = vmatprep.subr.mxu0 %v97
    %2691 = vmatpush1.msra.mxu0 %v96
    %2692 = vmatprep.subr.mxu0 0.0
    %2693 = vmatpush2.msra.mxu0 0.0
    %2694 = vmatprep.subr.mxu0 0.0
    %2695 = vmatpush2.msra.mxu0 0.0
    %2696 = vmatprep.subr.mxu0 0.0
    %2697 = vmatpush2.msra.mxu0 0.0
    %2698 = vmatprep.subr.mxu0 0.0
    %2699 = vmatpush2.msra.mxu0 0.0
    %2700 = vmatprep.subr.mxu0 0.0
    %2701 = vmatpush2.msra.mxu0 0.0
    %2702 = vmatprep.subr.mxu0 0.0
    %2703 = vmatpush2.msra.mxu0 0.0
    %2704 = vmatprep.subr.mxu0 0.0
    %2705 = vmatpush2.msra.mxu0 0.0
    %2706 = vmatprep.subr.mxu0 0.0
    %2707 = vmatpush2.msra.mxu0 0.0
    %2708 = vmatprep.subr.mxu0 0.0
    %2709 = vmatpush2.msra.mxu0 0.0
    %2710 = vmatprep.subr.mxu0 0.0
    %2711 = vmatpush2.msra.mxu0 0.0
    %2712 = vmatprep.subr.mxu0 0.0
    %2713 = vmatpush2.msra.mxu0 0.0
    %2714 = vmatprep.subr.mxu0 0.0
    %2715 = vmatpush2.msra.mxu0 0.0
    %2716 = vmatprep.subr.mxu0 0.0
    %2717 = vmatpush2.msra.mxu0 0.0
    %2718 = vmatprep.subr.mxu0 0.0
    %2719 = vmatpush2.msra.mxu0 0.0
    %2720 = vmatprep.subr.mxu0 0.0
    %2721 = vmatpush2.msra.mxu0 0.0
    %2722 = vmatprep.subr.mxu0 0.0
    %2723 = vmatpush2.msra.mxu0 0.0
    %2724 = vmatprep.mubr.f32.mxu0 0.0
    %2725 = vmatmul.mubr.f32.gmra.mxu0 %v2433
    %v2726 = vpop.f32.mrf.mxu0
    %v2727 = vadd.f32 0.0, %v2726
    %v2728 = vpop.f32.mrf.mxu0
    %v2729 = vadd.f32 0.0, %v2728
    %2730 = vdwg.mxu0
    %v2731 = vadd.f32 %v2658, %v2727
    %v2732 = vadd.f32 %v2659, %v2729
    %v2733 = vxor.u32 %v2731, 2147483648
    %v2734 = vmul.f32 %v2733, 1.442695
    %v2735 = vpow.pop %v2734
    %v2736 = vadd.f32 %v2735, 1.0
    %v2737 = vrcp.pop %v2736
    %v2738 = vmul.f32 1.0, %v2737
    %v2739 = vmul.f32 %v2738, %v2421
    %v2740 = vtanh.pop %v2732
    %v2741 = vmul.f32 %v2738, %v2740
    %2743 = vrot.lane.b32.xlu0 %v2741, 64
    %v2744 = vpop.permute.xlu0 %2743
    %v2746 = vadd.f32 %v2739, %v2744
    %v2747 = vxor.u32 %v2732, 2147483648
    %v2748 = vmul.f32 %v2747, 1.442695
    %v2749 = vpow.pop %v2748
    %v2750 = vadd.f32 %v2749, 1.0
    %v2751 = vrcp.pop %v2750
    %v2752 = vmul.f32 1.0, %v2751
    %v2753 = vtanh.pop %v2746
    %v2754 = vmul.f32 %v2752, %v2753
    %2756 = vrot.lane.b32.xlu0 %v2754, 64
    %v2757 = vpop.permute.xlu0 %2756
    %v2758 = vsel %vm385, %v2757, 0
    %2760 = vmatprep.subr.mxu0 0.0
    %2761 = vmatpush1.msra.mxu0 0.0
    %2762 = vmatprep.subr.mxu0 0.0
    %2763 = vmatpush1.msra.mxu0 0.0
    %2764 = vmatprep.subr.mxu0 0.0
    %2765 = vmatpush1.msra.mxu0 0.0
    %2766 = vmatprep.subr.mxu0 0.0
    %2767 = vmatpush1.msra.mxu0 0.0
    %2768 = vmatprep.subr.mxu0 0.0
    %2769 = vmatpush1.msra.mxu0 0.0
    %2770 = vmatprep.subr.mxu0 0.0
    %2771 = vmatpush1.msra.mxu0 0.0
    %2772 = vmatprep.subr.mxu0 0.0
    %2773 = vmatpush1.msra.mxu0 0.0
    %2774 = vmatprep.subr.mxu0 0.0
    %2775 = vmatpush1.msra.mxu0 0.0
    %2776 = vmatprep.subr.mxu0 0.0
    %2777 = vmatpush1.msra.mxu0 %v119
    %2778 = vmatprep.subr.mxu0 0.0
    %2779 = vmatpush1.msra.mxu0 %v118
    %2780 = vmatprep.subr.mxu0 0.0
    %2781 = vmatpush1.msra.mxu0 %v117
    %2782 = vmatprep.subr.mxu0 0.0
    %2783 = vmatpush1.msra.mxu0 %v116
    %2784 = vmatprep.subr.mxu0 0.0
    %2785 = vmatpush1.msra.mxu0 %v115
    %2786 = vmatprep.subr.mxu0 0.0
    %2787 = vmatpush1.msra.mxu0 %v114
    %2788 = vmatprep.subr.mxu0 0.0
    %2789 = vmatpush1.msra.mxu0 %v113
    %2790 = vmatprep.subr.mxu0 0.0
    %2791 = vmatpush1.msra.mxu0 %v112
    %2792 = vmatprep.subr.mxu0 0.0
    %2793 = vmatpush2.msra.mxu0 0.0
    %2794 = vmatprep.subr.mxu0 0.0
    %2795 = vmatpush2.msra.mxu0 0.0
    %2796 = vmatprep.subr.mxu0 0.0
    %2797 = vmatpush2.msra.mxu0 0.0
    %2798 = vmatprep.subr.mxu0 0.0
    %2799 = vmatpush2.msra.mxu0 0.0
    %2800 = vmatprep.subr.mxu0 0.0
    %2801 = vmatpush2.msra.mxu0 0.0
    %2802 = vmatprep.subr.mxu0 0.0
    %2803 = vmatpush2.msra.mxu0 0.0
    %2804 = vmatprep.subr.mxu0 0.0
    %2805 = vmatpush2.msra.mxu0 0.0
    %2806 = vmatprep.subr.mxu0 0.0
    %2807 = vmatpush2.msra.mxu0 0.0
    %2808 = vmatprep.subr.mxu0 0.0
    %2809 = vmatpush2.msra.mxu0 0.0
    %2810 = vmatprep.subr.mxu0 0.0
    %2811 = vmatpush2.msra.mxu0 0.0
    %2812 = vmatprep.subr.mxu0 0.0
    %2813 = vmatpush2.msra.mxu0 0.0
    %2814 = vmatprep.subr.mxu0 0.0
    %2815 = vmatpush2.msra.mxu0 0.0
    %2816 = vmatprep.subr.mxu0 0.0
    %2817 = vmatpush2.msra.mxu0 0.0
    %2818 = vmatprep.subr.mxu0 0.0
    %2819 = vmatpush2.msra.mxu0 0.0
    %2820 = vmatprep.subr.mxu0 0.0
    %2821 = vmatpush2.msra.mxu0 0.0
    %2822 = vmatprep.subr.mxu0 0.0
    %2823 = vmatpush2.msra.mxu0 0.0
    %2824 = vmatprep.mubr.f32.mxu0 0.0
    %2825 = vmatmul.mubr.f32.gmra.mxu0 %v2758
    %v2826 = vpop.f32.mrf.mxu0
    %v2827 = vadd.f32 %v129, %v2826
    %v2828 = vpop.f32.mrf.mxu0
    %2829 = vdwg.mxu0
    %v2830 = vmax.f32 %v2827, 0.0
    %v2832 = vsel %vm146, %v2830, 0
    %2834 = vmatprep.subr.mxu0 0.0
    %2835 = vmatpush1.msra.mxu0 0.0
    %2836 = vmatprep.subr.mxu0 0.0
    %2837 = vmatpush1.msra.mxu0 0.0
    %2838 = vmatprep.subr.mxu0 0.0
    %2839 = vmatpush1.msra.mxu0 0.0
    %2840 = vmatprep.subr.mxu0 0.0
    %2841 = vmatpush1.msra.mxu0 0.0
    %2842 = vmatprep.subr.mxu0 0.0
    %2843 = vmatpush1.msra.mxu0 0.0
    %2844 = vmatprep.subr.mxu0 0.0
    %2845 = vmatpush1.msra.mxu0 0.0
    %2846 = vmatprep.subr.mxu0 0.0
    %2847 = vmatpush1.msra.mxu0 0.0
    %2848 = vmatprep.subr.mxu0 0.0
    %2849 = vmatpush1.msra.mxu0 0.0
    %2850 = vmatprep.subr.mxu0 0.0
    %2851 = vmatpush1.msra.mxu0 0.0
    %2852 = vmatprep.subr.mxu0 0.0
    %2853 = vmatpush1.msra.mxu0 0.0
    %2854 = vmatprep.subr.mxu0 0.0
    %2855 = vmatpush1.msra.mxu0 0.0
    %2856 = vmatprep.subr.mxu0 0.0
    %2857 = vmatpush1.msra.mxu0 0.0
    %2858 = vmatprep.subr.mxu0 0.0
    %2859 = vmatpush1.msra.mxu0 %v123
    %2860 = vmatprep.subr.mxu0 0.0
    %2861 = vmatpush1.msra.mxu0 %v122
    %2862 = vmatprep.subr.mxu0 0.0
    %2863 = vmatpush1.msra.mxu0 %v121
    %2864 = vmatprep.subr.mxu0 0.0
    %2865 = vmatpush1.msra.mxu0 %v120
    %2866 = vmatprep.subr.mxu0 0.0
    %2867 = vmatpush2.msra.mxu0 0.0
    %2868 = vmatprep.subr.mxu0 0.0
    %2869 = vmatpush2.msra.mxu0 0.0
    %2870 = vmatprep.subr.mxu0 0.0
    %2871 = vmatpush2.msra.mxu0 0.0
    %2872 = vmatprep.subr.mxu0 0.0
    %2873 = vmatpush2.msra.mxu0 0.0
    %2874 = vmatprep.subr.mxu0 0.0
    %2875 = vmatpush2.msra.mxu0 0.0
    %2876 = vmatprep.subr.mxu0 0.0
    %2877 = vmatpush2.msra.mxu0 0.0
    %2878 = vmatprep.subr.mxu0 0.0
    %2879 = vmatpush2.msra.mxu0 0.0
    %2880 = vmatprep.subr.mxu0 0.0
    %2881 = vmatpush2.msra.mxu0 0.0
    %2882 = vmatprep.subr.mxu0 0.0
    %2883 = vmatpush2.msra.mxu0 0.0
    %2884 = vmatprep.subr.mxu0 0.0
    %2885 = vmatpush2.msra.mxu0 0.0
    %2886 = vmatprep.subr.mxu0 0.0
    %2887 = vmatpush2.msra.mxu0 0.0
    %2888 = vmatprep.subr.mxu0 0.0
    %2889 = vmatpush2.msra.mxu0 0.0
    %2890 = vmatprep.subr.mxu0 0.0
    %2891 = vmatpush2.msra.mxu0 0.0
    %2892 = vmatprep.subr.mxu0 0.0
    %2893 = vmatpush2.msra.mxu0 0.0
    %2894 = vmatprep.subr.mxu0 0.0
    %2895 = vmatpush2.msra.mxu0 0.0
    %2896 = vmatprep.subr.mxu0 0.0
    %2897 = vmatpush2.msra.mxu0 0.0
    %2898 = vmatprep.mubr.f32.mxu0 0.0
    %2899 = vmatmul.mubr.f32.gmra.mxu0 %v2832
    %v2900 = vpop.f32.mrf.mxu0
    %v2901 = vadd.f32 %v136, %v2900
    %v2902 = vpop.f32.mrf.mxu0
    %2903 = vdwg.mxu0
    %2905 = vrot.lane.b32.xlu0 %v2901, 112
    %v2906 = vpop.permute.xlu0 %2905
    %vm2908 = vcmask 1048448
    %2909 = vst.msk [vmem:[#allocation8] sm:$0xff] %vm2908, %v2906
    // Predicated region
    $region58: #{tpu_custom_call.1} parent=1 // pred_check
      _
    $region59: #{tpu_custom_call.1} parent=1 // pred_check_branch
      %2911 = sbr.rel (0) target = $region61
    $region60: #{tpu_custom_call.1} parent=1 // pred_region
      %s2913 = ssub.s32 128, 128
      %2914 = vsyncadd [#allocation4], %s2913
      %s2916 = sshll.u32 [#allocation8], 4
      %s2917 = int_to_ptr.vmem [resolvable:$true] %s2916
      %2919 = dma.vmem_to_hbm [thread:$0]  %s2917, 128, %s11, [#allocation4]
    $region61: #{tpu_custom_call.1} parent=1 // pred_fallthru
      _
    // Predicated region
    $region62: #{tpu_custom_call.1} parent=1 // pred_check
      _
    $region63: #{tpu_custom_call.1} parent=1 // pred_check_branch
      %2921 = sbr.rel (0) target = $region65
    $region64: #{tpu_custom_call.1} parent=1 // pred_region
      %2922 = dma.done [#allocation4], 128
    $region65: #{tpu_custom_call.1} parent=1 // pred_fallthru
      _
    %2923 = vsyncpa [#allocation3], 1
    %2924 = vsyncpa [#allocation6], 1
    %2925 = vsyncpa [#allocation4], 1

</llo_original>
